<compile_context>
chip_gen: v7x
topology: tpu7x:2x2x1
jax: 0.10.0
libtpu: 0.0.40
codegen_flags: <defaults>
</compile_context>

<pallas_src>
import functools
import math
import numpy as np
import jax
import jax.numpy as jnp
from jax import lax
from jax.experimental import pallas as pl
from jax.experimental.pallas import tpu as pltpu

NUM_HEADS = 4
MASK_NEG = -1e6          # d2l masked_softmax sentinel


# ----------------------------- shared math helpers -----------------------------
def _layer_norm(v, gamma, beta, eps=1e-5):
    """f32 LayerNorm over the last dim (biased variance, like torch)."""
    mu = jnp.mean(v, axis=-1, keepdims=True)
    var = jnp.mean((v - mu) ** 2, axis=-1, keepdims=True)
    return (v - mu) * lax.rsqrt(var + eps) * gamma + beta


def _attend_one(q2d, k2d, v2d, mask, num_heads):
    """Attention core for ONE batch element (block-diagonal w.r.t. batch).

    q2d (Sq,H) f32, k2d/v2d (Sk,H) f32, mask (Sq,Sk) bool.
    Heads are batched into a single 3-D dot_general with a leading head axis;
    matmul operands are bf16, accumulation f32, softmax stats f32.
    Returns the concatenated per-head context (Sq, H) in f32 (the output projection
    is applied batch-fused by the caller with a full-H contraction)."""
    H = q2d.shape[-1]
    hd = H // num_heads
    scale = 1.0 / math.sqrt(hd)
    # head-major (NH, S, hd) built via lane slices + stack (no lane-splitting reshape)
    qh = jnp.stack([q2d[:, h * hd:(h + 1) * hd] for h in range(num_heads)], axis=0)
    kh = jnp.stack([k2d[:, h * hd:(h + 1) * hd] for h in range(num_heads)], axis=0)
    vh = jnp.stack([v2d[:, h * hd:(h + 1) * hd] for h in range(num_heads)], axis=0)
    qh = qh.astype(jnp.bfloat16)
    kh = kh.astype(jnp.bfloat16)
    vh = vh.astype(jnp.bfloat16)

    s = jnp.einsum('nqd,nkd->nqk', qh, kh,
                   preferred_element_type=jnp.float32) * scale       # (NH, Sq, Sk) f32
    s = jnp.where(mask[None, :, :], s, MASK_NEG)                      # true select
    m = jnp.max(s, axis=-1, keepdims=True)
    e = jnp.exp(s - m)
    p = e * pl.reciprocal(jnp.sum(e, axis=-1, keepdims=True), approx=True)
    pv = jnp.einsum('nqk,nkd->nqd', p.astype(jnp.bfloat16), vh,
                    preferred_element_type=jnp.float32)               # (NH, Sq, hd) f32
    # concat heads once -> (Sq, H); single full-contraction output projection follows
    return jnp.concatenate([pv[h] for h in range(num_heads)], axis=-1)


# --------------------------------- Pallas kernel --------------------------------
def decoder_block_kernel(lens_ref,                      # SMEM scalar-prefetch: (B,) int32
                         x_ref, enc_ref,
                         wqkv1_ref, wo1_ref, wq2_ref, wkv2_ref, wo2_ref,
                         g1_ref, be1_ref, g2_ref, be2_ref, g3_ref, be3_ref,
                         w1_ref, bf1_ref, w2_ref, bf2_ref,
                         out_ref, *, bb, sq, sk, num_heads):
    H = x_ref.shape[-1]
    base_b = pl.program_id(0) * bb      # first batch element of this chunk

    x = x_ref[...]                      # (bb*sq, H) bf16
    enc = enc_ref[...]                  # (bb*sk, H) bf16

    # ---- self-attention: fused QKV projection (batch-fused rows) ----
    qkv = jnp.dot(x, wqkv1_ref[...], preferred_element_type=jnp.float32)   # (M, 3H) f32
    row = lax.broadcasted_iota(jnp.int32, (sq, sq), 0)
    col = lax.broadcasted_iota(jnp.int32, (sq, sq), 1)
    causal = col <= row                                                    # dec_valid_lens
    ctxs = []
    for b in range(bb):                 # static loop: scores stay (sq, sq) per batch elem
        r = slice(b * sq, (b + 1) * sq)
        ctxs.append(_attend_one(qkv[r, :H], qkv[r, H:2 * H], qkv[r, 2 * H:],
                                causal, num_heads))
    ctx = ctxs[0] if bb == 1 else jnp.concatenate(ctxs, axis=0)            # (M, H) f32
    x2 = jnp.dot(ctx.astype(jnp.bfloat16), wo1_ref[...],
                 preferred_element_type=jnp.float32)
    y = _layer_norm(x.astype(jnp.float32) + x2, g1_ref[...], be1_ref[...])

    # ---- cross-attention: fused KV projection, valid-len mask from SMEM scalars ----
    q2 = jnp.dot(y.astype(jnp.bfloat16), wq2_ref[...],
                 preferred_element_type=jnp.float32)                        # (M, H) f32
    kv2 = jnp.dot(enc, wkv2_ref[...], preferred_element_type=jnp.float32)   # (N, 2H) f32
    ccol = lax.broadcasted_iota(jnp.int32, (sq, sk), 1)
    ctxs = []
    for b in range(bb):
        rq = slice(b * sq, (b + 1) * sq)
        rk = slice(b * sk, (b + 1) * sk)
        vl = lens_ref[base_b + b]                                           # SMEM scalar
        ctxs.append(_attend_one(q2[rq], kv2[rk, :H], kv2[rk, H:],
                                ccol < vl, num_heads))
    ctx2 = ctxs[0] if bb == 1 else jnp.concatenate(ctxs, axis=0)
    y2 = jnp.dot(ctx2.astype(jnp.bfloat16), wo2_ref[...],
                 preferred_element_type=jnp.float32)
    z = _layer_norm(y + y2, g2_ref[...], be2_ref[...])

    # ---- position-wise FFN + final AddNorm ----
    h1 = jnp.maximum(
        jnp.dot(z.astype(jnp.bfloat16), w1_ref[...],
                preferred_element_type=jnp.float32) + bf1_ref[...], 0.0)
    ffn = jnp.dot(h1.astype(jnp.bfloat16), w2_ref[...],
                  preferred_element_type=jnp.float32) + bf2_ref[...]
    out_ref[...] = _layer_norm(z + ffn, g3_ref[...], be3_ref[...])


# ------------------------------------ wrapper ------------------------------------
def prepare_kernel_params(params):
    """One-time (init-time) weight prep: fuse Q/K/V and K/V projections and cast matmul
    operands to bf16. LayerNorm params and FFN biases stay f32 (added to f32 accums)."""
    bf = lambda a: a.astype(jnp.bfloat16)
    f32 = lambda a: a.astype(jnp.float32)
    return {
        "wqkv1": bf(jnp.concatenate([params["wq1"], params["wk1"], params["wv1"]], axis=1)),
        "wo1": bf(params["wo1"]),
        "wq2": bf(params["wq2"]),
        "wkv2": bf(jnp.concatenate([params["wk2"], params["wv2"]], axis=1)),
        "wo2": bf(params["wo2"]),
        "g1": f32(params["g1"]), "be1": f32(params["be1"]),
        "g2": f32(params["g2"]), "be2": f32(params["be2"]),
        "g3": f32(params["g3"]), "be3": f32(params["be3"]),
        "w_ffn1": bf(params["w_ffn1"]), "b_ffn1": f32(params["b_ffn1"]),
        "w_ffn2": bf(params["w_ffn2"]), "b_ffn2": f32(params["b_ffn2"]),
    }


def decoder_block(x, enc_outputs, enc_valid_lens, kparams, *,
                  num_heads=NUM_HEADS, batch_chunks=1):
    """batch_chunks: how many grid steps to split the batch into (pipelining / per-TC
    sharding knob). Each chunk processes BB = B // batch_chunks whole batch elements so
    attention stays block-diagonal; for production sizes choose it so one chunk's working
    set fits the per-generation VMEM budget (halve on v7x vs v6e)."""
    B, S, H = x.shape
    Se = enc_outputs.shape[1]
    assert B % batch_chunks == 0
    G = batch_chunks
    BB = B // G
    M = BB * S           # fused query rows per grid step
    N = BB * Se          # fused key rows per grid step

    x2d = x.reshape(B * S, H).astype(jnp.bfloat16)
    enc2d = enc_outputs.reshape(B * Se, H).astype(jnp.bfloat16)
    lens = enc_valid_lens.astype(jnp.int32)

    worder = ["wqkv1", "wo1", "wq2", "wkv2", "wo2",
              "g1", "be1", "g2", "be2", "g3", "be3",
              "w_ffn1", "b_ffn1", "w_ffn2", "b_ffn2"]
    weights = [kparams[k] for k in worder]

    def wspec(w):
        # full-array block, constant index_map -> weights stay resident across chunks
        return pl.BlockSpec(w.shape, lambda g, lens_ref: (0, 0))

    kernel = functools.partial(decoder_block_kernel,
                               bb=BB, sq=S, sk=Se, num_heads=num_heads)

    out2d = pl.pallas_call(
        kernel,
        out_shape=jax.ShapeDtypeStruct((B * S, H), jnp.float32),
        grid_spec=pltpu.PrefetchScalarGridSpec(
            num_scalar_prefetch=1,                       # enc_valid_lens -> SMEM
            grid=(G,),
            in_specs=[
                pl.BlockSpec((M, H), lambda g, lens_ref: (g, 0)),   # decoder rows
                pl.BlockSpec((N, H), lambda g, lens_ref: (g, 0)),   # encoder rows
            ] + [wspec(w) for w in weights],
            out_specs=pl.BlockSpec((M, H), lambda g, lens_ref: (g, 0)),
        ),
        compiler_params=pltpu.CompilerParams(
            dimension_semantics=("parallel",),
            vmem_limit_bytes=32 * 1024 * 1024),
    )(lens, x2d, enc2d, *weights)
    return out2d.reshape(B, S, H)


# -------------------------------- pure-JAX reference ----------------------------
def _ref_mha(q_in, kv_in, wq, wk, wv, wo, mask, num_heads):
    H = q_in.shape[-1]
    hd = H // num_heads
    Q = q_in @ wq
    K = kv_in @ wk
    V = kv_in @ wv
    scale = 1.0 / math.sqrt(hd)
    outs = []
    for h in range(num_heads):
        Qh = Q[:, h * hd:(h + 1) * hd]
        Kh = K[:, h * hd:(h + 1) * hd]
        Vh = V[:, h * hd:(h + 1) * hd]
        s = (Qh @ Kh.T) * scale
        s = jnp.where(mask, s, MASK_NEG)                      # d2l masked_softmax
        p = jax.nn.softmax(s, axis=-1)
        outs.append(p @ Vh)
    return jnp.concatenate(outs, axis=-1) @ wo


def reference_decoder_block(x, enc, enc_valid_lens, p):
    B, S, H = x.shape
    Se = enc.shape[1]
    causal = jnp.arange(S)[None, :] <= jnp.arange(S)[:, None]

    def one(xb, eb, ev):
        cross = jnp.arange(Se)[None, :] < ev
        x2 = _ref_mha(xb, xb, p["wq1"], p["wk1"], p["wv1"], p["wo1"], causal, NUM_HEADS)
        y = _layer_norm(xb + x2, p["g1"], p["be1"])
        y2 = _ref_mha(y, eb, p["wq2"], p["wk2"], p["wv2"], p["wo2"], cross, NUM_HEADS)
        z = _layer_norm(y + y2, p["g2"], p["be2"])
        h1 = jnp.maximum(z @ p["w_ffn1"] + p["b_ffn1"], 0.0)
        ffn = h1 @ p["w_ffn2"] + p["b_ffn2"]
        return _layer_norm(z + ffn, p["g3"], p["be3"])

    return jax.vmap(one)(x, enc, enc_valid_lens)


# ------------------------------------ main ---------------------------------------
if __name__ == "__main__":
    B, S, Se, H, F = 2, 8, 8, 32, 64          # batch, dec steps, enc steps, hidden, ffn hidden
    assert H % NUM_HEADS == 0

    key = jax.random.PRNGKey(0)
    ks = jax.random.split(key, 16)

    def w(k, shape):
        return jax.random.normal(k, shape, jnp.float32) * 0.02

    params = {
        # self-attention (bias=False, like d2l MultiHeadAttention)
        "wq1": w(ks[0], (H, H)), "wk1": w(ks[1], (H, H)),
        "wv1": w(ks[2], (H, H)), "wo1": w(ks[3], (H, H)),
        # cross-attention
        "wq2": w(ks[4], (H, H)), "wk2": w(ks[5], (H, H)),
        "wv2": w(ks[6], (H, H)), "wo2": w(ks[7], (H, H)),
        # three LayerNorms over last dim (norm_shape = H); stored as (1, H) rows
        "g1": jnp.ones((1, H), jnp.float32), "be1": jnp.zeros((1, H), jnp.float32),
        "g2": jnp.ones((1, H), jnp.float32), "be2": jnp.zeros((1, H), jnp.float32),
        "g3": jnp.ones((1, H), jnp.float32), "be3": jnp.zeros((1, H), jnp.float32),
        # PositionWiseFFN (Linear has bias)
        "w_ffn1": w(ks[8], (H, F)), "b_ffn1": w(ks[9], (1, F)),
        "w_ffn2": w(ks[10], (F, H)), "b_ffn2": w(ks[11], (1, H)),
    }

    x = jax.random.normal(ks[12], (B, S, H), jnp.float32)
    enc_outputs = jax.random.normal(ks[13], (B, Se, H), jnp.float32)
    enc_valid_lens = jnp.array([Se, 5], jnp.int32)   # must be >= 1 per batch element

    # One-time weight fusion + bf16 cast (hoisted out of the per-call path).
    kparams = prepare_kernel_params(params)

    # TODO(synk): incremental-decoding KV cache (state[2][i] concat) not modeled; this is
    # the training-path forward (key_values == X) with dropout == identity.

    out = decoder_block(x, enc_outputs, enc_valid_lens, kparams, batch_chunks=1)
    out = jax.block_until_ready(out)

    ref = reference_decoder_block(x, enc_outputs, enc_valid_lens, params)
    # Tolerance reflects bf16 MXU operands (f32 accumulation / stats) vs the f32 reference.
    np.testing.assert_allclose(np.asarray(out), np.asarray(ref), atol=3e-2, rtol=3e-2)

    print("KERNEL_OK")
</pallas_src>

<mosaic_0001>
module attributes {stable_mosaic.version = 11 : i64} {
  func.func @decoder_block_kernel(%arg0: i32, %arg1: memref<2xi32, #tpu.memory_space<smem>>, %arg2: memref<16x32xbf16, #tpu.memory_space<vmem>>, %arg3: memref<16x32xbf16, #tpu.memory_space<vmem>>, %arg4: memref<32x96xbf16, #tpu.memory_space<vmem>>, %arg5: memref<32x32xbf16, #tpu.memory_space<vmem>>, %arg6: memref<32x32xbf16, #tpu.memory_space<vmem>>, %arg7: memref<32x64xbf16, #tpu.memory_space<vmem>>, %arg8: memref<32x32xbf16, #tpu.memory_space<vmem>>, %arg9: memref<1x32xf32, #tpu.memory_space<vmem>>, %arg10: memref<1x32xf32, #tpu.memory_space<vmem>>, %arg11: memref<1x32xf32, #tpu.memory_space<vmem>>, %arg12: memref<1x32xf32, #tpu.memory_space<vmem>>, %arg13: memref<1x32xf32, #tpu.memory_space<vmem>>, %arg14: memref<1x32xf32, #tpu.memory_space<vmem>>, %arg15: memref<32x64xbf16, #tpu.memory_space<vmem>>, %arg16: memref<1x64xf32, #tpu.memory_space<vmem>>, %arg17: memref<64x32xbf16, #tpu.memory_space<vmem>>, %arg18: memref<1x32xf32, #tpu.memory_space<vmem>>, %arg19: memref<16x32xf32, #tpu.memory_space<vmem>>) attributes {dimension_semantics = [#tpu.dimension_semantics<parallel>], iteration_bounds = array<i64: 1>, scalar_prefetch = 1 : i64, scratch_operands = 0 : i64, tpu.core_type = #tpu.core_type<tc>, window_params = [{transform_indices = @transform_0, window_bounds = array<i64: 16, 32>}, {transform_indices = @transform_1, window_bounds = array<i64: 16, 32>}, {pipeline_mode = #tpu.pipeline_mode<synchronous>, transform_indices = @transform_2, window_bounds = array<i64: 32, 96>}, {pipeline_mode = #tpu.pipeline_mode<synchronous>, transform_indices = @transform_3, window_bounds = array<i64: 32, 32>}, {pipeline_mode = #tpu.pipeline_mode<synchronous>, transform_indices = @transform_4, window_bounds = array<i64: 32, 32>}, {pipeline_mode = #tpu.pipeline_mode<synchronous>, transform_indices = @transform_5, window_bounds = array<i64: 32, 64>}, {pipeline_mode = #tpu.pipeline_mode<synchronous>, transform_indices = @transform_6, window_bounds = array<i64: 32, 32>}, {pipeline_mode = #tpu.pipeline_mode<synchronous>, transform_indices = @transform_7, window_bounds = array<i64: 1, 32>}, {pipeline_mode = #tpu.pipeline_mode<synchronous>, transform_indices = @transform_8, window_bounds = array<i64: 1, 32>}, {pipeline_mode = #tpu.pipeline_mode<synchronous>, transform_indices = @transform_9, window_bounds = array<i64: 1, 32>}, {pipeline_mode = #tpu.pipeline_mode<synchronous>, transform_indices = @transform_10, window_bounds = array<i64: 1, 32>}, {pipeline_mode = #tpu.pipeline_mode<synchronous>, transform_indices = @transform_11, window_bounds = array<i64: 1, 32>}, {pipeline_mode = #tpu.pipeline_mode<synchronous>, transform_indices = @transform_12, window_bounds = array<i64: 1, 32>}, {pipeline_mode = #tpu.pipeline_mode<synchronous>, transform_indices = @transform_13, window_bounds = array<i64: 32, 64>}, {pipeline_mode = #tpu.pipeline_mode<synchronous>, transform_indices = @transform_14, window_bounds = array<i64: 1, 64>}, {pipeline_mode = #tpu.pipeline_mode<synchronous>, transform_indices = @transform_15, window_bounds = array<i64: 64, 32>}, {pipeline_mode = #tpu.pipeline_mode<synchronous>, transform_indices = @transform_16, window_bounds = array<i64: 1, 32>}, {transform_indices = @transform_17, window_bounds = array<i64: 16, 32>}]} {
    %c2_i32 = arith.constant 2 : i32
    %0 = arith.muli %arg0, %c2_i32 : i32
    %c0 = arith.constant 0 : index
    %c0_0 = arith.constant 0 : index
    %1 = vector.load %arg2[%c0, %c0_0] : memref<16x32xbf16, #tpu.memory_space<vmem>>, vector<16x32xbf16>
    %c0_1 = arith.constant 0 : index
    %c0_2 = arith.constant 0 : index
    %2 = vector.load %arg3[%c0_1, %c0_2] : memref<16x32xbf16, #tpu.memory_space<vmem>>, vector<16x32xbf16>
    %c0_3 = arith.constant 0 : index
    %c0_4 = arith.constant 0 : index
    %3 = vector.load %arg4[%c0_3, %c0_4] : memref<32x96xbf16, #tpu.memory_space<vmem>>, vector<32x96xbf16>
    %cst = arith.constant dense<0.000000e+00> : vector<16x96xf32>
    %4 = tpu.matmul %1, %3, %cst {dimension_numbers = #tpu.dot_dimension_numbers<[1], [0], [0], [1], [0, 0, 1, 1], [], []>} : vector<16x32xbf16>, vector<32x96xbf16>, vector<16x96xf32> -> vector<16x96xf32>
    %5 = tpu.iota {dimensions = array<i32: 0>} : vector<8x8xi32>
    %6 = tpu.iota {dimensions = array<i32: 1>} : vector<8x8xi32>
    %7 = arith.cmpi sle, %6, %5 : vector<8x8xi32>
    %8 = vector.extract_strided_slice %4 {offsets = [0, 0], sizes = [8, 32], strides = [1, 1]} : vector<16x96xf32> to vector<8x32xf32>
    %9 = vector.extract_strided_slice %4 {offsets = [0, 32], sizes = [8, 32], strides = [1, 1]} : vector<16x96xf32> to vector<8x32xf32>
    %10 = vector.extract_strided_slice %4 {offsets = [0, 64], sizes = [8, 32], strides = [1, 1]} : vector<16x96xf32> to vector<8x32xf32>
    %11 = vector.extract_strided_slice %8 {offsets = [0, 0], sizes = [8, 8], strides = [1, 1]} : vector<8x32xf32> to vector<8x8xf32>
    %12 = vector.extract_strided_slice %8 {offsets = [0, 8], sizes = [8, 8], strides = [1, 1]} : vector<8x32xf32> to vector<8x8xf32>
    %13 = vector.extract_strided_slice %8 {offsets = [0, 16], sizes = [8, 8], strides = [1, 1]} : vector<8x32xf32> to vector<8x8xf32>
    %14 = vector.extract_strided_slice %8 {offsets = [0, 24], sizes = [8, 8], strides = [1, 1]} : vector<8x32xf32> to vector<8x8xf32>
    %15 = vector.shape_cast %11 : vector<8x8xf32> to vector<1x8x8xf32>
    %16 = vector.shape_cast %12 : vector<8x8xf32> to vector<1x8x8xf32>
    %17 = vector.shape_cast %13 : vector<8x8xf32> to vector<1x8x8xf32>
    %18 = vector.shape_cast %14 : vector<8x8xf32> to vector<1x8x8xf32>
    %19 = tpu.concatenate %15, %16, %17, %18 in 0 : vector<1x8x8xf32>, vector<1x8x8xf32>, vector<1x8x8xf32>, vector<1x8x8xf32> -> vector<4x8x8xf32>
    %20 = vector.extract_strided_slice %9 {offsets = [0, 0], sizes = [8, 8], strides = [1, 1]} : vector<8x32xf32> to vector<8x8xf32>
    %21 = vector.extract_strided_slice %9 {offsets = [0, 8], sizes = [8, 8], strides = [1, 1]} : vector<8x32xf32> to vector<8x8xf32>
    %22 = vector.extract_strided_slice %9 {offsets = [0, 16], sizes = [8, 8], strides = [1, 1]} : vector<8x32xf32> to vector<8x8xf32>
    %23 = vector.extract_strided_slice %9 {offsets = [0, 24], sizes = [8, 8], strides = [1, 1]} : vector<8x32xf32> to vector<8x8xf32>
    %24 = vector.shape_cast %20 : vector<8x8xf32> to vector<1x8x8xf32>
    %25 = vector.shape_cast %21 : vector<8x8xf32> to vector<1x8x8xf32>
    %26 = vector.shape_cast %22 : vector<8x8xf32> to vector<1x8x8xf32>
    %27 = vector.shape_cast %23 : vector<8x8xf32> to vector<1x8x8xf32>
    %28 = tpu.concatenate %24, %25, %26, %27 in 0 : vector<1x8x8xf32>, vector<1x8x8xf32>, vector<1x8x8xf32>, vector<1x8x8xf32> -> vector<4x8x8xf32>
    %29 = vector.extract_strided_slice %10 {offsets = [0, 0], sizes = [8, 8], strides = [1, 1]} : vector<8x32xf32> to vector<8x8xf32>
    %30 = vector.extract_strided_slice %10 {offsets = [0, 8], sizes = [8, 8], strides = [1, 1]} : vector<8x32xf32> to vector<8x8xf32>
    %31 = vector.extract_strided_slice %10 {offsets = [0, 16], sizes = [8, 8], strides = [1, 1]} : vector<8x32xf32> to vector<8x8xf32>
    %32 = vector.extract_strided_slice %10 {offsets = [0, 24], sizes = [8, 8], strides = [1, 1]} : vector<8x32xf32> to vector<8x8xf32>
    %33 = vector.shape_cast %29 : vector<8x8xf32> to vector<1x8x8xf32>
    %34 = vector.shape_cast %30 : vector<8x8xf32> to vector<1x8x8xf32>
    %35 = vector.shape_cast %31 : vector<8x8xf32> to vector<1x8x8xf32>
    %36 = vector.shape_cast %32 : vector<8x8xf32> to vector<1x8x8xf32>
    %37 = tpu.concatenate %33, %34, %35, %36 in 0 : vector<1x8x8xf32>, vector<1x8x8xf32>, vector<1x8x8xf32>, vector<1x8x8xf32> -> vector<4x8x8xf32>
    %38 = arith.truncf %19 : vector<4x8x8xf32> to vector<4x8x8xbf16>
    %39 = arith.truncf %28 : vector<4x8x8xf32> to vector<4x8x8xbf16>
    %40 = arith.truncf %37 : vector<4x8x8xf32> to vector<4x8x8xbf16>
    "tpu.trace_start"() <{level = 10 : i32, message = "nqd,nkd->nqk"}> : () -> ()
    %cst_5 = arith.constant dense<0.000000e+00> : vector<4x8x8xf32>
    %41 = tpu.matmul %38, %39, %cst_5 {dimension_numbers = #tpu.dot_dimension_numbers<[2], [2], [1], [1], [0, 0, 0, 1, 1, 1], [0], [0]>} : vector<4x8x8xbf16>, vector<4x8x8xbf16>, vector<4x8x8xf32> -> vector<4x8x8xf32>
    "tpu.trace_stop"() : () -> ()
    %cst_6 = arith.constant 0.353553385 : f32
    %42 = vector.broadcast %cst_6 : f32 to vector<4x8x8xf32>
    %43 = arith.mulf %41, %42 : vector<4x8x8xf32>
    %44 = vector.shape_cast %7 : vector<8x8xi1> to vector<1x8x8xi1>
    %cst_7 = arith.constant -1.000000e+06 : f32
    %45 = vector.shape_cast %44 : vector<1x8x8xi1> to vector<1x8x8xi1>
    %46 = vector.broadcast %45 : vector<1x8x8xi1> to vector<4x8x8xi1>
    %47 = vector.broadcast %cst_7 : f32 to vector<4x8x8xf32>
    %48 = arith.select %46, %43, %47 : vector<4x8x8xi1>, vector<4x8x8xf32>
    %cst_8 = arith.constant dense<0xFF800000> : vector<4x8xf32>
    %49 = vector.multi_reduction <maximumf>, %48, %cst_8 [2] : vector<4x8x8xf32> to vector<4x8xf32>
    %50 = vector.shape_cast %49 : vector<4x8xf32> to vector<4x8x1xf32>
    %51 = vector.broadcast %50 : vector<4x8x1xf32> to vector<4x8x8xf32>
    %52 = arith.subf %48, %51 : vector<4x8x8xf32>
    %53 = math.exp %52 : vector<4x8x8xf32>
    %cst_9 = arith.constant dense<0.000000e+00> : vector<4x8xf32>
    %54 = vector.multi_reduction <add>, %53, %cst_9 [2] : vector<4x8x8xf32> to vector<4x8xf32>
    %55 = vector.shape_cast %54 : vector<4x8xf32> to vector<4x8x1xf32>
    %56 = tpu.reciprocal %55 {approx = true} : vector<4x8x1xf32> -> vector<4x8x1xf32>
    %57 = vector.broadcast %56 : vector<4x8x1xf32> to vector<4x8x8xf32>
    %58 = arith.mulf %53, %57 : vector<4x8x8xf32>
    %59 = arith.truncf %58 : vector<4x8x8xf32> to vector<4x8x8xbf16>
    "tpu.trace_start"() <{level = 10 : i32, message = "nqk,nkd->nqd"}> : () -> ()
    %cst_10 = arith.constant dense<0.000000e+00> : vector<4x8x8xf32>
    %60 = tpu.matmul %59, %40, %cst_10 {dimension_numbers = #tpu.dot_dimension_numbers<[2], [1], [1], [2], [0, 0, 0, 1, 1, 2], [0], [0]>} : vector<4x8x8xbf16>, vector<4x8x8xbf16>, vector<4x8x8xf32> -> vector<4x8x8xf32>
    "tpu.trace_stop"() : () -> ()
    %61 = vector.extract_strided_slice %60 {offsets = [0, 0, 0], sizes = [1, 8, 8], strides = [1, 1, 1]} : vector<4x8x8xf32> to vector<1x8x8xf32>
    %62 = vector.shape_cast %61 : vector<1x8x8xf32> to vector<8x8xf32>
    %63 = vector.extract_strided_slice %60 {offsets = [1, 0, 0], sizes = [1, 8, 8], strides = [1, 1, 1]} : vector<4x8x8xf32> to vector<1x8x8xf32>
    %64 = vector.shape_cast %63 : vector<1x8x8xf32> to vector<8x8xf32>
    %65 = vector.extract_strided_slice %60 {offsets = [2, 0, 0], sizes = [1, 8, 8], strides = [1, 1, 1]} : vector<4x8x8xf32> to vector<1x8x8xf32>
    %66 = vector.shape_cast %65 : vector<1x8x8xf32> to vector<8x8xf32>
    %67 = vector.extract_strided_slice %60 {offsets = [3, 0, 0], sizes = [1, 8, 8], strides = [1, 1, 1]} : vector<4x8x8xf32> to vector<1x8x8xf32>
    %68 = vector.shape_cast %67 : vector<1x8x8xf32> to vector<8x8xf32>
    %69 = tpu.concatenate %62, %64, %66, %68 in 1 : vector<8x8xf32>, vector<8x8xf32>, vector<8x8xf32>, vector<8x8xf32> -> vector<8x32xf32>
    %70 = vector.extract_strided_slice %4 {offsets = [8, 0], sizes = [8, 32], strides = [1, 1]} : vector<16x96xf32> to vector<8x32xf32>
    %71 = vector.extract_strided_slice %4 {offsets = [8, 32], sizes = [8, 32], strides = [1, 1]} : vector<16x96xf32> to vector<8x32xf32>
    %72 = vector.extract_strided_slice %4 {offsets = [8, 64], sizes = [8, 32], strides = [1, 1]} : vector<16x96xf32> to vector<8x32xf32>
    %73 = vector.extract_strided_slice %70 {offsets = [0, 0], sizes = [8, 8], strides = [1, 1]} : vector<8x32xf32> to vector<8x8xf32>
    %74 = vector.extract_strided_slice %70 {offsets = [0, 8], sizes = [8, 8], strides = [1, 1]} : vector<8x32xf32> to vector<8x8xf32>
    %75 = vector.extract_strided_slice %70 {offsets = [0, 16], sizes = [8, 8], strides = [1, 1]} : vector<8x32xf32> to vector<8x8xf32>
    %76 = vector.extract_strided_slice %70 {offsets = [0, 24], sizes = [8, 8], strides = [1, 1]} : vector<8x32xf32> to vector<8x8xf32>
    %77 = vector.shape_cast %73 : vector<8x8xf32> to vector<1x8x8xf32>
    %78 = vector.shape_cast %74 : vector<8x8xf32> to vector<1x8x8xf32>
    %79 = vector.shape_cast %75 : vector<8x8xf32> to vector<1x8x8xf32>
    %80 = vector.shape_cast %76 : vector<8x8xf32> to vector<1x8x8xf32>
    %81 = tpu.concatenate %77, %78, %79, %80 in 0 : vector<1x8x8xf32>, vector<1x8x8xf32>, vector<1x8x8xf32>, vector<1x8x8xf32> -> vector<4x8x8xf32>
    %82 = vector.extract_strided_slice %71 {offsets = [0, 0], sizes = [8, 8], strides = [1, 1]} : vector<8x32xf32> to vector<8x8xf32>
    %83 = vector.extract_strided_slice %71 {offsets = [0, 8], sizes = [8, 8], strides = [1, 1]} : vector<8x32xf32> to vector<8x8xf32>
    %84 = vector.extract_strided_slice %71 {offsets = [0, 16], sizes = [8, 8], strides = [1, 1]} : vector<8x32xf32> to vector<8x8xf32>
    %85 = vector.extract_strided_slice %71 {offsets = [0, 24], sizes = [8, 8], strides = [1, 1]} : vector<8x32xf32> to vector<8x8xf32>
    %86 = vector.shape_cast %82 : vector<8x8xf32> to vector<1x8x8xf32>
    %87 = vector.shape_cast %83 : vector<8x8xf32> to vector<1x8x8xf32>
    %88 = vector.shape_cast %84 : vector<8x8xf32> to vector<1x8x8xf32>
    %89 = vector.shape_cast %85 : vector<8x8xf32> to vector<1x8x8xf32>
    %90 = tpu.concatenate %86, %87, %88, %89 in 0 : vector<1x8x8xf32>, vector<1x8x8xf32>, vector<1x8x8xf32>, vector<1x8x8xf32> -> vector<4x8x8xf32>
    %91 = vector.extract_strided_slice %72 {offsets = [0, 0], sizes = [8, 8], strides = [1, 1]} : vector<8x32xf32> to vector<8x8xf32>
    %92 = vector.extract_strided_slice %72 {offsets = [0, 8], sizes = [8, 8], strides = [1, 1]} : vector<8x32xf32> to vector<8x8xf32>
    %93 = vector.extract_strided_slice %72 {offsets = [0, 16], sizes = [8, 8], strides = [1, 1]} : vector<8x32xf32> to vector<8x8xf32>
    %94 = vector.extract_strided_slice %72 {offsets = [0, 24], sizes = [8, 8], strides = [1, 1]} : vector<8x32xf32> to vector<8x8xf32>
    %95 = vector.shape_cast %91 : vector<8x8xf32> to vector<1x8x8xf32>
    %96 = vector.shape_cast %92 : vector<8x8xf32> to vector<1x8x8xf32>
    %97 = vector.shape_cast %93 : vector<8x8xf32> to vector<1x8x8xf32>
    %98 = vector.shape_cast %94 : vector<8x8xf32> to vector<1x8x8xf32>
    %99 = tpu.concatenate %95, %96, %97, %98 in 0 : vector<1x8x8xf32>, vector<1x8x8xf32>, vector<1x8x8xf32>, vector<1x8x8xf32> -> vector<4x8x8xf32>
    %100 = arith.truncf %81 : vector<4x8x8xf32> to vector<4x8x8xbf16>
    %101 = arith.truncf %90 : vector<4x8x8xf32> to vector<4x8x8xbf16>
    %102 = arith.truncf %99 : vector<4x8x8xf32> to vector<4x8x8xbf16>
    "tpu.trace_start"() <{level = 10 : i32, message = "nqd,nkd->nqk"}> : () -> ()
    %cst_11 = arith.constant dense<0.000000e+00> : vector<4x8x8xf32>
    %103 = tpu.matmul %100, %101, %cst_11 {dimension_numbers = #tpu.dot_dimension_numbers<[2], [2], [1], [1], [0, 0, 0, 1, 1, 1], [0], [0]>} : vector<4x8x8xbf16>, vector<4x8x8xbf16>, vector<4x8x8xf32> -> vector<4x8x8xf32>
    "tpu.trace_stop"() : () -> ()
    %cst_12 = arith.constant 0.353553385 : f32
    %104 = vector.broadcast %cst_12 : f32 to vector<4x8x8xf32>
    %105 = arith.mulf %103, %104 : vector<4x8x8xf32>
    %106 = vector.shape_cast %7 : vector<8x8xi1> to vector<1x8x8xi1>
    %cst_13 = arith.constant -1.000000e+06 : f32
    %107 = vector.shape_cast %106 : vector<1x8x8xi1> to vector<1x8x8xi1>
    %108 = vector.broadcast %107 : vector<1x8x8xi1> to vector<4x8x8xi1>
    %109 = vector.broadcast %cst_13 : f32 to vector<4x8x8xf32>
    %110 = arith.select %108, %105, %109 : vector<4x8x8xi1>, vector<4x8x8xf32>
    %cst_14 = arith.constant dense<0xFF800000> : vector<4x8xf32>
    %111 = vector.multi_reduction <maximumf>, %110, %cst_14 [2] : vector<4x8x8xf32> to vector<4x8xf32>
    %112 = vector.shape_cast %111 : vector<4x8xf32> to vector<4x8x1xf32>
    %113 = vector.broadcast %112 : vector<4x8x1xf32> to vector<4x8x8xf32>
    %114 = arith.subf %110, %113 : vector<4x8x8xf32>
    %115 = math.exp %114 : vector<4x8x8xf32>
    %cst_15 = arith.constant dense<0.000000e+00> : vector<4x8xf32>
    %116 = vector.multi_reduction <add>, %115, %cst_15 [2] : vector<4x8x8xf32> to vector<4x8xf32>
    %117 = vector.shape_cast %116 : vector<4x8xf32> to vector<4x8x1xf32>
    %118 = tpu.reciprocal %117 {approx = true} : vector<4x8x1xf32> -> vector<4x8x1xf32>
    %119 = vector.broadcast %118 : vector<4x8x1xf32> to vector<4x8x8xf32>
    %120 = arith.mulf %115, %119 : vector<4x8x8xf32>
    %121 = arith.truncf %120 : vector<4x8x8xf32> to vector<4x8x8xbf16>
    "tpu.trace_start"() <{level = 10 : i32, message = "nqk,nkd->nqd"}> : () -> ()
    %cst_16 = arith.constant dense<0.000000e+00> : vector<4x8x8xf32>
    %122 = tpu.matmul %121, %102, %cst_16 {dimension_numbers = #tpu.dot_dimension_numbers<[2], [1], [1], [2], [0, 0, 0, 1, 1, 2], [0], [0]>} : vector<4x8x8xbf16>, vector<4x8x8xbf16>, vector<4x8x8xf32> -> vector<4x8x8xf32>
    "tpu.trace_stop"() : () -> ()
    %123 = vector.extract_strided_slice %122 {offsets = [0, 0, 0], sizes = [1, 8, 8], strides = [1, 1, 1]} : vector<4x8x8xf32> to vector<1x8x8xf32>
    %124 = vector.shape_cast %123 : vector<1x8x8xf32> to vector<8x8xf32>
    %125 = vector.extract_strided_slice %122 {offsets = [1, 0, 0], sizes = [1, 8, 8], strides = [1, 1, 1]} : vector<4x8x8xf32> to vector<1x8x8xf32>
    %126 = vector.shape_cast %125 : vector<1x8x8xf32> to vector<8x8xf32>
    %127 = vector.extract_strided_slice %122 {offsets = [2, 0, 0], sizes = [1, 8, 8], strides = [1, 1, 1]} : vector<4x8x8xf32> to vector<1x8x8xf32>
    %128 = vector.shape_cast %127 : vector<1x8x8xf32> to vector<8x8xf32>
    %129 = vector.extract_strided_slice %122 {offsets = [3, 0, 0], sizes = [1, 8, 8], strides = [1, 1, 1]} : vector<4x8x8xf32> to vector<1x8x8xf32>
    %130 = vector.shape_cast %129 : vector<1x8x8xf32> to vector<8x8xf32>
    %131 = tpu.concatenate %124, %126, %128, %130 in 1 : vector<8x8xf32>, vector<8x8xf32>, vector<8x8xf32>, vector<8x8xf32> -> vector<8x32xf32>
    %132 = tpu.concatenate %69, %131 in 0 : vector<8x32xf32>, vector<8x32xf32> -> vector<16x32xf32>
    %133 = arith.truncf %132 : vector<16x32xf32> to vector<16x32xbf16>
    %c0_17 = arith.constant 0 : index
    %c0_18 = arith.constant 0 : index
    %134 = vector.load %arg5[%c0_17, %c0_18] : memref<32x32xbf16, #tpu.memory_space<vmem>>, vector<32x32xbf16>
    %cst_19 = arith.constant dense<0.000000e+00> : vector<16x32xf32>
    %135 = tpu.matmul %133, %134, %cst_19 {dimension_numbers = #tpu.dot_dimension_numbers<[1], [0], [0], [1], [0, 0, 1, 1], [], []>} : vector<16x32xbf16>, vector<32x32xbf16>, vector<16x32xf32> -> vector<16x32xf32>
    %136 = arith.extf %1 : vector<16x32xbf16> to vector<16x32xf32>
    %137 = arith.addf %136, %135 : vector<16x32xf32>
    %c0_20 = arith.constant 0 : index
    %c0_21 = arith.constant 0 : index
    %138 = vector.load %arg9[%c0_20, %c0_21] : memref<1x32xf32, #tpu.memory_space<vmem>>, vector<1x32xf32>
    %c0_22 = arith.constant 0 : index
    %c0_23 = arith.constant 0 : index
    %139 = vector.load %arg10[%c0_22, %c0_23] : memref<1x32xf32, #tpu.memory_space<vmem>>, vector<1x32xf32>
    %cst_24 = arith.constant dense<0.000000e+00> : vector<16xf32>
    %140 = vector.multi_reduction <add>, %137, %cst_24 [1] : vector<16x32xf32> to vector<16xf32>
    %141 = vector.shape_cast %140 : vector<16xf32> to vector<16x1xf32>
    %cst_25 = arith.constant 3.200000e+01 : f32
    %142 = vector.broadcast %cst_25 : f32 to vector<16x1xf32>
    %143 = arith.divf %141, %142 : vector<16x1xf32>
    %144 = vector.broadcast %143 : vector<16x1xf32> to vector<16x32xf32>
    %145 = arith.subf %137, %144 : vector<16x32xf32>
    %146 = arith.mulf %145, %145 : vector<16x32xf32>
    %cst_26 = arith.constant dense<0.000000e+00> : vector<16xf32>
    %147 = vector.multi_reduction <add>, %146, %cst_26 [1] : vector<16x32xf32> to vector<16xf32>
    %148 = vector.shape_cast %147 : vector<16xf32> to vector<16x1xf32>
    %cst_27 = arith.constant 3.200000e+01 : f32
    %149 = vector.broadcast %cst_27 : f32 to vector<16x1xf32>
    %150 = arith.divf %148, %149 : vector<16x1xf32>
    %151 = vector.broadcast %143 : vector<16x1xf32> to vector<16x32xf32>
    %152 = arith.subf %137, %151 : vector<16x32xf32>
    %cst_28 = arith.constant 9.99999974E-6 : f32
    %153 = vector.broadcast %cst_28 : f32 to vector<16x1xf32>
    %154 = arith.addf %150, %153 : vector<16x1xf32>
    %155 = math.rsqrt %154 : vector<16x1xf32>
    %156 = vector.broadcast %155 : vector<16x1xf32> to vector<16x32xf32>
    %157 = arith.mulf %152, %156 : vector<16x32xf32>
    %158 = vector.broadcast %138 : vector<1x32xf32> to vector<16x32xf32>
    %159 = arith.mulf %157, %158 : vector<16x32xf32>
    %160 = vector.broadcast %139 : vector<1x32xf32> to vector<16x32xf32>
    %161 = arith.addf %159, %160 : vector<16x32xf32>
    %162 = arith.truncf %161 : vector<16x32xf32> to vector<16x32xbf16>
    %c0_29 = arith.constant 0 : index
    %c0_30 = arith.constant 0 : index
    %163 = vector.load %arg6[%c0_29, %c0_30] : memref<32x32xbf16, #tpu.memory_space<vmem>>, vector<32x32xbf16>
    %cst_31 = arith.constant dense<0.000000e+00> : vector<16x32xf32>
    %164 = tpu.matmul %162, %163, %cst_31 {dimension_numbers = #tpu.dot_dimension_numbers<[1], [0], [0], [1], [0, 0, 1, 1], [], []>} : vector<16x32xbf16>, vector<32x32xbf16>, vector<16x32xf32> -> vector<16x32xf32>
    %c0_32 = arith.constant 0 : index
    %c0_33 = arith.constant 0 : index
    %165 = vector.load %arg7[%c0_32, %c0_33] : memref<32x64xbf16, #tpu.memory_space<vmem>>, vector<32x64xbf16>
    %cst_34 = arith.constant dense<0.000000e+00> : vector<16x64xf32>
    %166 = tpu.matmul %2, %165, %cst_34 {dimension_numbers = #tpu.dot_dimension_numbers<[1], [0], [0], [1], [0, 0, 1, 1], [], []>} : vector<16x32xbf16>, vector<32x64xbf16>, vector<16x64xf32> -> vector<16x64xf32>
    %167 = tpu.iota {dimensions = array<i32: 1>} : vector<8x8xi32>
    %c0_i32 = arith.constant 0 : i32
    %168 = arith.addi %0, %c0_i32 : i32
    %169 = arith.index_cast %168 : i32 to index
    %170 = memref.load %arg1[%169] : memref<2xi32, #tpu.memory_space<smem>>
    %171 = vector.extract_strided_slice %164 {offsets = [0, 0], sizes = [8, 32], strides = [1, 1]} : vector<16x32xf32> to vector<8x32xf32>
    %172 = vector.extract_strided_slice %166 {offsets = [0, 0], sizes = [8, 32], strides = [1, 1]} : vector<16x64xf32> to vector<8x32xf32>
    %173 = vector.extract_strided_slice %166 {offsets = [0, 32], sizes = [8, 32], strides = [1, 1]} : vector<16x64xf32> to vector<8x32xf32>
    %174 = vector.broadcast %170 : i32 to vector<8x8xi32>
    %175 = arith.cmpi slt, %167, %174 : vector<8x8xi32>
    %176 = vector.extract_strided_slice %171 {offsets = [0, 0], sizes = [8, 8], strides = [1, 1]} : vector<8x32xf32> to vector<8x8xf32>
    %177 = vector.extract_strided_slice %171 {offsets = [0, 8], sizes = [8, 8], strides = [1, 1]} : vector<8x32xf32> to vector<8x8xf32>
    %178 = vector.extract_strided_slice %171 {offsets = [0, 16], sizes = [8, 8], strides = [1, 1]} : vector<8x32xf32> to vector<8x8xf32>
    %179 = vector.extract_strided_slice %171 {offsets = [0, 24], sizes = [8, 8], strides = [1, 1]} : vector<8x32xf32> to vector<8x8xf32>
    %180 = vector.shape_cast %176 : vector<8x8xf32> to vector<1x8x8xf32>
    %181 = vector.shape_cast %177 : vector<8x8xf32> to vector<1x8x8xf32>
    %182 = vector.shape_cast %178 : vector<8x8xf32> to vector<1x8x8xf32>
    %183 = vector.shape_cast %179 : vector<8x8xf32> to vector<1x8x8xf32>
    %184 = tpu.concatenate %180, %181, %182, %183 in 0 : vector<1x8x8xf32>, vector<1x8x8xf32>, vector<1x8x8xf32>, vector<1x8x8xf32> -> vector<4x8x8xf32>
    %185 = vector.extract_strided_slice %172 {offsets = [0, 0], sizes = [8, 8], strides = [1, 1]} : vector<8x32xf32> to vector<8x8xf32>
    %186 = vector.extract_strided_slice %172 {offsets = [0, 8], sizes = [8, 8], strides = [1, 1]} : vector<8x32xf32> to vector<8x8xf32>
    %187 = vector.extract_strided_slice %172 {offsets = [0, 16], sizes = [8, 8], strides = [1, 1]} : vector<8x32xf32> to vector<8x8xf32>
    %188 = vector.extract_strided_slice %172 {offsets = [0, 24], sizes = [8, 8], strides = [1, 1]} : vector<8x32xf32> to vector<8x8xf32>
    %189 = vector.shape_cast %185 : vector<8x8xf32> to vector<1x8x8xf32>
    %190 = vector.shape_cast %186 : vector<8x8xf32> to vector<1x8x8xf32>
    %191 = vector.shape_cast %187 : vector<8x8xf32> to vector<1x8x8xf32>
    %192 = vector.shape_cast %188 : vector<8x8xf32> to vector<1x8x8xf32>
    %193 = tpu.concatenate %189, %190, %191, %192 in 0 : vector<1x8x8xf32>, vector<1x8x8xf32>, vector<1x8x8xf32>, vector<1x8x8xf32> -> vector<4x8x8xf32>
    %194 = vector.extract_strided_slice %173 {offsets = [0, 0], sizes = [8, 8], strides = [1, 1]} : vector<8x32xf32> to vector<8x8xf32>
    %195 = vector.extract_strided_slice %173 {offsets = [0, 8], sizes = [8, 8], strides = [1, 1]} : vector<8x32xf32> to vector<8x8xf32>
    %196 = vector.extract_strided_slice %173 {offsets = [0, 16], sizes = [8, 8], strides = [1, 1]} : vector<8x32xf32> to vector<8x8xf32>
    %197 = vector.extract_strided_slice %173 {offsets = [0, 24], sizes = [8, 8], strides = [1, 1]} : vector<8x32xf32> to vector<8x8xf32>
    %198 = vector.shape_cast %194 : vector<8x8xf32> to vector<1x8x8xf32>
    %199 = vector.shape_cast %195 : vector<8x8xf32> to vector<1x8x8xf32>
    %200 = vector.shape_cast %196 : vector<8x8xf32> to vector<1x8x8xf32>
    %201 = vector.shape_cast %197 : vector<8x8xf32> to vector<1x8x8xf32>
    %202 = tpu.concatenate %198, %199, %200, %201 in 0 : vector<1x8x8xf32>, vector<1x8x8xf32>, vector<1x8x8xf32>, vector<1x8x8xf32> -> vector<4x8x8xf32>
    %203 = arith.truncf %184 : vector<4x8x8xf32> to vector<4x8x8xbf16>
    %204 = arith.truncf %193 : vector<4x8x8xf32> to vector<4x8x8xbf16>
    %205 = arith.truncf %202 : vector<4x8x8xf32> to vector<4x8x8xbf16>
    "tpu.trace_start"() <{level = 10 : i32, message = "nqd,nkd->nqk"}> : () -> ()
    %cst_35 = arith.constant dense<0.000000e+00> : vector<4x8x8xf32>
    %206 = tpu.matmul %203, %204, %cst_35 {dimension_numbers = #tpu.dot_dimension_numbers<[2], [2], [1], [1], [0, 0, 0, 1, 1, 1], [0], [0]>} : vector<4x8x8xbf16>, vector<4x8x8xbf16>, vector<4x8x8xf32> -> vector<4x8x8xf32>
    "tpu.trace_stop"() : () -> ()
    %cst_36 = arith.constant 0.353553385 : f32
    %207 = vector.broadcast %cst_36 : f32 to vector<4x8x8xf32>
    %208 = arith.mulf %206, %207 : vector<4x8x8xf32>
    %209 = vector.shape_cast %175 : vector<8x8xi1> to vector<1x8x8xi1>
    %cst_37 = arith.constant -1.000000e+06 : f32
    %210 = vector.shape_cast %209 : vector<1x8x8xi1> to vector<1x8x8xi1>
    %211 = vector.broadcast %210 : vector<1x8x8xi1> to vector<4x8x8xi1>
    %212 = vector.broadcast %cst_37 : f32 to vector<4x8x8xf32>
    %213 = arith.select %211, %208, %212 : vector<4x8x8xi1>, vector<4x8x8xf32>
    %cst_38 = arith.constant dense<0xFF800000> : vector<4x8xf32>
    %214 = vector.multi_reduction <maximumf>, %213, %cst_38 [2] : vector<4x8x8xf32> to vector<4x8xf32>
    %215 = vector.shape_cast %214 : vector<4x8xf32> to vector<4x8x1xf32>
    %216 = vector.broadcast %215 : vector<4x8x1xf32> to vector<4x8x8xf32>
    %217 = arith.subf %213, %216 : vector<4x8x8xf32>
    %218 = math.exp %217 : vector<4x8x8xf32>
    %cst_39 = arith.constant dense<0.000000e+00> : vector<4x8xf32>
    %219 = vector.multi_reduction <add>, %218, %cst_39 [2] : vector<4x8x8xf32> to vector<4x8xf32>
    %220 = vector.shape_cast %219 : vector<4x8xf32> to vector<4x8x1xf32>
    %221 = tpu.reciprocal %220 {approx = true} : vector<4x8x1xf32> -> vector<4x8x1xf32>
    %222 = vector.broadcast %221 : vector<4x8x1xf32> to vector<4x8x8xf32>
    %223 = arith.mulf %218, %222 : vector<4x8x8xf32>
    %224 = arith.truncf %223 : vector<4x8x8xf32> to vector<4x8x8xbf16>
    "tpu.trace_start"() <{level = 10 : i32, message = "nqk,nkd->nqd"}> : () -> ()
    %cst_40 = arith.constant dense<0.000000e+00> : vector<4x8x8xf32>
    %225 = tpu.matmul %224, %205, %cst_40 {dimension_numbers = #tpu.dot_dimension_numbers<[2], [1], [1], [2], [0, 0, 0, 1, 1, 2], [0], [0]>} : vector<4x8x8xbf16>, vector<4x8x8xbf16>, vector<4x8x8xf32> -> vector<4x8x8xf32>
    "tpu.trace_stop"() : () -> ()
    %226 = vector.extract_strided_slice %225 {offsets = [0, 0, 0], sizes = [1, 8, 8], strides = [1, 1, 1]} : vector<4x8x8xf32> to vector<1x8x8xf32>
    %227 = vector.shape_cast %226 : vector<1x8x8xf32> to vector<8x8xf32>
    %228 = vector.extract_strided_slice %225 {offsets = [1, 0, 0], sizes = [1, 8, 8], strides = [1, 1, 1]} : vector<4x8x8xf32> to vector<1x8x8xf32>
    %229 = vector.shape_cast %228 : vector<1x8x8xf32> to vector<8x8xf32>
    %230 = vector.extract_strided_slice %225 {offsets = [2, 0, 0], sizes = [1, 8, 8], strides = [1, 1, 1]} : vector<4x8x8xf32> to vector<1x8x8xf32>
    %231 = vector.shape_cast %230 : vector<1x8x8xf32> to vector<8x8xf32>
    %232 = vector.extract_strided_slice %225 {offsets = [3, 0, 0], sizes = [1, 8, 8], strides = [1, 1, 1]} : vector<4x8x8xf32> to vector<1x8x8xf32>
    %233 = vector.shape_cast %232 : vector<1x8x8xf32> to vector<8x8xf32>
    %234 = tpu.concatenate %227, %229, %231, %233 in 1 : vector<8x8xf32>, vector<8x8xf32>, vector<8x8xf32>, vector<8x8xf32> -> vector<8x32xf32>
    %c1_i32 = arith.constant 1 : i32
    %235 = arith.addi %0, %c1_i32 : i32
    %236 = arith.index_cast %235 : i32 to index
    %237 = memref.load %arg1[%236] : memref<2xi32, #tpu.memory_space<smem>>
    %238 = vector.extract_strided_slice %164 {offsets = [8, 0], sizes = [8, 32], strides = [1, 1]} : vector<16x32xf32> to vector<8x32xf32>
    %239 = vector.extract_strided_slice %166 {offsets = [8, 0], sizes = [8, 32], strides = [1, 1]} : vector<16x64xf32> to vector<8x32xf32>
    %240 = vector.extract_strided_slice %166 {offsets = [8, 32], sizes = [8, 32], strides = [1, 1]} : vector<16x64xf32> to vector<8x32xf32>
    %241 = vector.broadcast %237 : i32 to vector<8x8xi32>
    %242 = arith.cmpi slt, %167, %241 : vector<8x8xi32>
    %243 = vector.extract_strided_slice %238 {offsets = [0, 0], sizes = [8, 8], strides = [1, 1]} : vector<8x32xf32> to vector<8x8xf32>
    %244 = vector.extract_strided_slice %238 {offsets = [0, 8], sizes = [8, 8], strides = [1, 1]} : vector<8x32xf32> to vector<8x8xf32>
    %245 = vector.extract_strided_slice %238 {offsets = [0, 16], sizes = [8, 8], strides = [1, 1]} : vector<8x32xf32> to vector<8x8xf32>
    %246 = vector.extract_strided_slice %238 {offsets = [0, 24], sizes = [8, 8], strides = [1, 1]} : vector<8x32xf32> to vector<8x8xf32>
    %247 = vector.shape_cast %243 : vector<8x8xf32> to vector<1x8x8xf32>
    %248 = vector.shape_cast %244 : vector<8x8xf32> to vector<1x8x8xf32>
    %249 = vector.shape_cast %245 : vector<8x8xf32> to vector<1x8x8xf32>
    %250 = vector.shape_cast %246 : vector<8x8xf32> to vector<1x8x8xf32>
    %251 = tpu.concatenate %247, %248, %249, %250 in 0 : vector<1x8x8xf32>, vector<1x8x8xf32>, vector<1x8x8xf32>, vector<1x8x8xf32> -> vector<4x8x8xf32>
    %252 = vector.extract_strided_slice %239 {offsets = [0, 0], sizes = [8, 8], strides = [1, 1]} : vector<8x32xf32> to vector<8x8xf32>
    %253 = vector.extract_strided_slice %239 {offsets = [0, 8], sizes = [8, 8], strides = [1, 1]} : vector<8x32xf32> to vector<8x8xf32>
    %254 = vector.extract_strided_slice %239 {offsets = [0, 16], sizes = [8, 8], strides = [1, 1]} : vector<8x32xf32> to vector<8x8xf32>
    %255 = vector.extract_strided_slice %239 {offsets = [0, 24], sizes = [8, 8], strides = [1, 1]} : vector<8x32xf32> to vector<8x8xf32>
    %256 = vector.shape_cast %252 : vector<8x8xf32> to vector<1x8x8xf32>
    %257 = vector.shape_cast %253 : vector<8x8xf32> to vector<1x8x8xf32>
    %258 = vector.shape_cast %254 : vector<8x8xf32> to vector<1x8x8xf32>
    %259 = vector.shape_cast %255 : vector<8x8xf32> to vector<1x8x8xf32>
    %260 = tpu.concatenate %256, %257, %258, %259 in 0 : vector<1x8x8xf32>, vector<1x8x8xf32>, vector<1x8x8xf32>, vector<1x8x8xf32> -> vector<4x8x8xf32>
    %261 = vector.extract_strided_slice %240 {offsets = [0, 0], sizes = [8, 8], strides = [1, 1]} : vector<8x32xf32> to vector<8x8xf32>
    %262 = vector.extract_strided_slice %240 {offsets = [0, 8], sizes = [8, 8], strides = [1, 1]} : vector<8x32xf32> to vector<8x8xf32>
    %263 = vector.extract_strided_slice %240 {offsets = [0, 16], sizes = [8, 8], strides = [1, 1]} : vector<8x32xf32> to vector<8x8xf32>
    %264 = vector.extract_strided_slice %240 {offsets = [0, 24], sizes = [8, 8], strides = [1, 1]} : vector<8x32xf32> to vector<8x8xf32>
    %265 = vector.shape_cast %261 : vector<8x8xf32> to vector<1x8x8xf32>
    %266 = vector.shape_cast %262 : vector<8x8xf32> to vector<1x8x8xf32>
    %267 = vector.shape_cast %263 : vector<8x8xf32> to vector<1x8x8xf32>
    %268 = vector.shape_cast %264 : vector<8x8xf32> to vector<1x8x8xf32>
    %269 = tpu.concatenate %265, %266, %267, %268 in 0 : vector<1x8x8xf32>, vector<1x8x8xf32>, vector<1x8x8xf32>, vector<1x8x8xf32> -> vector<4x8x8xf32>
    %270 = arith.truncf %251 : vector<4x8x8xf32> to vector<4x8x8xbf16>
    %271 = arith.truncf %260 : vector<4x8x8xf32> to vector<4x8x8xbf16>
    %272 = arith.truncf %269 : vector<4x8x8xf32> to vector<4x8x8xbf16>
    "tpu.trace_start"() <{level = 10 : i32, message = "nqd,nkd->nqk"}> : () -> ()
    %cst_41 = arith.constant dense<0.000000e+00> : vector<4x8x8xf32>
    %273 = tpu.matmul %270, %271, %cst_41 {dimension_numbers = #tpu.dot_dimension_numbers<[2], [2], [1], [1], [0, 0, 0, 1, 1, 1], [0], [0]>} : vector<4x8x8xbf16>, vector<4x8x8xbf16>, vector<4x8x8xf32> -> vector<4x8x8xf32>
    "tpu.trace_stop"() : () -> ()
    %cst_42 = arith.constant 0.353553385 : f32
    %274 = vector.broadcast %cst_42 : f32 to vector<4x8x8xf32>
    %275 = arith.mulf %273, %274 : vector<4x8x8xf32>
    %276 = vector.shape_cast %242 : vector<8x8xi1> to vector<1x8x8xi1>
    %cst_43 = arith.constant -1.000000e+06 : f32
    %277 = vector.shape_cast %276 : vector<1x8x8xi1> to vector<1x8x8xi1>
    %278 = vector.broadcast %277 : vector<1x8x8xi1> to vector<4x8x8xi1>
    %279 = vector.broadcast %cst_43 : f32 to vector<4x8x8xf32>
    %280 = arith.select %278, %275, %279 : vector<4x8x8xi1>, vector<4x8x8xf32>
    %cst_44 = arith.constant dense<0xFF800000> : vector<4x8xf32>
    %281 = vector.multi_reduction <maximumf>, %280, %cst_44 [2] : vector<4x8x8xf32> to vector<4x8xf32>
    %282 = vector.shape_cast %281 : vector<4x8xf32> to vector<4x8x1xf32>
    %283 = vector.broadcast %282 : vector<4x8x1xf32> to vector<4x8x8xf32>
    %284 = arith.subf %280, %283 : vector<4x8x8xf32>
    %285 = math.exp %284 : vector<4x8x8xf32>
    %cst_45 = arith.constant dense<0.000000e+00> : vector<4x8xf32>
    %286 = vector.multi_reduction <add>, %285, %cst_45 [2] : vector<4x8x8xf32> to vector<4x8xf32>
    %287 = vector.shape_cast %286 : vector<4x8xf32> to vector<4x8x1xf32>
    %288 = tpu.reciprocal %287 {approx = true} : vector<4x8x1xf32> -> vector<4x8x1xf32>
    %289 = vector.broadcast %288 : vector<4x8x1xf32> to vector<4x8x8xf32>
    %290 = arith.mulf %285, %289 : vector<4x8x8xf32>
    %291 = arith.truncf %290 : vector<4x8x8xf32> to vector<4x8x8xbf16>
    "tpu.trace_start"() <{level = 10 : i32, message = "nqk,nkd->nqd"}> : () -> ()
    %cst_46 = arith.constant dense<0.000000e+00> : vector<4x8x8xf32>
    %292 = tpu.matmul %291, %272, %cst_46 {dimension_numbers = #tpu.dot_dimension_numbers<[2], [1], [1], [2], [0, 0, 0, 1, 1, 2], [0], [0]>} : vector<4x8x8xbf16>, vector<4x8x8xbf16>, vector<4x8x8xf32> -> vector<4x8x8xf32>
    "tpu.trace_stop"() : () -> ()
    %293 = vector.extract_strided_slice %292 {offsets = [0, 0, 0], sizes = [1, 8, 8], strides = [1, 1, 1]} : vector<4x8x8xf32> to vector<1x8x8xf32>
    %294 = vector.shape_cast %293 : vector<1x8x8xf32> to vector<8x8xf32>
    %295 = vector.extract_strided_slice %292 {offsets = [1, 0, 0], sizes = [1, 8, 8], strides = [1, 1, 1]} : vector<4x8x8xf32> to vector<1x8x8xf32>
    %296 = vector.shape_cast %295 : vector<1x8x8xf32> to vector<8x8xf32>
    %297 = vector.extract_strided_slice %292 {offsets = [2, 0, 0], sizes = [1, 8, 8], strides = [1, 1, 1]} : vector<4x8x8xf32> to vector<1x8x8xf32>
    %298 = vector.shape_cast %297 : vector<1x8x8xf32> to vector<8x8xf32>
    %299 = vector.extract_strided_slice %292 {offsets = [3, 0, 0], sizes = [1, 8, 8], strides = [1, 1, 1]} : vector<4x8x8xf32> to vector<1x8x8xf32>
    %300 = vector.shape_cast %299 : vector<1x8x8xf32> to vector<8x8xf32>
    %301 = tpu.concatenate %294, %296, %298, %300 in 1 : vector<8x8xf32>, vector<8x8xf32>, vector<8x8xf32>, vector<8x8xf32> -> vector<8x32xf32>
    %302 = tpu.concatenate %234, %301 in 0 : vector<8x32xf32>, vector<8x32xf32> -> vector<16x32xf32>
    %303 = arith.truncf %302 : vector<16x32xf32> to vector<16x32xbf16>
    %c0_47 = arith.constant 0 : index
    %c0_48 = arith.constant 0 : index
    %304 = vector.load %arg8[%c0_47, %c0_48] : memref<32x32xbf16, #tpu.memory_space<vmem>>, vector<32x32xbf16>
    %cst_49 = arith.constant dense<0.000000e+00> : vector<16x32xf32>
    %305 = tpu.matmul %303, %304, %cst_49 {dimension_numbers = #tpu.dot_dimension_numbers<[1], [0], [0], [1], [0, 0, 1, 1], [], []>} : vector<16x32xbf16>, vector<32x32xbf16>, vector<16x32xf32> -> vector<16x32xf32>
    %306 = arith.addf %161, %305 : vector<16x32xf32>
    %c0_50 = arith.constant 0 : index
    %c0_51 = arith.constant 0 : index
    %307 = vector.load %arg11[%c0_50, %c0_51] : memref<1x32xf32, #tpu.memory_space<vmem>>, vector<1x32xf32>
    %c0_52 = arith.constant 0 : index
    %c0_53 = arith.constant 0 : index
    %308 = vector.load %arg12[%c0_52, %c0_53] : memref<1x32xf32, #tpu.memory_space<vmem>>, vector<1x32xf32>
    %cst_54 = arith.constant dense<0.000000e+00> : vector<16xf32>
    %309 = vector.multi_reduction <add>, %306, %cst_54 [1] : vector<16x32xf32> to vector<16xf32>
    %310 = vector.shape_cast %309 : vector<16xf32> to vector<16x1xf32>
    %cst_55 = arith.constant 3.200000e+01 : f32
    %311 = vector.broadcast %cst_55 : f32 to vector<16x1xf32>
    %312 = arith.divf %310, %311 : vector<16x1xf32>
    %313 = vector.broadcast %312 : vector<16x1xf32> to vector<16x32xf32>
    %314 = arith.subf %306, %313 : vector<16x32xf32>
    %315 = arith.mulf %314, %314 : vector<16x32xf32>
    %cst_56 = arith.constant dense<0.000000e+00> : vector<16xf32>
    %316 = vector.multi_reduction <add>, %315, %cst_56 [1] : vector<16x32xf32> to vector<16xf32>
    %317 = vector.shape_cast %316 : vector<16xf32> to vector<16x1xf32>
    %cst_57 = arith.constant 3.200000e+01 : f32
    %318 = vector.broadcast %cst_57 : f32 to vector<16x1xf32>
    %319 = arith.divf %317, %318 : vector<16x1xf32>
    %320 = vector.broadcast %312 : vector<16x1xf32> to vector<16x32xf32>
    %321 = arith.subf %306, %320 : vector<16x32xf32>
    %cst_58 = arith.constant 9.99999974E-6 : f32
    %322 = vector.broadcast %cst_58 : f32 to vector<16x1xf32>
    %323 = arith.addf %319, %322 : vector<16x1xf32>
    %324 = math.rsqrt %323 : vector<16x1xf32>
    %325 = vector.broadcast %324 : vector<16x1xf32> to vector<16x32xf32>
    %326 = arith.mulf %321, %325 : vector<16x32xf32>
    %327 = vector.broadcast %307 : vector<1x32xf32> to vector<16x32xf32>
    %328 = arith.mulf %326, %327 : vector<16x32xf32>
    %329 = vector.broadcast %308 : vector<1x32xf32> to vector<16x32xf32>
    %330 = arith.addf %328, %329 : vector<16x32xf32>
    %331 = arith.truncf %330 : vector<16x32xf32> to vector<16x32xbf16>
    %c0_59 = arith.constant 0 : index
    %c0_60 = arith.constant 0 : index
    %332 = vector.load %arg15[%c0_59, %c0_60] : memref<32x64xbf16, #tpu.memory_space<vmem>>, vector<32x64xbf16>
    %cst_61 = arith.constant dense<0.000000e+00> : vector<16x64xf32>
    %333 = tpu.matmul %331, %332, %cst_61 {dimension_numbers = #tpu.dot_dimension_numbers<[1], [0], [0], [1], [0, 0, 1, 1], [], []>} : vector<16x32xbf16>, vector<32x64xbf16>, vector<16x64xf32> -> vector<16x64xf32>
    %c0_62 = arith.constant 0 : index
    %c0_63 = arith.constant 0 : index
    %334 = vector.load %arg16[%c0_62, %c0_63] : memref<1x64xf32, #tpu.memory_space<vmem>>, vector<1x64xf32>
    %335 = vector.broadcast %334 : vector<1x64xf32> to vector<16x64xf32>
    %336 = arith.addf %333, %335 : vector<16x64xf32>
    %cst_64 = arith.constant 0.000000e+00 : f32
    %337 = vector.broadcast %cst_64 : f32 to vector<16x64xf32>
    %338 = arith.maximumf %336, %337 : vector<16x64xf32>
    %339 = arith.truncf %338 : vector<16x64xf32> to vector<16x64xbf16>
    %c0_65 = arith.constant 0 : index
    %c0_66 = arith.constant 0 : index
    %340 = vector.load %arg17[%c0_65, %c0_66] : memref<64x32xbf16, #tpu.memory_space<vmem>>, vector<64x32xbf16>
    %cst_67 = arith.constant dense<0.000000e+00> : vector<16x32xf32>
    %341 = tpu.matmul %339, %340, %cst_67 {dimension_numbers = #tpu.dot_dimension_numbers<[1], [0], [0], [1], [0, 0, 1, 1], [], []>} : vector<16x64xbf16>, vector<64x32xbf16>, vector<16x32xf32> -> vector<16x32xf32>
    %c0_68 = arith.constant 0 : index
    %c0_69 = arith.constant 0 : index
    %342 = vector.load %arg18[%c0_68, %c0_69] : memref<1x32xf32, #tpu.memory_space<vmem>>, vector<1x32xf32>
    %343 = vector.broadcast %342 : vector<1x32xf32> to vector<16x32xf32>
    %344 = arith.addf %341, %343 : vector<16x32xf32>
    %345 = arith.addf %330, %344 : vector<16x32xf32>
    %c0_70 = arith.constant 0 : index
    %c0_71 = arith.constant 0 : index
    %346 = vector.load %arg13[%c0_70, %c0_71] : memref<1x32xf32, #tpu.memory_space<vmem>>, vector<1x32xf32>
    %c0_72 = arith.constant 0 : index
    %c0_73 = arith.constant 0 : index
    %347 = vector.load %arg14[%c0_72, %c0_73] : memref<1x32xf32, #tpu.memory_space<vmem>>, vector<1x32xf32>
    %cst_74 = arith.constant dense<0.000000e+00> : vector<16xf32>
    %348 = vector.multi_reduction <add>, %345, %cst_74 [1] : vector<16x32xf32> to vector<16xf32>
    %349 = vector.shape_cast %348 : vector<16xf32> to vector<16x1xf32>
    %cst_75 = arith.constant 3.200000e+01 : f32
    %350 = vector.broadcast %cst_75 : f32 to vector<16x1xf32>
    %351 = arith.divf %349, %350 : vector<16x1xf32>
    %352 = vector.broadcast %351 : vector<16x1xf32> to vector<16x32xf32>
    %353 = arith.subf %345, %352 : vector<16x32xf32>
    %354 = arith.mulf %353, %353 : vector<16x32xf32>
    %cst_76 = arith.constant dense<0.000000e+00> : vector<16xf32>
    %355 = vector.multi_reduction <add>, %354, %cst_76 [1] : vector<16x32xf32> to vector<16xf32>
    %356 = vector.shape_cast %355 : vector<16xf32> to vector<16x1xf32>
    %cst_77 = arith.constant 3.200000e+01 : f32
    %357 = vector.broadcast %cst_77 : f32 to vector<16x1xf32>
    %358 = arith.divf %356, %357 : vector<16x1xf32>
    %359 = vector.broadcast %351 : vector<16x1xf32> to vector<16x32xf32>
    %360 = arith.subf %345, %359 : vector<16x32xf32>
    %cst_78 = arith.constant 9.99999974E-6 : f32
    %361 = vector.broadcast %cst_78 : f32 to vector<16x1xf32>
    %362 = arith.addf %358, %361 : vector<16x1xf32>
    %363 = math.rsqrt %362 : vector<16x1xf32>
    %364 = vector.broadcast %363 : vector<16x1xf32> to vector<16x32xf32>
    %365 = arith.mulf %360, %364 : vector<16x32xf32>
    %366 = vector.broadcast %346 : vector<1x32xf32> to vector<16x32xf32>
    %367 = arith.mulf %365, %366 : vector<16x32xf32>
    %368 = vector.broadcast %347 : vector<1x32xf32> to vector<16x32xf32>
    %369 = arith.addf %367, %368 : vector<16x32xf32>
    %c0_79 = arith.constant 0 : index
    %c0_80 = arith.constant 0 : index
    %370 = vector.load %arg19[%c0_79, %c0_80] : memref<16x32xf32, #tpu.memory_space<vmem>>, vector<16x32xf32>
    tpu.vector_store %arg19[%c0_79, %c0_80], %369 {strides = array<i32>} : memref<16x32xf32, #tpu.memory_space<vmem>>, vector<16x32xf32>,
    return
  }
  func.func @transform_0(%arg0: i32, %arg1: memref<2xi32, #tpu.memory_space<smem>>) -> (i32, i32) {
    %c0_i32 = arith.constant 0 : i32
    %c0_i32_0 = arith.constant 0 : i32
    return %arg0, %c0_i32 : i32, i32
  }
  func.func @transform_1(%arg0: i32, %arg1: memref<2xi32, #tpu.memory_space<smem>>) -> (i32, i32) {
    %c0_i32 = arith.constant 0 : i32
    %c0_i32_0 = arith.constant 0 : i32
    return %arg0, %c0_i32 : i32, i32
  }
  func.func @transform_2(%arg0: i32, %arg1: memref<2xi32, #tpu.memory_space<smem>>) -> (i32, i32) {
    %c0_i32 = arith.constant 0 : i32
    %c0_i32_0 = arith.constant 0 : i32
    %c0_i32_1 = arith.constant 0 : i32
    return %c0_i32, %c0_i32_0 : i32, i32
  }
  func.func @transform_3(%arg0: i32, %arg1: memref<2xi32, #tpu.memory_space<smem>>) -> (i32, i32) {
    %c0_i32 = arith.constant 0 : i32
    %c0_i32_0 = arith.constant 0 : i32
    %c0_i32_1 = arith.constant 0 : i32
    return %c0_i32, %c0_i32_0 : i32, i32
  }
  func.func @transform_4(%arg0: i32, %arg1: memref<2xi32, #tpu.memory_space<smem>>) -> (i32, i32) {
    %c0_i32 = arith.constant 0 : i32
    %c0_i32_0 = arith.constant 0 : i32
    %c0_i32_1 = arith.constant 0 : i32
    return %c0_i32, %c0_i32_0 : i32, i32
  }
  func.func @transform_5(%arg0: i32, %arg1: memref<2xi32, #tpu.memory_space<smem>>) -> (i32, i32) {
    %c0_i32 = arith.constant 0 : i32
    %c0_i32_0 = arith.constant 0 : i32
    %c0_i32_1 = arith.constant 0 : i32
    return %c0_i32, %c0_i32_0 : i32, i32
  }
  func.func @transform_6(%arg0: i32, %arg1: memref<2xi32, #tpu.memory_space<smem>>) -> (i32, i32) {
    %c0_i32 = arith.constant 0 : i32
    %c0_i32_0 = arith.constant 0 : i32
    %c0_i32_1 = arith.constant 0 : i32
    return %c0_i32, %c0_i32_0 : i32, i32
  }
  func.func @transform_7(%arg0: i32, %arg1: memref<2xi32, #tpu.memory_space<smem>>) -> (i32, i32) {
    %c0_i32 = arith.constant 0 : i32
    %c0_i32_0 = arith.constant 0 : i32
    %c0_i32_1 = arith.constant 0 : i32
    return %c0_i32, %c0_i32_0 : i32, i32
  }
  func.func @transform_8(%arg0: i32, %arg1: memref<2xi32, #tpu.memory_space<smem>>) -> (i32, i32) {
    %c0_i32 = arith.constant 0 : i32
    %c0_i32_0 = arith.constant 0 : i32
    %c0_i32_1 = arith.constant 0 : i32
    return %c0_i32, %c0_i32_0 : i32, i32
  }
  func.func @transform_9(%arg0: i32, %arg1: memref<2xi32, #tpu.memory_space<smem>>) -> (i32, i32) {
    %c0_i32 = arith.constant 0 : i32
    %c0_i32_0 = arith.constant 0 : i32
    %c0_i32_1 = arith.constant 0 : i32
    return %c0_i32, %c0_i32_0 : i32, i32
  }
  func.func @transform_10(%arg0: i32, %arg1: memref<2xi32, #tpu.memory_space<smem>>) -> (i32, i32) {
    %c0_i32 = arith.constant 0 : i32
    %c0_i32_0 = arith.constant 0 : i32
    %c0_i32_1 = arith.constant 0 : i32
    return %c0_i32, %c0_i32_0 : i32, i32
  }
  func.func @transform_11(%arg0: i32, %arg1: memref<2xi32, #tpu.memory_space<smem>>) -> (i32, i32) {
    %c0_i32 = arith.constant 0 : i32
    %c0_i32_0 = arith.constant 0 : i32
    %c0_i32_1 = arith.constant 0 : i32
    return %c0_i32, %c0_i32_0 : i32, i32
  }
  func.func @transform_12(%arg0: i32, %arg1: memref<2xi32, #tpu.memory_space<smem>>) -> (i32, i32) {
    %c0_i32 = arith.constant 0 : i32
    %c0_i32_0 = arith.constant 0 : i32
    %c0_i32_1 = arith.constant 0 : i32
    return %c0_i32, %c0_i32_0 : i32, i32
  }
  func.func @transform_13(%arg0: i32, %arg1: memref<2xi32, #tpu.memory_space<smem>>) -> (i32, i32) {
    %c0_i32 = arith.constant 0 : i32
    %c0_i32_0 = arith.constant 0 : i32
    %c0_i32_1 = arith.constant 0 : i32
    return %c0_i32, %c0_i32_0 : i32, i32
  }
  func.func @transform_14(%arg0: i32, %arg1: memref<2xi32, #tpu.memory_space<smem>>) -> (i32, i32) {
    %c0_i32 = arith.constant 0 : i32
    %c0_i32_0 = arith.constant 0 : i32
    %c0_i32_1 = arith.constant 0 : i32
    return %c0_i32, %c0_i32_0 : i32, i32
  }
  func.func @transform_15(%arg0: i32, %arg1: memref<2xi32, #tpu.memory_space<smem>>) -> (i32, i32) {
    %c0_i32 = arith.constant 0 : i32
    %c0_i32_0 = arith.constant 0 : i32
    %c0_i32_1 = arith.constant 0 : i32
    return %c0_i32, %c0_i32_0 : i32, i32
  }
  func.func @transform_16(%arg0: i32, %arg1: memref<2xi32, #tpu.memory_space<smem>>) -> (i32, i32) {
    %c0_i32 = arith.constant 0 : i32
    %c0_i32_0 = arith.constant 0 : i32
    %c0_i32_1 = arith.constant 0 : i32
    return %c0_i32, %c0_i32_0 : i32, i32
  }
  func.func @transform_17(%arg0: i32, %arg1: memref<2xi32, #tpu.memory_space<smem>>) -> (i32, i32) {
    %c0_i32 = arith.constant 0 : i32
    %c0_i32_0 = arith.constant 0 : i32
    return %arg0, %c0_i32 : i32, i32
  }
}

</mosaic_0001>

<llo_original>
// kernel: tpu_custom_call.1
$region0: #{tpu_custom_call.1}
  #allocation0 [shape = 'u32[]', space=smem, size = 0x4, offset = 0x4, fixed_abs, tag = 'smem constant byte address 0x4 - core index']
  #allocation1 [shape = 'u32[144,128]{1,0:T(1,128)}', space=vmem, size = 0x12000, scoped, tag = 'internal scratch']
  #allocation2 [shape = 's32[1]{0}', space=sflag, size = 0x4, scoped, tag = 'scoped memory for tpu_custom_call.1']
  #allocation3 [shape = 'u8[512]{0}', space=smem, size = 0x200, scoped, tag = 'prefetched SMEM operand 0']
  %s0 = inlined_call_operand.hbm [shape: s32[2], index: 0, kind: input, shape index: {}]
  %s1 = inlined_call_operand.hbm [shape: bf16[16,32], index: 1, kind: input, shape index: {}]
  %s2 = inlined_call_operand.hbm [shape: bf16[16,32], index: 2, kind: input, shape index: {}]
  %s3 = inlined_call_operand.vmem [shape: bf16[32,96], index: 3, kind: input, shape index: {}]
  %s4 = inlined_call_operand.vmem [shape: bf16[32,32], index: 4, kind: input, shape index: {}]
  %s5 = inlined_call_operand.vmem [shape: bf16[32,32], index: 5, kind: input, shape index: {}]
  %s6 = inlined_call_operand.hbm [shape: bf16[32,64], index: 6, kind: input, shape index: {}]
  %s7 = inlined_call_operand.hbm [shape: bf16[32,32], index: 7, kind: input, shape index: {}]
  %s8 = inlined_call_operand.vmem [shape: f32[1,32], index: 8, kind: input, shape index: {}]
  %s9 = inlined_call_operand.vmem [shape: f32[1,32], index: 9, kind: input, shape index: {}]
  %s10 = inlined_call_operand.vmem [shape: f32[1,32], index: 10, kind: input, shape index: {}]
  %s11 = inlined_call_operand.vmem [shape: f32[1,32], index: 11, kind: input, shape index: {}]
  %s12 = inlined_call_operand.vmem [shape: f32[1,32], index: 12, kind: input, shape index: {}]
  %s13 = inlined_call_operand.vmem [shape: f32[1,32], index: 13, kind: input, shape index: {}]
  %s14 = inlined_call_operand.vmem [shape: bf16[32,64], index: 14, kind: input, shape index: {}]
  %s15 = inlined_call_operand.vmem [shape: f32[1,64], index: 15, kind: input, shape index: {}]
  %s16 = inlined_call_operand.vmem [shape: bf16[64,32], index: 16, kind: input, shape index: {}]
  %s17 = inlined_call_operand.vmem [shape: f32[1,32], index: 17, kind: input, shape index: {}]
  %s18 = inlined_call_operand.hbm [shape: f32[16,32], index: 18, kind: output, shape index: {}]
  %s19 = sld [smem:[#allocation0]]
  $region94: #{tpu_custom_call.1} parent=0
    _
  %s21 = ssub.s32 1, %s19
  %s22 = scalar_select 0, %s21, %s19
  %24 = dma.hbm_to_smem %s0, 16, [#allocation3], [#allocation2]
  %25 = dma.done [#allocation2], 16
  %26 = sfence
  $region1: #{tpu_custom_call.1} parent=0
    #allocation4 [shape = 'u8[4096]{0}', space=vmem, size = 0x1000, scoped, tag = 'input window, operand 1, single buffered']
    #allocation5 [shape = 's32[1]{0}', space=sflag, size = 0x4, scoped, tag = 'scoped memory for tpu_custom_call.1']
    #allocation6 [shape = 's32[1]{0}', space=sflag, size = 0x4, scoped, tag = 'scoped memory for tpu_custom_call.1']
    #allocation7 [shape = 'u8[4096]{0}', space=vmem, size = 0x1000, scoped, tag = 'input window, operand 2, single buffered']
    #allocation8 [shape = 's32[1]{0}', space=sflag, size = 0x4, scoped, tag = 'scoped memory for tpu_custom_call.1']
    #allocation9 [shape = 'u8[8192]{0}', space=vmem, size = 0x2000, scoped, tag = 'input window, operand 6, single buffered']
    #allocation10 [shape = 'u8[8192]{0}', space=vmem, size = 0x2000, scoped, tag = 'input window, operand 7, single buffered']
    #allocation11 [shape = 's32[1]{0}', space=sflag, size = 0x4, scoped, tag = 'scoped memory for tpu_custom_call.1']
    #allocation12 [shape = 'u8[8192]{0}', space=vmem, size = 0x2000, scoped, tag = 'output window, operand 0, single buffered']
    %27 = vsyncpa [#allocation5], 0
    %28 = vsyncpa [#allocation8], 0
    %29 = vsyncpa [#allocation11], 0
    %30 = vsyncpa [#allocation6], 0
    // Predicated region
    $region2: #{tpu_custom_call.1} parent=1 // pred_check
      _
    $region3: #{tpu_custom_call.1} parent=1 // pred_check_branch
      %32 = sbr.rel (0) target = $region5
    $region4: #{tpu_custom_call.1} parent=1 // pred_region
      %s34 = ssub.s32 128, 128
      %35 = vsyncadd [#allocation5], %s34
      %s36 = sshll.u32 [#allocation4], 4
      %s37 = int_to_ptr.vmem [resolvable:$true] %s36
      %42 = dma.hbm_to_vmem [thread:$0]  %s1, 128, %s37, [#allocation5], 64, 64, 4
    $region5: #{tpu_custom_call.1} parent=1 // pred_fallthru
      _
    // Predicated region
    $region6: #{tpu_custom_call.1} parent=1 // pred_check
      _
    $region7: #{tpu_custom_call.1} parent=1 // pred_check_branch
      %44 = sbr.rel (0) target = $region9
    $region8: #{tpu_custom_call.1} parent=1 // pred_region
      %s46 = ssub.s32 128, 128
      %47 = vsyncadd [#allocation8], %s46
      %s48 = sshll.u32 [#allocation7], 4
      %s49 = int_to_ptr.vmem [resolvable:$true] %s48
      %54 = dma.hbm_to_vmem [thread:$0]  %s2, 128, %s49, [#allocation8], 64, 64, 4
    $region9: #{tpu_custom_call.1} parent=1 // pred_fallthru
      _
    // Predicated region
    $region10: #{tpu_custom_call.1} parent=1 // pred_check
      _
    $region11: #{tpu_custom_call.1} parent=1 // pred_check_branch
      %56 = sbr.rel (0) target = $region13
    $region12: #{tpu_custom_call.1} parent=1 // pred_region
      _
    $region13: #{tpu_custom_call.1} parent=1 // pred_fallthru
      _
    // Predicated region
    $region14: #{tpu_custom_call.1} parent=1 // pred_check
      _
    $region15: #{tpu_custom_call.1} parent=1 // pred_check_branch
      %58 = sbr.rel (0) target = $region17
    $region16: #{tpu_custom_call.1} parent=1 // pred_region
      _
    $region17: #{tpu_custom_call.1} parent=1 // pred_fallthru
      _
    // Predicated region
    $region18: #{tpu_custom_call.1} parent=1 // pred_check
      _
    $region19: #{tpu_custom_call.1} parent=1 // pred_check_branch
      %60 = sbr.rel (0) target = $region21
    $region20: #{tpu_custom_call.1} parent=1 // pred_region
      _
    $region21: #{tpu_custom_call.1} parent=1 // pred_fallthru
      _
    // Predicated region
    $region22: #{tpu_custom_call.1} parent=1 // pred_check
      _
    $region23: #{tpu_custom_call.1} parent=1 // pred_check_branch
      %62 = sbr.rel (0) target = $region25
    $region24: #{tpu_custom_call.1} parent=1 // pred_region
      %s64 = ssub.s32 256, 256
      %65 = vsyncadd [#allocation8], %s64
      %s66 = sshll.u32 [#allocation9], 4
      %s67 = int_to_ptr.vmem [resolvable:$true] %s66
      %72 = dma.hbm_to_vmem [thread:$0]  %s6, 256, %s67, [#allocation8], 64, 64, 4
    $region25: #{tpu_custom_call.1} parent=1 // pred_fallthru
      _
    // Predicated region
    $region26: #{tpu_custom_call.1} parent=1 // pred_check
      _
    $region27: #{tpu_custom_call.1} parent=1 // pred_check_branch
      %74 = sbr.rel (0) target = $region29
    $region28: #{tpu_custom_call.1} parent=1 // pred_region
      %s76 = ssub.s32 256, 256
      %77 = vsyncadd [#allocation11], %s76
      %s78 = sshll.u32 [#allocation10], 4
      %s79 = int_to_ptr.vmem [resolvable:$true] %s78
      %84 = dma.hbm_to_vmem [thread:$0]  %s7, 256, %s79, [#allocation11], 64, 64, 4
    $region29: #{tpu_custom_call.1} parent=1 // pred_fallthru
      _
    // Predicated region
    $region30: #{tpu_custom_call.1} parent=1 // pred_check
      _
    $region31: #{tpu_custom_call.1} parent=1 // pred_check_branch
      %86 = sbr.rel (0) target = $region33
    $region32: #{tpu_custom_call.1} parent=1 // pred_region
      _
    $region33: #{tpu_custom_call.1} parent=1 // pred_fallthru
      _
    // Predicated region
    $region34: #{tpu_custom_call.1} parent=1 // pred_check
      _
    $region35: #{tpu_custom_call.1} parent=1 // pred_check_branch
      %88 = sbr.rel (0) target = $region37
    $region36: #{tpu_custom_call.1} parent=1 // pred_region
      _
    $region37: #{tpu_custom_call.1} parent=1 // pred_fallthru
      _
    // Predicated region
    $region38: #{tpu_custom_call.1} parent=1 // pred_check
      _
    $region39: #{tpu_custom_call.1} parent=1 // pred_check_branch
      %90 = sbr.rel (0) target = $region41
    $region40: #{tpu_custom_call.1} parent=1 // pred_region
      _
    $region41: #{tpu_custom_call.1} parent=1 // pred_fallthru
      _
    // Predicated region
    $region42: #{tpu_custom_call.1} parent=1 // pred_check
      _
    $region43: #{tpu_custom_call.1} parent=1 // pred_check_branch
      %92 = sbr.rel (0) target = $region45
    $region44: #{tpu_custom_call.1} parent=1 // pred_region
      _
    $region45: #{tpu_custom_call.1} parent=1 // pred_fallthru
      _
    // Predicated region
    $region46: #{tpu_custom_call.1} parent=1 // pred_check
      _
    $region47: #{tpu_custom_call.1} parent=1 // pred_check_branch
      %94 = sbr.rel (0) target = $region49
    $region48: #{tpu_custom_call.1} parent=1 // pred_region
      _
    $region49: #{tpu_custom_call.1} parent=1 // pred_fallthru
      _
    // Predicated region
    $region50: #{tpu_custom_call.1} parent=1 // pred_check
      _
    $region51: #{tpu_custom_call.1} parent=1 // pred_check_branch
      %96 = sbr.rel (0) target = $region53
    $region52: #{tpu_custom_call.1} parent=1 // pred_region
      _
    $region53: #{tpu_custom_call.1} parent=1 // pred_fallthru
      _
    // Predicated region
    $region54: #{tpu_custom_call.1} parent=1 // pred_check
      _
    $region55: #{tpu_custom_call.1} parent=1 // pred_check_branch
      %98 = sbr.rel (0) target = $region57
    $region56: #{tpu_custom_call.1} parent=1 // pred_region
      _
    $region57: #{tpu_custom_call.1} parent=1 // pred_fallthru
      _
    // Predicated region
    $region58: #{tpu_custom_call.1} parent=1 // pred_check
      _
    $region59: #{tpu_custom_call.1} parent=1 // pred_check_branch
      %100 = sbr.rel (0) target = $region61
    $region60: #{tpu_custom_call.1} parent=1 // pred_region
      _
    $region61: #{tpu_custom_call.1} parent=1 // pred_fallthru
      _
    // Predicated region
    $region62: #{tpu_custom_call.1} parent=1 // pred_check
      _
    $region63: #{tpu_custom_call.1} parent=1 // pred_check_branch
      %102 = sbr.rel (0) target = $region65
    $region64: #{tpu_custom_call.1} parent=1 // pred_region
      _
    $region65: #{tpu_custom_call.1} parent=1 // pred_fallthru
      _
    // Predicated region
    $region66: #{tpu_custom_call.1} parent=1 // pred_check
      _
    $region67: #{tpu_custom_call.1} parent=1 // pred_check_branch
      %104 = sbr.rel (0) target = $region69
    $region68: #{tpu_custom_call.1} parent=1 // pred_region
      _
    $region69: #{tpu_custom_call.1} parent=1 // pred_fallthru
      _
    // Predicated region
    $region70: #{tpu_custom_call.1} parent=1 // pred_check
      _
    $region71: #{tpu_custom_call.1} parent=1 // pred_check_branch
      %106 = sbr.rel (0) target = $region73
    $region72: #{tpu_custom_call.1} parent=1 // pred_region
      %107 = dma.done [#allocation5], 128
    $region73: #{tpu_custom_call.1} parent=1 // pred_fallthru
      _
    // Predicated region
    $region74: #{tpu_custom_call.1} parent=1 // pred_check
      _
    $region75: #{tpu_custom_call.1} parent=1 // pred_check_branch
      %109 = sbr.rel (0) target = $region77
    $region76: #{tpu_custom_call.1} parent=1 // pred_region
      %110 = dma.done [#allocation8], 128
    $region77: #{tpu_custom_call.1} parent=1 // pred_fallthru
      _
    // Predicated region
    $region78: #{tpu_custom_call.1} parent=1 // pred_check
      _
    $region79: #{tpu_custom_call.1} parent=1 // pred_check_branch
      %112 = sbr.rel (0) target = $region81
    $region80: #{tpu_custom_call.1} parent=1 // pred_region
      %113 = dma.done [#allocation8], 256
    $region81: #{tpu_custom_call.1} parent=1 // pred_fallthru
      _
    // Predicated region
    $region82: #{tpu_custom_call.1} parent=1 // pred_check
      _
    $region83: #{tpu_custom_call.1} parent=1 // pred_check_branch
      %115 = sbr.rel (0) target = $region85
    $region84: #{tpu_custom_call.1} parent=1 // pred_region
      %116 = dma.done [#allocation11], 256
    $region85: #{tpu_custom_call.1} parent=1 // pred_fallthru
      _
    %s118 = smul.u32 0, 2
    %v119 = vld [vmem:[#allocation4] sm:$0xf]
    %v120 = vld [vmem:[#allocation4 + $0x4] sm:$0xf]
    %v121 = vld [vmem:[#allocation7] sm:$0xf]
    %v122 = vld [vmem:[#allocation7 + $0x4] sm:$0xf]
    %v123 = vld [vmem:[%s3] sm:$0xf]
    %v124 = vld [vmem:[%s3 + $0x4] sm:$0xf]
    %v125 = vld [vmem:[%s3 + $0x8] sm:$0xf]
    %v126 = vld [vmem:[%s3 + $0xc] sm:$0xf]
    %v129 = vunpack.c.l.b16 %v119
    %v130 = vunpack.c.l.b16 %v120
    %v131 = vpack.c.b16 %v130, %v129
    %v136 = vunpack.c.l.b16 %v123
    %v137 = vunpack.c.l.b16 %v124
    %v138 = vunpack.c.l.b16 %v125
    %v139 = vunpack.c.l.b16 %v126
    %v140 = vpack.c.b16 %v137, %v136
    %v141 = vpack.c.b16 %v139, %v138
    %vm144 = vcmask 261120
    %v146 = vsel %vm144, %v131, 0
    %148 = vmatprep.subr.bf16.mxu0 0
    %149 = vmatpush1.bf16.msra.mxu0 %v140
    %150 = vmatprep.subr.bf16.mxu0 0
    %151 = vmatpush1.bf16.msra.mxu0 %v141
    %152 = vmatprep.subr.bf16.mxu0 0
    %153 = vmatpush1.bf16.msra.mxu0 0
    %154 = vmatprep.subr.bf16.mxu0 0
    %155 = vmatpush1.bf16.msra.mxu0 0
    %156 = vmatprep.subr.bf16.mxu0 0
    %157 = vmatpush1.bf16.msra.mxu0 0
    %158 = vmatprep.subr.bf16.mxu0 0
    %159 = vmatpush1.bf16.msra.mxu0 0
    %160 = vmatprep.subr.bf16.mxu0 0
    %161 = vmatpush1.bf16.msra.mxu0 0
    %162 = vmatprep.subr.bf16.mxu0 0
    %163 = vmatpush1.bf16.msra.mxu0 0
    %164 = vmatprep.subr.bf16.mxu0 0
    %165 = vmatpush1.bf16.msra.mxu0 0
    %166 = vmatprep.subr.bf16.mxu0 0
    %167 = vmatpush1.bf16.msra.mxu0 0
    %168 = vmatprep.subr.bf16.mxu0 0
    %169 = vmatpush1.bf16.msra.mxu0 0
    %170 = vmatprep.subr.bf16.mxu0 0
    %171 = vmatpush1.bf16.msra.mxu0 0
    %172 = vmatprep.subr.bf16.mxu0 0
    %173 = vmatpush1.bf16.msra.mxu0 0
    %174 = vmatprep.subr.bf16.mxu0 0
    %175 = vmatpush1.bf16.msra.mxu0 0
    %176 = vmatprep.subr.bf16.mxu0 0
    %177 = vmatpush1.bf16.msra.mxu0 0
    %178 = vmatprep.subr.bf16.mxu0 0
    %179 = vmatpush1.bf16.msra.mxu0 0
    %180 = vmatprep.mubr.bf16.mxu0 0
    %181 = vmatmul.mubr.bf16.gmra.mrb[0].mxu0 %v146
    %v182 = vpop.f32.mrb[0].mxu0
    %v183 = vadd.f32 0.0, %v182
    %v184 = vpop.f32.mrb[0].mxu0
    %v185 = vpop.f32.mrb[0].mxu0
    %v186 = vadd.f32 0.0, %v185
    %v187 = vpop.f32.mrb[0].mxu0
    %188 = vdwg.mxu0
    %v189 = vlaneseq
    %v190 = vshrl.u32 %v189, 7
    %v191 = vlaneseq
    %v192 = vand.u32 %v191, 127
    %vm193 = vcmp.le.s32.totalorder %v192, %v190
    %195 = vrot.lane.b32.xlu0 %v183, 120
    %v196 = vpop.permute.xlu0 %195
    %198 = vrot.lane.b32.xlu0 %v183, 112
    %v199 = vpop.permute.xlu0 %198
    %201 = vrot.lane.b32.xlu0 %v183, 104
    %v202 = vpop.permute.xlu0 %201
    %v204 = vpack.c.bf16 %v183, %v183
    %v205 = vpack.c.bf16 %v196, %v196
    %v206 = vpack.c.bf16 %v199, %v199
    %v207 = vpack.c.bf16 %v202, %v202
    %209 = vrot.lane.b32.xlu0 %v204, 96
    %v210 = vpop.permute.xlu0 %209
    %vm211 = vcmask 64512
    %v213 = vsel %vm211, %v204, 0
    %v216 = vsel %vm211, %v210, 0
    %218 = vmatprep.subr.bf16.mxu0 0
    %219 = vmatpush1.bf16.xpose.msra.mxu0 %v216
    %220 = vmatprep.subr.bf16.mxu0 0
    %221 = vmatpush1.bf16.xpose.msra.mxu0 0
    %222 = vmatprep.subr.bf16.mxu0 0
    %223 = vmatpush1.bf16.xpose.msra.mxu0 0
    %224 = vmatprep.subr.bf16.mxu0 0
    %225 = vmatpush1.bf16.xpose.msra.mxu0 0
    %226 = vmatprep.subr.bf16.mxu0 0
    %227 = vmatpush1.bf16.xpose.msra.mxu0 0
    %228 = vmatprep.subr.bf16.mxu0 0
    %229 = vmatpush1.bf16.xpose.msra.mxu0 0
    %230 = vmatprep.subr.bf16.mxu0 0
    %231 = vmatpush1.bf16.xpose.msra.mxu0 0
    %232 = vmatprep.subr.bf16.mxu0 0
    %233 = vmatpush1.bf16.xpose.msra.mxu0 0
    %234 = vmatprep.subr.bf16.mxu0 0
    %235 = vmatpush1.bf16.xpose.msra.mxu0 0
    %236 = vmatprep.subr.bf16.mxu0 0
    %237 = vmatpush1.bf16.xpose.msra.mxu0 0
    %238 = vmatprep.subr.bf16.mxu0 0
    %239 = vmatpush1.bf16.xpose.msra.mxu0 0
    %240 = vmatprep.subr.bf16.mxu0 0
    %241 = vmatpush1.bf16.xpose.msra.mxu0 0
    %242 = vmatprep.subr.bf16.mxu0 0
    %243 = vmatpush1.bf16.xpose.msra.mxu0 0
    %244 = vmatprep.subr.bf16.mxu0 0
    %245 = vmatpush1.bf16.xpose.msra.mxu0 0
    %246 = vmatprep.subr.bf16.mxu0 0
    %247 = vmatpush1.bf16.xpose.msra.mxu0 0
    %248 = vmatprep.subr.bf16.mxu0 0
    %249 = vmatpush1.bf16.xpose.msra.mxu0 0
    %250 = vmatprep.mubr.bf16.mxu0 0
    %251 = vmatmul.mubr.bf16.gmra.mrb[0].mxu0 %v213
    %v252 = vpop.f32.mrb[0].mxu0
    %v253 = vadd.f32 0.0, %v252
    %v254 = vpop.f32.mrb[0].mxu0
    %v255 = vpop.f32.mrb[0].mxu0
    %v256 = vpop.f32.mrb[0].mxu0
    %257 = vdwg.mxu0
    %259 = vrot.lane.b32.xlu0 %v205, 96
    %v260 = vpop.permute.xlu0 %259
    %v262 = vsel %vm211, %v205, 0
    %v265 = vsel %vm211, %v260, 0
    %267 = vmatprep.subr.bf16.mxu0 0
    %268 = vmatpush1.bf16.xpose.msra.mxu0 %v265
    %269 = vmatprep.subr.bf16.mxu0 0
    %270 = vmatpush1.bf16.xpose.msra.mxu0 0
    %271 = vmatprep.subr.bf16.mxu0 0
    %272 = vmatpush1.bf16.xpose.msra.mxu0 0
    %273 = vmatprep.subr.bf16.mxu0 0
    %274 = vmatpush1.bf16.xpose.msra.mxu0 0
    %275 = vmatprep.subr.bf16.mxu0 0
    %276 = vmatpush1.bf16.xpose.msra.mxu0 0
    %277 = vmatprep.subr.bf16.mxu0 0
    %278 = vmatpush1.bf16.xpose.msra.mxu0 0
    %279 = vmatprep.subr.bf16.mxu0 0
    %280 = vmatpush1.bf16.xpose.msra.mxu0 0
    %281 = vmatprep.subr.bf16.mxu0 0
    %282 = vmatpush1.bf16.xpose.msra.mxu0 0
    %283 = vmatprep.subr.bf16.mxu0 0
    %284 = vmatpush1.bf16.xpose.msra.mxu0 0
    %285 = vmatprep.subr.bf16.mxu0 0
    %286 = vmatpush1.bf16.xpose.msra.mxu0 0
    %287 = vmatprep.subr.bf16.mxu0 0
    %288 = vmatpush1.bf16.xpose.msra.mxu0 0
    %289 = vmatprep.subr.bf16.mxu0 0
    %290 = vmatpush1.bf16.xpose.msra.mxu0 0
    %291 = vmatprep.subr.bf16.mxu0 0
    %292 = vmatpush1.bf16.xpose.msra.mxu0 0
    %293 = vmatprep.subr.bf16.mxu0 0
    %294 = vmatpush1.bf16.xpose.msra.mxu0 0
    %295 = vmatprep.subr.bf16.mxu0 0
    %296 = vmatpush1.bf16.xpose.msra.mxu0 0
    %297 = vmatprep.subr.bf16.mxu0 0
    %298 = vmatpush1.bf16.xpose.msra.mxu0 0
    %299 = vmatprep.mubr.bf16.mxu0 0
    %300 = vmatmul.mubr.bf16.gmra.mrb[0].mxu0 %v262
    %v301 = vpop.f32.mrb[0].mxu0
    %v302 = vadd.f32 0.0, %v301
    %v303 = vpop.f32.mrb[0].mxu0
    %v304 = vpop.f32.mrb[0].mxu0
    %v305 = vpop.f32.mrb[0].mxu0
    %306 = vdwg.mxu0
    %308 = vrot.lane.b32.xlu0 %v206, 96
    %v309 = vpop.permute.xlu0 %308
    %v311 = vsel %vm211, %v206, 0
    %v314 = vsel %vm211, %v309, 0
    %316 = vmatprep.subr.bf16.mxu0 0
    %317 = vmatpush1.bf16.xpose.msra.mxu0 %v314
    %318 = vmatprep.subr.bf16.mxu0 0
    %319 = vmatpush1.bf16.xpose.msra.mxu0 0
    %320 = vmatprep.subr.bf16.mxu0 0
    %321 = vmatpush1.bf16.xpose.msra.mxu0 0
    %322 = vmatprep.subr.bf16.mxu0 0
    %323 = vmatpush1.bf16.xpose.msra.mxu0 0
    %324 = vmatprep.subr.bf16.mxu0 0
    %325 = vmatpush1.bf16.xpose.msra.mxu0 0
    %326 = vmatprep.subr.bf16.mxu0 0
    %327 = vmatpush1.bf16.xpose.msra.mxu0 0
    %328 = vmatprep.subr.bf16.mxu0 0
    %329 = vmatpush1.bf16.xpose.msra.mxu0 0
    %330 = vmatprep.subr.bf16.mxu0 0
    %331 = vmatpush1.bf16.xpose.msra.mxu0 0
    %332 = vmatprep.subr.bf16.mxu0 0
    %333 = vmatpush1.bf16.xpose.msra.mxu0 0
    %334 = vmatprep.subr.bf16.mxu0 0
    %335 = vmatpush1.bf16.xpose.msra.mxu0 0
    %336 = vmatprep.subr.bf16.mxu0 0
    %337 = vmatpush1.bf16.xpose.msra.mxu0 0
    %338 = vmatprep.subr.bf16.mxu0 0
    %339 = vmatpush1.bf16.xpose.msra.mxu0 0
    %340 = vmatprep.subr.bf16.mxu0 0
    %341 = vmatpush1.bf16.xpose.msra.mxu0 0
    %342 = vmatprep.subr.bf16.mxu0 0
    %343 = vmatpush1.bf16.xpose.msra.mxu0 0
    %344 = vmatprep.subr.bf16.mxu0 0
    %345 = vmatpush1.bf16.xpose.msra.mxu0 0
    %346 = vmatprep.subr.bf16.mxu0 0
    %347 = vmatpush1.bf16.xpose.msra.mxu0 0
    %348 = vmatprep.mubr.bf16.mxu0 0
    %349 = vmatmul.mubr.bf16.gmra.mrb[0].mxu0 %v311
    %v350 = vpop.f32.mrb[0].mxu0
    %v351 = vadd.f32 0.0, %v350
    %v352 = vpop.f32.mrb[0].mxu0
    %v353 = vpop.f32.mrb[0].mxu0
    %v354 = vpop.f32.mrb[0].mxu0
    %355 = vdwg.mxu0
    %357 = vrot.lane.b32.xlu0 %v207, 96
    %v358 = vpop.permute.xlu0 %357
    %v360 = vsel %vm211, %v207, 0
    %v363 = vsel %vm211, %v358, 0
    %365 = vmatprep.subr.bf16.mxu0 0
    %366 = vmatpush1.bf16.xpose.msra.mxu0 %v363
    %367 = vmatprep.subr.bf16.mxu0 0
    %368 = vmatpush1.bf16.xpose.msra.mxu0 0
    %369 = vmatprep.subr.bf16.mxu0 0
    %370 = vmatpush1.bf16.xpose.msra.mxu0 0
    %371 = vmatprep.subr.bf16.mxu0 0
    %372 = vmatpush1.bf16.xpose.msra.mxu0 0
    %373 = vmatprep.subr.bf16.mxu0 0
    %374 = vmatpush1.bf16.xpose.msra.mxu0 0
    %375 = vmatprep.subr.bf16.mxu0 0
    %376 = vmatpush1.bf16.xpose.msra.mxu0 0
    %377 = vmatprep.subr.bf16.mxu0 0
    %378 = vmatpush1.bf16.xpose.msra.mxu0 0
    %379 = vmatprep.subr.bf16.mxu0 0
    %380 = vmatpush1.bf16.xpose.msra.mxu0 0
    %381 = vmatprep.subr.bf16.mxu0 0
    %382 = vmatpush1.bf16.xpose.msra.mxu0 0
    %383 = vmatprep.subr.bf16.mxu0 0
    %384 = vmatpush1.bf16.xpose.msra.mxu0 0
    %385 = vmatprep.subr.bf16.mxu0 0
    %386 = vmatpush1.bf16.xpose.msra.mxu0 0
    %387 = vmatprep.subr.bf16.mxu0 0
    %388 = vmatpush1.bf16.xpose.msra.mxu0 0
    %389 = vmatprep.subr.bf16.mxu0 0
    %390 = vmatpush1.bf16.xpose.msra.mxu0 0
    %391 = vmatprep.subr.bf16.mxu0 0
    %392 = vmatpush1.bf16.xpose.msra.mxu0 0
    %393 = vmatprep.subr.bf16.mxu0 0
    %394 = vmatpush1.bf16.xpose.msra.mxu0 0
    %395 = vmatprep.subr.bf16.mxu0 0
    %396 = vmatpush1.bf16.xpose.msra.mxu0 0
    %397 = vmatprep.mubr.bf16.mxu0 0
    %398 = vmatmul.mubr.bf16.gmra.mrb[0].mxu0 %v360
    %v399 = vpop.f32.mrb[0].mxu0
    %v400 = vadd.f32 0.0, %v399
    %v401 = vpop.f32.mrb[0].mxu0
    %v402 = vpop.f32.mrb[0].mxu0
    %v403 = vpop.f32.mrb[0].mxu0
    %404 = vdwg.mxu0
    %v405 = vmul.f32 %v253, 0.35355338
    %v406 = vmul.f32 %v302, 0.35355338
    %v407 = vmul.f32 %v351, 0.35355338
    %v408 = vmul.f32 %v400, 0.35355338
    %v409 = vsel %vm193, 1, 0
    %vm410 = vcmp.eq.s32.totalorder %v409, 1
    %v411 = vsel %vm410, %v405, -1000000.0
    %v412 = vsel %vm410, %v406, -1000000.0
    %v413 = vsel %vm410, %v407, -1000000.0
    %v414 = vsel %vm410, %v408, -1000000.0
    %v415 = vsel %vm211, %v411, -inf
    %416 = vmax.xlane.f32.xlu0 %v415
    %v417 = vpop.xlane.xlu0 %416
    %v418 = vsel %vm211, %v412, -inf
    %419 = vmax.xlane.f32.xlu0 %v418
    %v420 = vpop.xlane.xlu0 %419
    %v421 = vsel %vm211, %v413, -inf
    %422 = vmax.xlane.f32.xlu0 %v421
    %v423 = vpop.xlane.xlu0 %422
    %v424 = vsel %vm211, %v414, -inf
    %425 = vmax.xlane.f32.xlu0 %v424
    %v426 = vpop.xlane.xlu0 %425
    %v427 = vsub.f32 %v411, %v417
    %v428 = vsub.f32 %v412, %v420
    %v429 = vsub.f32 %v413, %v423
    %v430 = vsub.f32 %v414, %v426
    %v431 = vmul.f32 %v427, 1.442695
    %v432 = vpow.pop %v431
    %v433 = vmul.f32 %v428, 1.442695
    %v434 = vpow.pop %v433
    %v435 = vmul.f32 %v429, 1.442695
    %v436 = vpow.pop %v435
    %v437 = vmul.f32 %v430, 1.442695
    %v438 = vpow.pop %v437
    %v439 = vsel %vm211, %v432, 0.0
    %440 = vadd.xlane.f32.xlu0 %v439
    %v441 = vpop.xlane.xlu0 %440
    %v442 = vsel %vm211, %v434, 0.0
    %443 = vadd.xlane.f32.xlu0 %v442
    %v444 = vpop.xlane.xlu0 %443
    %v445 = vsel %vm211, %v436, 0.0
    %446 = vadd.xlane.f32.xlu0 %v445
    %v447 = vpop.xlane.xlu0 %446
    %v448 = vsel %vm211, %v438, 0.0
    %449 = vadd.xlane.f32.xlu0 %v448
    %v450 = vpop.xlane.xlu0 %449
    %v451 = vrcp.pop %v441
    %v452 = vrcp.pop %v444
    %v453 = vrcp.pop %v447
    %v454 = vrcp.pop %v450
    %v455 = vmul.f32 %v432, %v451
    %v456 = vmul.f32 %v434, %v452
    %v457 = vmul.f32 %v436, %v453
    %v458 = vmul.f32 %v438, %v454
    %v459 = vpack.c.bf16 %v455, %v455
    %v460 = vpack.c.bf16 %v456, %v456
    %v461 = vpack.c.bf16 %v457, %v457
    %v462 = vpack.c.bf16 %v458, %v458
    %463 = vrot.lane.b32.xlu0 %v204, 64
    %v464 = vpop.permute.xlu0 %463
    %v466 = vsel %vm211, %v459, 0
    %vm468 = vcmask 1043456
    %v470 = vsel %vm468, %v464, 0
    %472 = vmatprep.subr.bf16.mxu0 0
    %473 = vmatpush1.bf16.msra.mxu0 %v470
    %474 = vmatprep.subr.bf16.mxu0 0
    %475 = vmatpush1.bf16.msra.mxu0 0
    %476 = vmatprep.subr.bf16.mxu0 0
    %477 = vmatpush1.bf16.msra.mxu0 0
    %478 = vmatprep.subr.bf16.mxu0 0
    %479 = vmatpush1.bf16.msra.mxu0 0
    %480 = vmatprep.subr.bf16.mxu0 0
    %481 = vmatpush1.bf16.msra.mxu0 0
    %482 = vmatprep.subr.bf16.mxu0 0
    %483 = vmatpush1.bf16.msra.mxu0 0
    %484 = vmatprep.subr.bf16.mxu0 0
    %485 = vmatpush1.bf16.msra.mxu0 0
    %486 = vmatprep.subr.bf16.mxu0 0
    %487 = vmatpush1.bf16.msra.mxu0 0
    %488 = vmatprep.subr.bf16.mxu0 0
    %489 = vmatpush1.bf16.msra.mxu0 0
    %490 = vmatprep.subr.bf16.mxu0 0
    %491 = vmatpush1.bf16.msra.mxu0 0
    %492 = vmatprep.subr.bf16.mxu0 0
    %493 = vmatpush1.bf16.msra.mxu0 0
    %494 = vmatprep.subr.bf16.mxu0 0
    %495 = vmatpush1.bf16.msra.mxu0 0
    %496 = vmatprep.subr.bf16.mxu0 0
    %497 = vmatpush1.bf16.msra.mxu0 0
    %498 = vmatprep.subr.bf16.mxu0 0
    %499 = vmatpush1.bf16.msra.mxu0 0
    %500 = vmatprep.subr.bf16.mxu0 0
    %501 = vmatpush1.bf16.msra.mxu0 0
    %502 = vmatprep.subr.bf16.mxu0 0
    %503 = vmatpush1.bf16.msra.mxu0 0
    %504 = vmatprep.mubr.bf16.mxu0 0
    %505 = vmatmul.mubr.bf16.gmra.mrb[0].mxu0 %v466
    %v506 = vpop.f32.mrb[0].mxu0
    %v507 = vadd.f32 0.0, %v506
    %v508 = vpop.f32.mrb[0].mxu0
    %v509 = vpop.f32.mrb[0].mxu0
    %v510 = vpop.f32.mrb[0].mxu0
    %511 = vdwg.mxu0
    %512 = vrot.lane.b32.xlu0 %v205, 64
    %v513 = vpop.permute.xlu0 %512
    %v515 = vsel %vm211, %v460, 0
    %v518 = vsel %vm468, %v513, 0
    %520 = vmatprep.subr.bf16.mxu0 0
    %521 = vmatpush1.bf16.msra.mxu0 %v518
    %522 = vmatprep.subr.bf16.mxu0 0
    %523 = vmatpush1.bf16.msra.mxu0 0
    %524 = vmatprep.subr.bf16.mxu0 0
    %525 = vmatpush1.bf16.msra.mxu0 0
    %526 = vmatprep.subr.bf16.mxu0 0
    %527 = vmatpush1.bf16.msra.mxu0 0
    %528 = vmatprep.subr.bf16.mxu0 0
    %529 = vmatpush1.bf16.msra.mxu0 0
    %530 = vmatprep.subr.bf16.mxu0 0
    %531 = vmatpush1.bf16.msra.mxu0 0
    %532 = vmatprep.subr.bf16.mxu0 0
    %533 = vmatpush1.bf16.msra.mxu0 0
    %534 = vmatprep.subr.bf16.mxu0 0
    %535 = vmatpush1.bf16.msra.mxu0 0
    %536 = vmatprep.subr.bf16.mxu0 0
    %537 = vmatpush1.bf16.msra.mxu0 0
    %538 = vmatprep.subr.bf16.mxu0 0
    %539 = vmatpush1.bf16.msra.mxu0 0
    %540 = vmatprep.subr.bf16.mxu0 0
    %541 = vmatpush1.bf16.msra.mxu0 0
    %542 = vmatprep.subr.bf16.mxu0 0
    %543 = vmatpush1.bf16.msra.mxu0 0
    %544 = vmatprep.subr.bf16.mxu0 0
    %545 = vmatpush1.bf16.msra.mxu0 0
    %546 = vmatprep.subr.bf16.mxu0 0
    %547 = vmatpush1.bf16.msra.mxu0 0
    %548 = vmatprep.subr.bf16.mxu0 0
    %549 = vmatpush1.bf16.msra.mxu0 0
    %550 = vmatprep.subr.bf16.mxu0 0
    %551 = vmatpush1.bf16.msra.mxu0 0
    %552 = vmatprep.mubr.bf16.mxu0 0
    %553 = vmatmul.mubr.bf16.gmra.mrb[0].mxu0 %v515
    %v554 = vpop.f32.mrb[0].mxu0
    %v555 = vadd.f32 0.0, %v554
    %v556 = vpop.f32.mrb[0].mxu0
    %v557 = vpop.f32.mrb[0].mxu0
    %v558 = vpop.f32.mrb[0].mxu0
    %559 = vdwg.mxu0
    %560 = vrot.lane.b32.xlu0 %v206, 64
    %v561 = vpop.permute.xlu0 %560
    %v563 = vsel %vm211, %v461, 0
    %v566 = vsel %vm468, %v561, 0
    %568 = vmatprep.subr.bf16.mxu0 0
    %569 = vmatpush1.bf16.msra.mxu0 %v566
    %570 = vmatprep.subr.bf16.mxu0 0
    %571 = vmatpush1.bf16.msra.mxu0 0
    %572 = vmatprep.subr.bf16.mxu0 0
    %573 = vmatpush1.bf16.msra.mxu0 0
    %574 = vmatprep.subr.bf16.mxu0 0
    %575 = vmatpush1.bf16.msra.mxu0 0
    %576 = vmatprep.subr.bf16.mxu0 0
    %577 = vmatpush1.bf16.msra.mxu0 0
    %578 = vmatprep.subr.bf16.mxu0 0
    %579 = vmatpush1.bf16.msra.mxu0 0
    %580 = vmatprep.subr.bf16.mxu0 0
    %581 = vmatpush1.bf16.msra.mxu0 0
    %582 = vmatprep.subr.bf16.mxu0 0
    %583 = vmatpush1.bf16.msra.mxu0 0
    %584 = vmatprep.subr.bf16.mxu0 0
    %585 = vmatpush1.bf16.msra.mxu0 0
    %586 = vmatprep.subr.bf16.mxu0 0
    %587 = vmatpush1.bf16.msra.mxu0 0
    %588 = vmatprep.subr.bf16.mxu0 0
    %589 = vmatpush1.bf16.msra.mxu0 0
    %590 = vmatprep.subr.bf16.mxu0 0
    %591 = vmatpush1.bf16.msra.mxu0 0
    %592 = vmatprep.subr.bf16.mxu0 0
    %593 = vmatpush1.bf16.msra.mxu0 0
    %594 = vmatprep.subr.bf16.mxu0 0
    %595 = vmatpush1.bf16.msra.mxu0 0
    %596 = vmatprep.subr.bf16.mxu0 0
    %597 = vmatpush1.bf16.msra.mxu0 0
    %598 = vmatprep.subr.bf16.mxu0 0
    %599 = vmatpush1.bf16.msra.mxu0 0
    %600 = vmatprep.mubr.bf16.mxu0 0
    %601 = vmatmul.mubr.bf16.gmra.mrb[0].mxu0 %v563
    %v602 = vpop.f32.mrb[0].mxu0
    %v603 = vadd.f32 0.0, %v602
    %v604 = vpop.f32.mrb[0].mxu0
    %v605 = vpop.f32.mrb[0].mxu0
    %v606 = vpop.f32.mrb[0].mxu0
    %607 = vdwg.mxu0
    %608 = vrot.lane.b32.xlu0 %v207, 64
    %v609 = vpop.permute.xlu0 %608
    %v611 = vsel %vm211, %v462, 0
    %v614 = vsel %vm468, %v609, 0
    %616 = vmatprep.subr.bf16.mxu0 0
    %617 = vmatpush1.bf16.msra.mxu0 %v614
    %618 = vmatprep.subr.bf16.mxu0 0
    %619 = vmatpush1.bf16.msra.mxu0 0
    %620 = vmatprep.subr.bf16.mxu0 0
    %621 = vmatpush1.bf16.msra.mxu0 0
    %622 = vmatprep.subr.bf16.mxu0 0
    %623 = vmatpush1.bf16.msra.mxu0 0
    %624 = vmatprep.subr.bf16.mxu0 0
    %625 = vmatpush1.bf16.msra.mxu0 0
    %626 = vmatprep.subr.bf16.mxu0 0
    %627 = vmatpush1.bf16.msra.mxu0 0
    %628 = vmatprep.subr.bf16.mxu0 0
    %629 = vmatpush1.bf16.msra.mxu0 0
    %630 = vmatprep.subr.bf16.mxu0 0
    %631 = vmatpush1.bf16.msra.mxu0 0
    %632 = vmatprep.subr.bf16.mxu0 0
    %633 = vmatpush1.bf16.msra.mxu0 0
    %634 = vmatprep.subr.bf16.mxu0 0
    %635 = vmatpush1.bf16.msra.mxu0 0
    %636 = vmatprep.subr.bf16.mxu0 0
    %637 = vmatpush1.bf16.msra.mxu0 0
    %638 = vmatprep.subr.bf16.mxu0 0
    %639 = vmatpush1.bf16.msra.mxu0 0
    %640 = vmatprep.subr.bf16.mxu0 0
    %641 = vmatpush1.bf16.msra.mxu0 0
    %642 = vmatprep.subr.bf16.mxu0 0
    %643 = vmatpush1.bf16.msra.mxu0 0
    %644 = vmatprep.subr.bf16.mxu0 0
    %645 = vmatpush1.bf16.msra.mxu0 0
    %646 = vmatprep.subr.bf16.mxu0 0
    %647 = vmatpush1.bf16.msra.mxu0 0
    %648 = vmatprep.mubr.bf16.mxu0 0
    %649 = vmatmul.mubr.bf16.gmra.mrb[0].mxu0 %v611
    %v650 = vpop.f32.mrb[0].mxu0
    %v651 = vadd.f32 0.0, %v650
    %v652 = vpop.f32.mrb[0].mxu0
    %v653 = vpop.f32.mrb[0].mxu0
    %v654 = vpop.f32.mrb[0].mxu0
    %655 = vdwg.mxu0
    %657 = vrot.lane.b32.xlu0 %v555, 8
    %v658 = vpop.permute.xlu0 %657
    %661 = vrot.lane.b32.xlu0 %v603, 16
    %v662 = vpop.permute.xlu0 %661
    %665 = vrot.lane.b32.xlu0 %v651, 24
    %v666 = vpop.permute.xlu0 %665
    %v668 = vsel %vm211, %v507, %v658
    %vm669 = vcmask 130048
    %v670 = vsel %vm669, %v668, %v662
    %vm671 = vcmask 195584
    %v672 = vsel %vm671, %v670, %v666
    %674 = vrot.lane.b32.xlu0 %v186, 120
    %v675 = vpop.permute.xlu0 %674
    %677 = vrot.lane.b32.xlu0 %v186, 112
    %v678 = vpop.permute.xlu0 %677
    %680 = vrot.lane.b32.xlu0 %v186, 104
    %v681 = vpop.permute.xlu0 %680
    %v683 = vpack.c.bf16 %v186, %v186
    %v684 = vpack.c.bf16 %v675, %v675
    %v685 = vpack.c.bf16 %v678, %v678
    %v686 = vpack.c.bf16 %v681, %v681
    %688 = vrot.lane.b32.xlu0 %v683, 96
    %v689 = vpop.permute.xlu0 %688
    %v691 = vsel %vm211, %v683, 0
    %v694 = vsel %vm211, %v689, 0
    %696 = vmatprep.subr.bf16.mxu0 0
    %697 = vmatpush1.bf16.xpose.msra.mxu0 %v694
    %698 = vmatprep.subr.bf16.mxu0 0
    %699 = vmatpush1.bf16.xpose.msra.mxu0 0
    %700 = vmatprep.subr.bf16.mxu0 0
    %701 = vmatpush1.bf16.xpose.msra.mxu0 0
    %702 = vmatprep.subr.bf16.mxu0 0
    %703 = vmatpush1.bf16.xpose.msra.mxu0 0
    %704 = vmatprep.subr.bf16.mxu0 0
    %705 = vmatpush1.bf16.xpose.msra.mxu0 0
    %706 = vmatprep.subr.bf16.mxu0 0
    %707 = vmatpush1.bf16.xpose.msra.mxu0 0
    %708 = vmatprep.subr.bf16.mxu0 0
    %709 = vmatpush1.bf16.xpose.msra.mxu0 0
    %710 = vmatprep.subr.bf16.mxu0 0
    %711 = vmatpush1.bf16.xpose.msra.mxu0 0
    %712 = vmatprep.subr.bf16.mxu0 0
    %713 = vmatpush1.bf16.xpose.msra.mxu0 0
    %714 = vmatprep.subr.bf16.mxu0 0
    %715 = vmatpush1.bf16.xpose.msra.mxu0 0
    %716 = vmatprep.subr.bf16.mxu0 0
    %717 = vmatpush1.bf16.xpose.msra.mxu0 0
    %718 = vmatprep.subr.bf16.mxu0 0
    %719 = vmatpush1.bf16.xpose.msra.mxu0 0
    %720 = vmatprep.subr.bf16.mxu0 0
    %721 = vmatpush1.bf16.xpose.msra.mxu0 0
    %722 = vmatprep.subr.bf16.mxu0 0
    %723 = vmatpush1.bf16.xpose.msra.mxu0 0
    %724 = vmatprep.subr.bf16.mxu0 0
    %725 = vmatpush1.bf16.xpose.msra.mxu0 0
    %726 = vmatprep.subr.bf16.mxu0 0
    %727 = vmatpush1.bf16.xpose.msra.mxu0 0
    %728 = vmatprep.mubr.bf16.mxu0 0
    %729 = vmatmul.mubr.bf16.gmra.mrb[0].mxu0 %v691
    %v730 = vpop.f32.mrb[0].mxu0
    %v731 = vadd.f32 0.0, %v730
    %v732 = vpop.f32.mrb[0].mxu0
    %v733 = vpop.f32.mrb[0].mxu0
    %v734 = vpop.f32.mrb[0].mxu0
    %735 = vdwg.mxu0
    %737 = vrot.lane.b32.xlu0 %v684, 96
    %v738 = vpop.permute.xlu0 %737
    %v740 = vsel %vm211, %v684, 0
    %v743 = vsel %vm211, %v738, 0
    %745 = vmatprep.subr.bf16.mxu0 0
    %746 = vmatpush1.bf16.xpose.msra.mxu0 %v743
    %747 = vmatprep.subr.bf16.mxu0 0
    %748 = vmatpush1.bf16.xpose.msra.mxu0 0
    %749 = vmatprep.subr.bf16.mxu0 0
    %750 = vmatpush1.bf16.xpose.msra.mxu0 0
    %751 = vmatprep.subr.bf16.mxu0 0
    %752 = vmatpush1.bf16.xpose.msra.mxu0 0
    %753 = vmatprep.subr.bf16.mxu0 0
    %754 = vmatpush1.bf16.xpose.msra.mxu0 0
    %755 = vmatprep.subr.bf16.mxu0 0
    %756 = vmatpush1.bf16.xpose.msra.mxu0 0
    %757 = vmatprep.subr.bf16.mxu0 0
    %758 = vmatpush1.bf16.xpose.msra.mxu0 0
    %759 = vmatprep.subr.bf16.mxu0 0
    %760 = vmatpush1.bf16.xpose.msra.mxu0 0
    %761 = vmatprep.subr.bf16.mxu0 0
    %762 = vmatpush1.bf16.xpose.msra.mxu0 0
    %763 = vmatprep.subr.bf16.mxu0 0
    %764 = vmatpush1.bf16.xpose.msra.mxu0 0
    %765 = vmatprep.subr.bf16.mxu0 0
    %766 = vmatpush1.bf16.xpose.msra.mxu0 0
    %767 = vmatprep.subr.bf16.mxu0 0
    %768 = vmatpush1.bf16.xpose.msra.mxu0 0
    %769 = vmatprep.subr.bf16.mxu0 0
    %770 = vmatpush1.bf16.xpose.msra.mxu0 0
    %771 = vmatprep.subr.bf16.mxu0 0
    %772 = vmatpush1.bf16.xpose.msra.mxu0 0
    %773 = vmatprep.subr.bf16.mxu0 0
    %774 = vmatpush1.bf16.xpose.msra.mxu0 0
    %775 = vmatprep.subr.bf16.mxu0 0
    %776 = vmatpush1.bf16.xpose.msra.mxu0 0
    %777 = vmatprep.mubr.bf16.mxu0 0
    %778 = vmatmul.mubr.bf16.gmra.mrb[0].mxu0 %v740
    %v779 = vpop.f32.mrb[0].mxu0
    %v780 = vadd.f32 0.0, %v779
    %v781 = vpop.f32.mrb[0].mxu0
    %v782 = vpop.f32.mrb[0].mxu0
    %v783 = vpop.f32.mrb[0].mxu0
    %784 = vdwg.mxu0
    %786 = vrot.lane.b32.xlu0 %v685, 96
    %v787 = vpop.permute.xlu0 %786
    %v789 = vsel %vm211, %v685, 0
    %v792 = vsel %vm211, %v787, 0
    %794 = vmatprep.subr.bf16.mxu0 0
    %795 = vmatpush1.bf16.xpose.msra.mxu0 %v792
    %796 = vmatprep.subr.bf16.mxu0 0
    %797 = vmatpush1.bf16.xpose.msra.mxu0 0
    %798 = vmatprep.subr.bf16.mxu0 0
    %799 = vmatpush1.bf16.xpose.msra.mxu0 0
    %800 = vmatprep.subr.bf16.mxu0 0
    %801 = vmatpush1.bf16.xpose.msra.mxu0 0
    %802 = vmatprep.subr.bf16.mxu0 0
    %803 = vmatpush1.bf16.xpose.msra.mxu0 0
    %804 = vmatprep.subr.bf16.mxu0 0
    %805 = vmatpush1.bf16.xpose.msra.mxu0 0
    %806 = vmatprep.subr.bf16.mxu0 0
    %807 = vmatpush1.bf16.xpose.msra.mxu0 0
    %808 = vmatprep.subr.bf16.mxu0 0
    %809 = vmatpush1.bf16.xpose.msra.mxu0 0
    %810 = vmatprep.subr.bf16.mxu0 0
    %811 = vmatpush1.bf16.xpose.msra.mxu0 0
    %812 = vmatprep.subr.bf16.mxu0 0
    %813 = vmatpush1.bf16.xpose.msra.mxu0 0
    %814 = vmatprep.subr.bf16.mxu0 0
    %815 = vmatpush1.bf16.xpose.msra.mxu0 0
    %816 = vmatprep.subr.bf16.mxu0 0
    %817 = vmatpush1.bf16.xpose.msra.mxu0 0
    %818 = vmatprep.subr.bf16.mxu0 0
    %819 = vmatpush1.bf16.xpose.msra.mxu0 0
    %820 = vmatprep.subr.bf16.mxu0 0
    %821 = vmatpush1.bf16.xpose.msra.mxu0 0
    %822 = vmatprep.subr.bf16.mxu0 0
    %823 = vmatpush1.bf16.xpose.msra.mxu0 0
    %824 = vmatprep.subr.bf16.mxu0 0
    %825 = vmatpush1.bf16.xpose.msra.mxu0 0
    %826 = vmatprep.mubr.bf16.mxu0 0
    %827 = vmatmul.mubr.bf16.gmra.mrb[0].mxu0 %v789
    %v828 = vpop.f32.mrb[0].mxu0
    %v829 = vadd.f32 0.0, %v828
    %v830 = vpop.f32.mrb[0].mxu0
    %v831 = vpop.f32.mrb[0].mxu0
    %v832 = vpop.f32.mrb[0].mxu0
    %833 = vdwg.mxu0
    %835 = vrot.lane.b32.xlu0 %v686, 96
    %v836 = vpop.permute.xlu0 %835
    %v838 = vsel %vm211, %v686, 0
    %v841 = vsel %vm211, %v836, 0
    %843 = vmatprep.subr.bf16.mxu0 0
    %844 = vmatpush1.bf16.xpose.msra.mxu0 %v841
    %845 = vmatprep.subr.bf16.mxu0 0
    %846 = vmatpush1.bf16.xpose.msra.mxu0 0
    %847 = vmatprep.subr.bf16.mxu0 0
    %848 = vmatpush1.bf16.xpose.msra.mxu0 0
    %849 = vmatprep.subr.bf16.mxu0 0
    %850 = vmatpush1.bf16.xpose.msra.mxu0 0
    %851 = vmatprep.subr.bf16.mxu0 0
    %852 = vmatpush1.bf16.xpose.msra.mxu0 0
    %853 = vmatprep.subr.bf16.mxu0 0
    %854 = vmatpush1.bf16.xpose.msra.mxu0 0
    %855 = vmatprep.subr.bf16.mxu0 0
    %856 = vmatpush1.bf16.xpose.msra.mxu0 0
    %857 = vmatprep.subr.bf16.mxu0 0
    %858 = vmatpush1.bf16.xpose.msra.mxu0 0
    %859 = vmatprep.subr.bf16.mxu0 0
    %860 = vmatpush1.bf16.xpose.msra.mxu0 0
    %861 = vmatprep.subr.bf16.mxu0 0
    %862 = vmatpush1.bf16.xpose.msra.mxu0 0
    %863 = vmatprep.subr.bf16.mxu0 0
    %864 = vmatpush1.bf16.xpose.msra.mxu0 0
    %865 = vmatprep.subr.bf16.mxu0 0
    %866 = vmatpush1.bf16.xpose.msra.mxu0 0
    %867 = vmatprep.subr.bf16.mxu0 0
    %868 = vmatpush1.bf16.xpose.msra.mxu0 0
    %869 = vmatprep.subr.bf16.mxu0 0
    %870 = vmatpush1.bf16.xpose.msra.mxu0 0
    %871 = vmatprep.subr.bf16.mxu0 0
    %872 = vmatpush1.bf16.xpose.msra.mxu0 0
    %873 = vmatprep.subr.bf16.mxu0 0
    %874 = vmatpush1.bf16.xpose.msra.mxu0 0
    %875 = vmatprep.mubr.bf16.mxu0 0
    %876 = vmatmul.mubr.bf16.gmra.mrb[0].mxu0 %v838
    %v877 = vpop.f32.mrb[0].mxu0
    %v878 = vadd.f32 0.0, %v877
    %v879 = vpop.f32.mrb[0].mxu0
    %v880 = vpop.f32.mrb[0].mxu0
    %v881 = vpop.f32.mrb[0].mxu0
    %882 = vdwg.mxu0
    %v883 = vmul.f32 %v731, 0.35355338
    %v884 = vmul.f32 %v780, 0.35355338
    %v885 = vmul.f32 %v829, 0.35355338
    %v886 = vmul.f32 %v878, 0.35355338
    %v887 = vsel %vm410, %v883, -1000000.0
    %v888 = vsel %vm410, %v884, -1000000.0
    %v889 = vsel %vm410, %v885, -1000000.0
    %v890 = vsel %vm410, %v886, -1000000.0
    %v891 = vsel %vm211, %v887, -inf
    %892 = vmax.xlane.f32.xlu0 %v891
    %v893 = vpop.xlane.xlu0 %892
    %v894 = vsel %vm211, %v888, -inf
    %895 = vmax.xlane.f32.xlu0 %v894
    %v896 = vpop.xlane.xlu0 %895
    %v897 = vsel %vm211, %v889, -inf
    %898 = vmax.xlane.f32.xlu0 %v897
    %v899 = vpop.xlane.xlu0 %898
    %v900 = vsel %vm211, %v890, -inf
    %901 = vmax.xlane.f32.xlu0 %v900
    %v902 = vpop.xlane.xlu0 %901
    %v903 = vsub.f32 %v887, %v893
    %v904 = vsub.f32 %v888, %v896
    %v905 = vsub.f32 %v889, %v899
    %v906 = vsub.f32 %v890, %v902
    %v907 = vmul.f32 %v903, 1.442695
    %v908 = vpow.pop %v907
    %v909 = vmul.f32 %v904, 1.442695
    %v910 = vpow.pop %v909
    %v911 = vmul.f32 %v905, 1.442695
    %v912 = vpow.pop %v911
    %v913 = vmul.f32 %v906, 1.442695
    %v914 = vpow.pop %v913
    %v915 = vsel %vm211, %v908, 0.0
    %916 = vadd.xlane.f32.xlu0 %v915
    %v917 = vpop.xlane.xlu0 %916
    %v918 = vsel %vm211, %v910, 0.0
    %919 = vadd.xlane.f32.xlu0 %v918
    %v920 = vpop.xlane.xlu0 %919
    %v921 = vsel %vm211, %v912, 0.0
    %922 = vadd.xlane.f32.xlu0 %v921
    %v923 = vpop.xlane.xlu0 %922
    %v924 = vsel %vm211, %v914, 0.0
    %925 = vadd.xlane.f32.xlu0 %v924
    %v926 = vpop.xlane.xlu0 %925
    %v927 = vrcp.pop %v917
    %v928 = vrcp.pop %v920
    %v929 = vrcp.pop %v923
    %v930 = vrcp.pop %v926
    %v931 = vmul.f32 %v908, %v927
    %v932 = vmul.f32 %v910, %v928
    %v933 = vmul.f32 %v912, %v929
    %v934 = vmul.f32 %v914, %v930
    %v935 = vpack.c.bf16 %v931, %v931
    %v936 = vpack.c.bf16 %v932, %v932
    %v937 = vpack.c.bf16 %v933, %v933
    %v938 = vpack.c.bf16 %v934, %v934
    %939 = vrot.lane.b32.xlu0 %v683, 64
    %v940 = vpop.permute.xlu0 %939
    %v942 = vsel %vm211, %v935, 0
    %v945 = vsel %vm468, %v940, 0
    %947 = vmatprep.subr.bf16.mxu0 0
    %948 = vmatpush1.bf16.msra.mxu0 %v945
    %949 = vmatprep.subr.bf16.mxu0 0
    %950 = vmatpush1.bf16.msra.mxu0 0
    %951 = vmatprep.subr.bf16.mxu0 0
    %952 = vmatpush1.bf16.msra.mxu0 0
    %953 = vmatprep.subr.bf16.mxu0 0
    %954 = vmatpush1.bf16.msra.mxu0 0
    %955 = vmatprep.subr.bf16.mxu0 0
    %956 = vmatpush1.bf16.msra.mxu0 0
    %957 = vmatprep.subr.bf16.mxu0 0
    %958 = vmatpush1.bf16.msra.mxu0 0
    %959 = vmatprep.subr.bf16.mxu0 0
    %960 = vmatpush1.bf16.msra.mxu0 0
    %961 = vmatprep.subr.bf16.mxu0 0
    %962 = vmatpush1.bf16.msra.mxu0 0
    %963 = vmatprep.subr.bf16.mxu0 0
    %964 = vmatpush1.bf16.msra.mxu0 0
    %965 = vmatprep.subr.bf16.mxu0 0
    %966 = vmatpush1.bf16.msra.mxu0 0
    %967 = vmatprep.subr.bf16.mxu0 0
    %968 = vmatpush1.bf16.msra.mxu0 0
    %969 = vmatprep.subr.bf16.mxu0 0
    %970 = vmatpush1.bf16.msra.mxu0 0
    %971 = vmatprep.subr.bf16.mxu0 0
    %972 = vmatpush1.bf16.msra.mxu0 0
    %973 = vmatprep.subr.bf16.mxu0 0
    %974 = vmatpush1.bf16.msra.mxu0 0
    %975 = vmatprep.subr.bf16.mxu0 0
    %976 = vmatpush1.bf16.msra.mxu0 0
    %977 = vmatprep.subr.bf16.mxu0 0
    %978 = vmatpush1.bf16.msra.mxu0 0
    %979 = vmatprep.mubr.bf16.mxu0 0
    %980 = vmatmul.mubr.bf16.gmra.mrb[0].mxu0 %v942
    %v981 = vpop.f32.mrb[0].mxu0
    %v982 = vadd.f32 0.0, %v981
    %v983 = vpop.f32.mrb[0].mxu0
    %v984 = vpop.f32.mrb[0].mxu0
    %v985 = vpop.f32.mrb[0].mxu0
    %986 = vdwg.mxu0
    %987 = vrot.lane.b32.xlu0 %v684, 64
    %v988 = vpop.permute.xlu0 %987
    %v990 = vsel %vm211, %v936, 0
    %v993 = vsel %vm468, %v988, 0
    %995 = vmatprep.subr.bf16.mxu0 0
    %996 = vmatpush1.bf16.msra.mxu0 %v993
    %997 = vmatprep.subr.bf16.mxu0 0
    %998 = vmatpush1.bf16.msra.mxu0 0
    %999 = vmatprep.subr.bf16.mxu0 0
    %1000 = vmatpush1.bf16.msra.mxu0 0
    %1001 = vmatprep.subr.bf16.mxu0 0
    %1002 = vmatpush1.bf16.msra.mxu0 0
    %1003 = vmatprep.subr.bf16.mxu0 0
    %1004 = vmatpush1.bf16.msra.mxu0 0
    %1005 = vmatprep.subr.bf16.mxu0 0
    %1006 = vmatpush1.bf16.msra.mxu0 0
    %1007 = vmatprep.subr.bf16.mxu0 0
    %1008 = vmatpush1.bf16.msra.mxu0 0
    %1009 = vmatprep.subr.bf16.mxu0 0
    %1010 = vmatpush1.bf16.msra.mxu0 0
    %1011 = vmatprep.subr.bf16.mxu0 0
    %1012 = vmatpush1.bf16.msra.mxu0 0
    %1013 = vmatprep.subr.bf16.mxu0 0
    %1014 = vmatpush1.bf16.msra.mxu0 0
    %1015 = vmatprep.subr.bf16.mxu0 0
    %1016 = vmatpush1.bf16.msra.mxu0 0
    %1017 = vmatprep.subr.bf16.mxu0 0
    %1018 = vmatpush1.bf16.msra.mxu0 0
    %1019 = vmatprep.subr.bf16.mxu0 0
    %1020 = vmatpush1.bf16.msra.mxu0 0
    %1021 = vmatprep.subr.bf16.mxu0 0
    %1022 = vmatpush1.bf16.msra.mxu0 0
    %1023 = vmatprep.subr.bf16.mxu0 0
    %1024 = vmatpush1.bf16.msra.mxu0 0
    %1025 = vmatprep.subr.bf16.mxu0 0
    %1026 = vmatpush1.bf16.msra.mxu0 0
    %1027 = vmatprep.mubr.bf16.mxu0 0
    %1028 = vmatmul.mubr.bf16.gmra.mrb[0].mxu0 %v990
    %v1029 = vpop.f32.mrb[0].mxu0
    %v1030 = vadd.f32 0.0, %v1029
    %v1031 = vpop.f32.mrb[0].mxu0
    %v1032 = vpop.f32.mrb[0].mxu0
    %v1033 = vpop.f32.mrb[0].mxu0
    %1034 = vdwg.mxu0
    %1035 = vrot.lane.b32.xlu0 %v685, 64
    %v1036 = vpop.permute.xlu0 %1035
    %v1038 = vsel %vm211, %v937, 0
    %v1041 = vsel %vm468, %v1036, 0
    %1043 = vmatprep.subr.bf16.mxu0 0
    %1044 = vmatpush1.bf16.msra.mxu0 %v1041
    %1045 = vmatprep.subr.bf16.mxu0 0
    %1046 = vmatpush1.bf16.msra.mxu0 0
    %1047 = vmatprep.subr.bf16.mxu0 0
    %1048 = vmatpush1.bf16.msra.mxu0 0
    %1049 = vmatprep.subr.bf16.mxu0 0
    %1050 = vmatpush1.bf16.msra.mxu0 0
    %1051 = vmatprep.subr.bf16.mxu0 0
    %1052 = vmatpush1.bf16.msra.mxu0 0
    %1053 = vmatprep.subr.bf16.mxu0 0
    %1054 = vmatpush1.bf16.msra.mxu0 0
    %1055 = vmatprep.subr.bf16.mxu0 0
    %1056 = vmatpush1.bf16.msra.mxu0 0
    %1057 = vmatprep.subr.bf16.mxu0 0
    %1058 = vmatpush1.bf16.msra.mxu0 0
    %1059 = vmatprep.subr.bf16.mxu0 0
    %1060 = vmatpush1.bf16.msra.mxu0 0
    %1061 = vmatprep.subr.bf16.mxu0 0
    %1062 = vmatpush1.bf16.msra.mxu0 0
    %1063 = vmatprep.subr.bf16.mxu0 0
    %1064 = vmatpush1.bf16.msra.mxu0 0
    %1065 = vmatprep.subr.bf16.mxu0 0
    %1066 = vmatpush1.bf16.msra.mxu0 0
    %1067 = vmatprep.subr.bf16.mxu0 0
    %1068 = vmatpush1.bf16.msra.mxu0 0
    %1069 = vmatprep.subr.bf16.mxu0 0
    %1070 = vmatpush1.bf16.msra.mxu0 0
    %1071 = vmatprep.subr.bf16.mxu0 0
    %1072 = vmatpush1.bf16.msra.mxu0 0
    %1073 = vmatprep.subr.bf16.mxu0 0
    %1074 = vmatpush1.bf16.msra.mxu0 0
    %1075 = vmatprep.mubr.bf16.mxu0 0
    %1076 = vmatmul.mubr.bf16.gmra.mrb[0].mxu0 %v1038
    %v1077 = vpop.f32.mrb[0].mxu0
    %v1078 = vadd.f32 0.0, %v1077
    %v1079 = vpop.f32.mrb[0].mxu0
    %v1080 = vpop.f32.mrb[0].mxu0
    %v1081 = vpop.f32.mrb[0].mxu0
    %1082 = vdwg.mxu0
    %1083 = vrot.lane.b32.xlu0 %v686, 64
    %v1084 = vpop.permute.xlu0 %1083
    %v1086 = vsel %vm211, %v938, 0
    %v1089 = vsel %vm468, %v1084, 0
    %1091 = vmatprep.subr.bf16.mxu0 0
    %1092 = vmatpush1.bf16.msra.mxu0 %v1089
    %1093 = vmatprep.subr.bf16.mxu0 0
    %1094 = vmatpush1.bf16.msra.mxu0 0
    %1095 = vmatprep.subr.bf16.mxu0 0
    %1096 = vmatpush1.bf16.msra.mxu0 0
    %1097 = vmatprep.subr.bf16.mxu0 0
    %1098 = vmatpush1.bf16.msra.mxu0 0
    %1099 = vmatprep.subr.bf16.mxu0 0
    %1100 = vmatpush1.bf16.msra.mxu0 0
    %1101 = vmatprep.subr.bf16.mxu0 0
    %1102 = vmatpush1.bf16.msra.mxu0 0
    %1103 = vmatprep.subr.bf16.mxu0 0
    %1104 = vmatpush1.bf16.msra.mxu0 0
    %1105 = vmatprep.subr.bf16.mxu0 0
    %1106 = vmatpush1.bf16.msra.mxu0 0
    %1107 = vmatprep.subr.bf16.mxu0 0
    %1108 = vmatpush1.bf16.msra.mxu0 0
    %1109 = vmatprep.subr.bf16.mxu0 0
    %1110 = vmatpush1.bf16.msra.mxu0 0
    %1111 = vmatprep.subr.bf16.mxu0 0
    %1112 = vmatpush1.bf16.msra.mxu0 0
    %1113 = vmatprep.subr.bf16.mxu0 0
    %1114 = vmatpush1.bf16.msra.mxu0 0
    %1115 = vmatprep.subr.bf16.mxu0 0
    %1116 = vmatpush1.bf16.msra.mxu0 0
    %1117 = vmatprep.subr.bf16.mxu0 0
    %1118 = vmatpush1.bf16.msra.mxu0 0
    %1119 = vmatprep.subr.bf16.mxu0 0
    %1120 = vmatpush1.bf16.msra.mxu0 0
    %1121 = vmatprep.subr.bf16.mxu0 0
    %1122 = vmatpush1.bf16.msra.mxu0 0
    %1123 = vmatprep.mubr.bf16.mxu0 0
    %1124 = vmatmul.mubr.bf16.gmra.mrb[0].mxu0 %v1086
    %v1125 = vpop.f32.mrb[0].mxu0
    %v1126 = vadd.f32 0.0, %v1125
    %v1127 = vpop.f32.mrb[0].mxu0
    %v1128 = vpop.f32.mrb[0].mxu0
    %v1129 = vpop.f32.mrb[0].mxu0
    %1130 = vdwg.mxu0
    %1132 = vrot.lane.b32.xlu0 %v1030, 8
    %v1133 = vpop.permute.xlu0 %1132
    %1136 = vrot.lane.b32.xlu0 %v1078, 16
    %v1137 = vpop.permute.xlu0 %1136
    %1140 = vrot.lane.b32.xlu0 %v1126, 24
    %v1141 = vpop.permute.xlu0 %1140
    %v1143 = vsel %vm211, %v982, %v1133
    %v1144 = vsel %vm669, %v1143, %v1137
    %v1145 = vsel %vm671, %v1144, %v1141
    %v1146 = vpack.c.bf16 %v1145, %v672
    %v1147 = vld [vmem:[%s4] sm:$0xf]
    %v1148 = vld [vmem:[%s4 + $0x4] sm:$0xf]
    %v1149 = vld [vmem:[%s4 + $0x8] sm:$0xf]
    %v1150 = vld [vmem:[%s4 + $0xc] sm:$0xf]
    %v1155 = vunpack.c.l.b16 %v1147
    %v1156 = vunpack.c.l.b16 %v1148
    %v1157 = vunpack.c.l.b16 %v1149
    %v1158 = vunpack.c.l.b16 %v1150
    %v1159 = vpack.c.b16 %v1156, %v1155
    %v1160 = vpack.c.b16 %v1158, %v1157
    %v1164 = vsel %vm144, %v1146, 0
    %1166 = vmatprep.subr.bf16.mxu0 0
    %1167 = vmatpush1.bf16.msra.mxu0 %v1159
    %1168 = vmatprep.subr.bf16.mxu0 0
    %1169 = vmatpush1.bf16.msra.mxu0 %v1160
    %1170 = vmatprep.subr.bf16.mxu0 0
    %1171 = vmatpush1.bf16.msra.mxu0 0
    %1172 = vmatprep.subr.bf16.mxu0 0
    %1173 = vmatpush1.bf16.msra.mxu0 0
    %1174 = vmatprep.subr.bf16.mxu0 0
    %1175 = vmatpush1.bf16.msra.mxu0 0
    %1176 = vmatprep.subr.bf16.mxu0 0
    %1177 = vmatpush1.bf16.msra.mxu0 0
    %1178 = vmatprep.subr.bf16.mxu0 0
    %1179 = vmatpush1.bf16.msra.mxu0 0
    %1180 = vmatprep.subr.bf16.mxu0 0
    %1181 = vmatpush1.bf16.msra.mxu0 0
    %1182 = vmatprep.subr.bf16.mxu0 0
    %1183 = vmatpush1.bf16.msra.mxu0 0
    %1184 = vmatprep.subr.bf16.mxu0 0
    %1185 = vmatpush1.bf16.msra.mxu0 0
    %1186 = vmatprep.subr.bf16.mxu0 0
    %1187 = vmatpush1.bf16.msra.mxu0 0
    %1188 = vmatprep.subr.bf16.mxu0 0
    %1189 = vmatpush1.bf16.msra.mxu0 0
    %1190 = vmatprep.subr.bf16.mxu0 0
    %1191 = vmatpush1.bf16.msra.mxu0 0
    %1192 = vmatprep.subr.bf16.mxu0 0
    %1193 = vmatpush1.bf16.msra.mxu0 0
    %1194 = vmatprep.subr.bf16.mxu0 0
    %1195 = vmatpush1.bf16.msra.mxu0 0
    %1196 = vmatprep.subr.bf16.mxu0 0
    %1197 = vmatpush1.bf16.msra.mxu0 0
    %1198 = vmatprep.mubr.bf16.mxu0 0
    %1199 = vmatmul.mubr.bf16.gmra.mrb[0].mxu0 %v1164
    %v1200 = vpop.f32.mrb[0].mxu0
    %v1201 = vadd.f32 0.0, %v1200
    %v1202 = vpop.f32.mrb[0].mxu0
    %v1203 = vpop.f32.mrb[0].mxu0
    %v1204 = vadd.f32 0.0, %v1203
    %v1205 = vpop.f32.mrb[0].mxu0
    %1206 = vdwg.mxu0
    %v1207 = vunpack.c.l.bf16 %v119
    %v1208 = vunpack.c.l.bf16 %v120
    %v1209 = vadd.f32 %v1207, %v1201
    %v1210 = vadd.f32 %v1208, %v1204
    %v1211 = vld [vmem:[%s8] sm:$0x1]
    %v1212 = vld [vmem:[%s9] sm:$0x1]
    %v1213 = vsel %vm144, %v1209, 0.0
    %1214 = vadd.xlane.f32.xlu0 %v1213
    %v1215 = vpop.xlane.xlu0 %1214
    %v1216 = vsel %vm144, %v1210, 0.0
    %1217 = vadd.xlane.f32.xlu0 %v1216
    %v1218 = vpop.xlane.xlu0 %1217
    %v1219 = vrcp.pop 32.0
    %v1220 = vmul.f32 %v1215, %v1219
    %v1221 = vmul.f32 %v1218, %v1219
    %v1222 = vsub.f32 %v1209, %v1220
    %v1223 = vsub.f32 %v1210, %v1221
    %v1224 = vmul.f32 %v1222, %v1222
    %v1225 = vmul.f32 %v1223, %v1223
    %v1226 = vsel %vm144, %v1224, 0.0
    %1227 = vadd.xlane.f32.xlu0 %v1226
    %v1228 = vpop.xlane.xlu0 %1227
    %v1229 = vsel %vm144, %v1225, 0.0
    %1230 = vadd.xlane.f32.xlu0 %v1229
    %v1231 = vpop.xlane.xlu0 %1230
    %v1232 = vmul.f32 %v1228, %v1219
    %v1233 = vmul.f32 %v1231, %v1219
    %v1234 = vadd.f32 %v1232, 1e-05
    %v1235 = vadd.f32 %v1233, 1e-05
    %v1236 = vrsqrt.pop %v1234
    %v1237 = vrsqrt.pop %v1235
    %v1238 = vmul.f32 %v1222, %v1236
    %v1239 = vmul.f32 %v1223, %v1237
    %v1241 = vlaneseq
    %v1242 = vshrl.u32 %v1241, 7
    %v1243 = vsub.s32 0, %v1242
    %v1244 = vrot.slane %v1211, %v1243
    %v1246 = vmul.f32 %v1238, %v1244
    %v1247 = vmul.f32 %v1239, %v1244
    %v1249 = vlaneseq
    %v1250 = vshrl.u32 %v1249, 7
    %v1251 = vsub.s32 0, %v1250
    %v1252 = vrot.slane %v1212, %v1251
    %v1254 = vadd.f32 %v1246, %v1252
    %v1255 = vadd.f32 %v1247, %v1252
    %v1256 = vpack.c.bf16 %v1255, %v1254
    %v1257 = vld [vmem:[%s5] sm:$0xf]
    %v1258 = vld [vmem:[%s5 + $0x4] sm:$0xf]
    %v1259 = vld [vmem:[%s5 + $0x8] sm:$0xf]
    %v1260 = vld [vmem:[%s5 + $0xc] sm:$0xf]
    %v1265 = vunpack.c.l.b16 %v1257
    %v1266 = vunpack.c.l.b16 %v1258
    %v1267 = vunpack.c.l.b16 %v1259
    %v1268 = vunpack.c.l.b16 %v1260
    %v1269 = vpack.c.b16 %v1266, %v1265
    %v1270 = vpack.c.b16 %v1268, %v1267
    %v1274 = vsel %vm144, %v1256, 0
    %1276 = vmatprep.subr.bf16.mxu0 0
    %1277 = vmatpush1.bf16.msra.mxu0 %v1269
    %1278 = vmatprep.subr.bf16.mxu0 0
    %1279 = vmatpush1.bf16.msra.mxu0 %v1270
    %1280 = vmatprep.subr.bf16.mxu0 0
    %1281 = vmatpush1.bf16.msra.mxu0 0
    %1282 = vmatprep.subr.bf16.mxu0 0
    %1283 = vmatpush1.bf16.msra.mxu0 0
    %1284 = vmatprep.subr.bf16.mxu0 0
    %1285 = vmatpush1.bf16.msra.mxu0 0
    %1286 = vmatprep.subr.bf16.mxu0 0
    %1287 = vmatpush1.bf16.msra.mxu0 0
    %1288 = vmatprep.subr.bf16.mxu0 0
    %1289 = vmatpush1.bf16.msra.mxu0 0
    %1290 = vmatprep.subr.bf16.mxu0 0
    %1291 = vmatpush1.bf16.msra.mxu0 0
    %1292 = vmatprep.subr.bf16.mxu0 0
    %1293 = vmatpush1.bf16.msra.mxu0 0
    %1294 = vmatprep.subr.bf16.mxu0 0
    %1295 = vmatpush1.bf16.msra.mxu0 0
    %1296 = vmatprep.subr.bf16.mxu0 0
    %1297 = vmatpush1.bf16.msra.mxu0 0
    %1298 = vmatprep.subr.bf16.mxu0 0
    %1299 = vmatpush1.bf16.msra.mxu0 0
    %1300 = vmatprep.subr.bf16.mxu0 0
    %1301 = vmatpush1.bf16.msra.mxu0 0
    %1302 = vmatprep.subr.bf16.mxu0 0
    %1303 = vmatpush1.bf16.msra.mxu0 0
    %1304 = vmatprep.subr.bf16.mxu0 0
    %1305 = vmatpush1.bf16.msra.mxu0 0
    %1306 = vmatprep.subr.bf16.mxu0 0
    %1307 = vmatpush1.bf16.msra.mxu0 0
    %1308 = vmatprep.mubr.bf16.mxu0 0
    %1309 = vmatmul.mubr.bf16.gmra.mrb[0].mxu0 %v1274
    %v1310 = vpop.f32.mrb[0].mxu0
    %v1311 = vadd.f32 0.0, %v1310
    %v1312 = vpop.f32.mrb[0].mxu0
    %v1313 = vpop.f32.mrb[0].mxu0
    %v1314 = vadd.f32 0.0, %v1313
    %v1315 = vpop.f32.mrb[0].mxu0
    %1316 = vdwg.mxu0
    %v1317 = vld [vmem:[#allocation9] sm:$0xf]
    %v1318 = vld [vmem:[#allocation9 + $0x4] sm:$0xf]
    %v1319 = vld [vmem:[#allocation9 + $0x8] sm:$0xf]
    %v1320 = vld [vmem:[#allocation9 + $0xc] sm:$0xf]
    %v1323 = vunpack.c.l.b16 %v121
    %v1324 = vunpack.c.l.b16 %v122
    %v1325 = vpack.c.b16 %v1324, %v1323
    %v1330 = vunpack.c.l.b16 %v1317
    %v1331 = vunpack.c.l.b16 %v1318
    %v1332 = vunpack.c.l.b16 %v1319
    %v1333 = vunpack.c.l.b16 %v1320
    %v1334 = vpack.c.b16 %v1331, %v1330
    %v1335 = vpack.c.b16 %v1333, %v1332
    %v1339 = vsel %vm144, %v1325, 0
    %1341 = vmatprep.subr.bf16.mxu0 0
    %1342 = vmatpush1.bf16.msra.mxu0 %v1334
    %1343 = vmatprep.subr.bf16.mxu0 0
    %1344 = vmatpush1.bf16.msra.mxu0 %v1335
    %1345 = vmatprep.subr.bf16.mxu0 0
    %1346 = vmatpush1.bf16.msra.mxu0 0
    %1347 = vmatprep.subr.bf16.mxu0 0
    %1348 = vmatpush1.bf16.msra.mxu0 0
    %1349 = vmatprep.subr.bf16.mxu0 0
    %1350 = vmatpush1.bf16.msra.mxu0 0
    %1351 = vmatprep.subr.bf16.mxu0 0
    %1352 = vmatpush1.bf16.msra.mxu0 0
    %1353 = vmatprep.subr.bf16.mxu0 0
    %1354 = vmatpush1.bf16.msra.mxu0 0
    %1355 = vmatprep.subr.bf16.mxu0 0
    %1356 = vmatpush1.bf16.msra.mxu0 0
    %1357 = vmatprep.subr.bf16.mxu0 0
    %1358 = vmatpush1.bf16.msra.mxu0 0
    %1359 = vmatprep.subr.bf16.mxu0 0
    %1360 = vmatpush1.bf16.msra.mxu0 0
    %1361 = vmatprep.subr.bf16.mxu0 0
    %1362 = vmatpush1.bf16.msra.mxu0 0
    %1363 = vmatprep.subr.bf16.mxu0 0
    %1364 = vmatpush1.bf16.msra.mxu0 0
    %1365 = vmatprep.subr.bf16.mxu0 0
    %1366 = vmatpush1.bf16.msra.mxu0 0
    %1367 = vmatprep.subr.bf16.mxu0 0
    %1368 = vmatpush1.bf16.msra.mxu0 0
    %1369 = vmatprep.subr.bf16.mxu0 0
    %1370 = vmatpush1.bf16.msra.mxu0 0
    %1371 = vmatprep.subr.bf16.mxu0 0
    %1372 = vmatpush1.bf16.msra.mxu0 0
    %1373 = vmatprep.mubr.bf16.mxu0 0
    %1374 = vmatmul.mubr.bf16.gmra.mrb[0].mxu0 %v1339
    %v1375 = vpop.f32.mrb[0].mxu0
    %v1376 = vadd.f32 0.0, %v1375
    %v1377 = vpop.f32.mrb[0].mxu0
    %v1378 = vpop.f32.mrb[0].mxu0
    %v1379 = vadd.f32 0.0, %v1378
    %v1380 = vpop.f32.mrb[0].mxu0
    %1381 = vdwg.mxu0
    %s1382 = sld [smem:[#allocation3 + %s118]]
    %v1383 = vstv %s1382
    %vm1384 = vcmp.lt.s32.totalorder %v192, %v1383
    %1386 = vrot.lane.b32.xlu0 %v1311, 120
    %v1387 = vpop.permute.xlu0 %1386
    %1389 = vrot.lane.b32.xlu0 %v1311, 112
    %v1390 = vpop.permute.xlu0 %1389
    %1392 = vrot.lane.b32.xlu0 %v1311, 104
    %v1393 = vpop.permute.xlu0 %1392
    %1396 = vrot.lane.b32.xlu0 %v1376, 120
    %v1397 = vpop.permute.xlu0 %1396
    %1399 = vrot.lane.b32.xlu0 %v1376, 112
    %v1400 = vpop.permute.xlu0 %1399
    %1402 = vrot.lane.b32.xlu0 %v1376, 104
    %v1403 = vpop.permute.xlu0 %1402
    %v1405 = vpack.c.bf16 %v1311, %v1311
    %v1406 = vpack.c.bf16 %v1387, %v1387
    %v1407 = vpack.c.bf16 %v1390, %v1390
    %v1408 = vpack.c.bf16 %v1393, %v1393
    %v1409 = vpack.c.bf16 %v1376, %v1376
    %v1410 = vpack.c.bf16 %v1397, %v1397
    %v1411 = vpack.c.bf16 %v1400, %v1400
    %v1412 = vpack.c.bf16 %v1403, %v1403
    %v1414 = vsel %vm211, %v1405, 0
    %v1417 = vsel %vm211, %v1409, 0
    %1419 = vmatprep.subr.bf16.mxu0 0
    %1420 = vmatpush1.bf16.xpose.msra.mxu0 %v1417
    %1421 = vmatprep.subr.bf16.mxu0 0
    %1422 = vmatpush1.bf16.xpose.msra.mxu0 0
    %1423 = vmatprep.subr.bf16.mxu0 0
    %1424 = vmatpush1.bf16.xpose.msra.mxu0 0
    %1425 = vmatprep.subr.bf16.mxu0 0
    %1426 = vmatpush1.bf16.xpose.msra.mxu0 0
    %1427 = vmatprep.subr.bf16.mxu0 0
    %1428 = vmatpush1.bf16.xpose.msra.mxu0 0
    %1429 = vmatprep.subr.bf16.mxu0 0
    %1430 = vmatpush1.bf16.xpose.msra.mxu0 0
    %1431 = vmatprep.subr.bf16.mxu0 0
    %1432 = vmatpush1.bf16.xpose.msra.mxu0 0
    %1433 = vmatprep.subr.bf16.mxu0 0
    %1434 = vmatpush1.bf16.xpose.msra.mxu0 0
    %1435 = vmatprep.subr.bf16.mxu0 0
    %1436 = vmatpush1.bf16.xpose.msra.mxu0 0
    %1437 = vmatprep.subr.bf16.mxu0 0
    %1438 = vmatpush1.bf16.xpose.msra.mxu0 0
    %1439 = vmatprep.subr.bf16.mxu0 0
    %1440 = vmatpush1.bf16.xpose.msra.mxu0 0
    %1441 = vmatprep.subr.bf16.mxu0 0
    %1442 = vmatpush1.bf16.xpose.msra.mxu0 0
    %1443 = vmatprep.subr.bf16.mxu0 0
    %1444 = vmatpush1.bf16.xpose.msra.mxu0 0
    %1445 = vmatprep.subr.bf16.mxu0 0
    %1446 = vmatpush1.bf16.xpose.msra.mxu0 0
    %1447 = vmatprep.subr.bf16.mxu0 0
    %1448 = vmatpush1.bf16.xpose.msra.mxu0 0
    %1449 = vmatprep.subr.bf16.mxu0 0
    %1450 = vmatpush1.bf16.xpose.msra.mxu0 0
    %1451 = vmatprep.mubr.bf16.mxu0 0
    %1452 = vmatmul.mubr.bf16.gmra.mrb[0].mxu0 %v1414
    %v1453 = vpop.f32.mrb[0].mxu0
    %v1454 = vadd.f32 0.0, %v1453
    %v1455 = vpop.f32.mrb[0].mxu0
    %v1456 = vpop.f32.mrb[0].mxu0
    %v1457 = vpop.f32.mrb[0].mxu0
    %1458 = vdwg.mxu0
    %v1460 = vsel %vm211, %v1406, 0
    %v1463 = vsel %vm211, %v1410, 0
    %1465 = vmatprep.subr.bf16.mxu0 0
    %1466 = vmatpush1.bf16.xpose.msra.mxu0 %v1463
    %1467 = vmatprep.subr.bf16.mxu0 0
    %1468 = vmatpush1.bf16.xpose.msra.mxu0 0
    %1469 = vmatprep.subr.bf16.mxu0 0
    %1470 = vmatpush1.bf16.xpose.msra.mxu0 0
    %1471 = vmatprep.subr.bf16.mxu0 0
    %1472 = vmatpush1.bf16.xpose.msra.mxu0 0
    %1473 = vmatprep.subr.bf16.mxu0 0
    %1474 = vmatpush1.bf16.xpose.msra.mxu0 0
    %1475 = vmatprep.subr.bf16.mxu0 0
    %1476 = vmatpush1.bf16.xpose.msra.mxu0 0
    %1477 = vmatprep.subr.bf16.mxu0 0
    %1478 = vmatpush1.bf16.xpose.msra.mxu0 0
    %1479 = vmatprep.subr.bf16.mxu0 0
    %1480 = vmatpush1.bf16.xpose.msra.mxu0 0
    %1481 = vmatprep.subr.bf16.mxu0 0
    %1482 = vmatpush1.bf16.xpose.msra.mxu0 0
    %1483 = vmatprep.subr.bf16.mxu0 0
    %1484 = vmatpush1.bf16.xpose.msra.mxu0 0
    %1485 = vmatprep.subr.bf16.mxu0 0
    %1486 = vmatpush1.bf16.xpose.msra.mxu0 0
    %1487 = vmatprep.subr.bf16.mxu0 0
    %1488 = vmatpush1.bf16.xpose.msra.mxu0 0
    %1489 = vmatprep.subr.bf16.mxu0 0
    %1490 = vmatpush1.bf16.xpose.msra.mxu0 0
    %1491 = vmatprep.subr.bf16.mxu0 0
    %1492 = vmatpush1.bf16.xpose.msra.mxu0 0
    %1493 = vmatprep.subr.bf16.mxu0 0
    %1494 = vmatpush1.bf16.xpose.msra.mxu0 0
    %1495 = vmatprep.subr.bf16.mxu0 0
    %1496 = vmatpush1.bf16.xpose.msra.mxu0 0
    %1497 = vmatprep.mubr.bf16.mxu0 0
    %1498 = vmatmul.mubr.bf16.gmra.mrb[0].mxu0 %v1460
    %v1499 = vpop.f32.mrb[0].mxu0
    %v1500 = vadd.f32 0.0, %v1499
    %v1501 = vpop.f32.mrb[0].mxu0
    %v1502 = vpop.f32.mrb[0].mxu0
    %v1503 = vpop.f32.mrb[0].mxu0
    %1504 = vdwg.mxu0
    %v1506 = vsel %vm211, %v1407, 0
    %v1509 = vsel %vm211, %v1411, 0
    %1511 = vmatprep.subr.bf16.mxu0 0
    %1512 = vmatpush1.bf16.xpose.msra.mxu0 %v1509
    %1513 = vmatprep.subr.bf16.mxu0 0
    %1514 = vmatpush1.bf16.xpose.msra.mxu0 0
    %1515 = vmatprep.subr.bf16.mxu0 0
    %1516 = vmatpush1.bf16.xpose.msra.mxu0 0
    %1517 = vmatprep.subr.bf16.mxu0 0
    %1518 = vmatpush1.bf16.xpose.msra.mxu0 0
    %1519 = vmatprep.subr.bf16.mxu0 0
    %1520 = vmatpush1.bf16.xpose.msra.mxu0 0
    %1521 = vmatprep.subr.bf16.mxu0 0
    %1522 = vmatpush1.bf16.xpose.msra.mxu0 0
    %1523 = vmatprep.subr.bf16.mxu0 0
    %1524 = vmatpush1.bf16.xpose.msra.mxu0 0
    %1525 = vmatprep.subr.bf16.mxu0 0
    %1526 = vmatpush1.bf16.xpose.msra.mxu0 0
    %1527 = vmatprep.subr.bf16.mxu0 0
    %1528 = vmatpush1.bf16.xpose.msra.mxu0 0
    %1529 = vmatprep.subr.bf16.mxu0 0
    %1530 = vmatpush1.bf16.xpose.msra.mxu0 0
    %1531 = vmatprep.subr.bf16.mxu0 0
    %1532 = vmatpush1.bf16.xpose.msra.mxu0 0
    %1533 = vmatprep.subr.bf16.mxu0 0
    %1534 = vmatpush1.bf16.xpose.msra.mxu0 0
    %1535 = vmatprep.subr.bf16.mxu0 0
    %1536 = vmatpush1.bf16.xpose.msra.mxu0 0
    %1537 = vmatprep.subr.bf16.mxu0 0
    %1538 = vmatpush1.bf16.xpose.msra.mxu0 0
    %1539 = vmatprep.subr.bf16.mxu0 0
    %1540 = vmatpush1.bf16.xpose.msra.mxu0 0
    %1541 = vmatprep.subr.bf16.mxu0 0
    %1542 = vmatpush1.bf16.xpose.msra.mxu0 0
    %1543 = vmatprep.mubr.bf16.mxu0 0
    %1544 = vmatmul.mubr.bf16.gmra.mrb[0].mxu0 %v1506
    %v1545 = vpop.f32.mrb[0].mxu0
    %v1546 = vadd.f32 0.0, %v1545
    %v1547 = vpop.f32.mrb[0].mxu0
    %v1548 = vpop.f32.mrb[0].mxu0
    %v1549 = vpop.f32.mrb[0].mxu0
    %1550 = vdwg.mxu0
    %v1552 = vsel %vm211, %v1408, 0
    %v1555 = vsel %vm211, %v1412, 0
    %1557 = vmatprep.subr.bf16.mxu0 0
    %1558 = vmatpush1.bf16.xpose.msra.mxu0 %v1555
    %1559 = vmatprep.subr.bf16.mxu0 0
    %1560 = vmatpush1.bf16.xpose.msra.mxu0 0
    %1561 = vmatprep.subr.bf16.mxu0 0
    %1562 = vmatpush1.bf16.xpose.msra.mxu0 0
    %1563 = vmatprep.subr.bf16.mxu0 0
    %1564 = vmatpush1.bf16.xpose.msra.mxu0 0
    %1565 = vmatprep.subr.bf16.mxu0 0
    %1566 = vmatpush1.bf16.xpose.msra.mxu0 0
    %1567 = vmatprep.subr.bf16.mxu0 0
    %1568 = vmatpush1.bf16.xpose.msra.mxu0 0
    %1569 = vmatprep.subr.bf16.mxu0 0
    %1570 = vmatpush1.bf16.xpose.msra.mxu0 0
    %1571 = vmatprep.subr.bf16.mxu0 0
    %1572 = vmatpush1.bf16.xpose.msra.mxu0 0
    %1573 = vmatprep.subr.bf16.mxu0 0
    %1574 = vmatpush1.bf16.xpose.msra.mxu0 0
    %1575 = vmatprep.subr.bf16.mxu0 0
    %1576 = vmatpush1.bf16.xpose.msra.mxu0 0
    %1577 = vmatprep.subr.bf16.mxu0 0
    %1578 = vmatpush1.bf16.xpose.msra.mxu0 0
    %1579 = vmatprep.subr.bf16.mxu0 0
    %1580 = vmatpush1.bf16.xpose.msra.mxu0 0
    %1581 = vmatprep.subr.bf16.mxu0 0
    %1582 = vmatpush1.bf16.xpose.msra.mxu0 0
    %1583 = vmatprep.subr.bf16.mxu0 0
    %1584 = vmatpush1.bf16.xpose.msra.mxu0 0
    %1585 = vmatprep.subr.bf16.mxu0 0
    %1586 = vmatpush1.bf16.xpose.msra.mxu0 0
    %1587 = vmatprep.subr.bf16.mxu0 0
    %1588 = vmatpush1.bf16.xpose.msra.mxu0 0
    %1589 = vmatprep.mubr.bf16.mxu0 0
    %1590 = vmatmul.mubr.bf16.gmra.mrb[0].mxu0 %v1552
    %v1591 = vpop.f32.mrb[0].mxu0
    %v1592 = vadd.f32 0.0, %v1591
    %v1593 = vpop.f32.mrb[0].mxu0
    %v1594 = vpop.f32.mrb[0].mxu0
    %v1595 = vpop.f32.mrb[0].mxu0
    %1596 = vdwg.mxu0
    %v1597 = vmul.f32 %v1454, 0.35355338
    %v1598 = vmul.f32 %v1500, 0.35355338
    %v1599 = vmul.f32 %v1546, 0.35355338
    %v1600 = vmul.f32 %v1592, 0.35355338
    %v1601 = vsel %vm1384, 1, 0
    %vm1602 = vcmp.eq.s32.totalorder %v1601, 1
    %v1603 = vsel %vm1602, %v1597, -1000000.0
    %v1604 = vsel %vm1602, %v1598, -1000000.0
    %v1605 = vsel %vm1602, %v1599, -1000000.0
    %v1606 = vsel %vm1602, %v1600, -1000000.0
    %v1607 = vsel %vm211, %v1603, -inf
    %1608 = vmax.xlane.f32.xlu0 %v1607
    %v1609 = vpop.xlane.xlu0 %1608
    %v1610 = vsel %vm211, %v1604, -inf
    %1611 = vmax.xlane.f32.xlu0 %v1610
    %v1612 = vpop.xlane.xlu0 %1611
    %v1613 = vsel %vm211, %v1605, -inf
    %1614 = vmax.xlane.f32.xlu0 %v1613
    %v1615 = vpop.xlane.xlu0 %1614
    %v1616 = vsel %vm211, %v1606, -inf
    %1617 = vmax.xlane.f32.xlu0 %v1616
    %v1618 = vpop.xlane.xlu0 %1617
    %v1619 = vsub.f32 %v1603, %v1609
    %v1620 = vsub.f32 %v1604, %v1612
    %v1621 = vsub.f32 %v1605, %v1615
    %v1622 = vsub.f32 %v1606, %v1618
    %v1623 = vmul.f32 %v1619, 1.442695
    %v1624 = vpow.pop %v1623
    %v1625 = vmul.f32 %v1620, 1.442695
    %v1626 = vpow.pop %v1625
    %v1627 = vmul.f32 %v1621, 1.442695
    %v1628 = vpow.pop %v1627
    %v1629 = vmul.f32 %v1622, 1.442695
    %v1630 = vpow.pop %v1629
    %v1631 = vsel %vm211, %v1624, 0.0
    %1632 = vadd.xlane.f32.xlu0 %v1631
    %v1633 = vpop.xlane.xlu0 %1632
    %v1634 = vsel %vm211, %v1626, 0.0
    %1635 = vadd.xlane.f32.xlu0 %v1634
    %v1636 = vpop.xlane.xlu0 %1635
    %v1637 = vsel %vm211, %v1628, 0.0
    %1638 = vadd.xlane.f32.xlu0 %v1637
    %v1639 = vpop.xlane.xlu0 %1638
    %v1640 = vsel %vm211, %v1630, 0.0
    %1641 = vadd.xlane.f32.xlu0 %v1640
    %v1642 = vpop.xlane.xlu0 %1641
    %v1643 = vrcp.pop %v1633
    %v1644 = vrcp.pop %v1636
    %v1645 = vrcp.pop %v1639
    %v1646 = vrcp.pop %v1642
    %v1647 = vmul.f32 %v1624, %v1643
    %v1648 = vmul.f32 %v1626, %v1644
    %v1649 = vmul.f32 %v1628, %v1645
    %v1650 = vmul.f32 %v1630, %v1646
    %v1651 = vpack.c.bf16 %v1647, %v1647
    %v1652 = vpack.c.bf16 %v1648, %v1648
    %v1653 = vpack.c.bf16 %v1649, %v1649
    %v1654 = vpack.c.bf16 %v1650, %v1650
    %1656 = vrot.lane.b32.xlu0 %v1409, 96
    %v1657 = vpop.permute.xlu0 %1656
    %v1659 = vsel %vm211, %v1651, 0
    %v1662 = vsel %vm468, %v1657, 0
    %1664 = vmatprep.subr.bf16.mxu0 0
    %1665 = vmatpush1.bf16.msra.mxu0 %v1662
    %1666 = vmatprep.subr.bf16.mxu0 0
    %1667 = vmatpush1.bf16.msra.mxu0 0
    %1668 = vmatprep.subr.bf16.mxu0 0
    %1669 = vmatpush1.bf16.msra.mxu0 0
    %1670 = vmatprep.subr.bf16.mxu0 0
    %1671 = vmatpush1.bf16.msra.mxu0 0
    %1672 = vmatprep.subr.bf16.mxu0 0
    %1673 = vmatpush1.bf16.msra.mxu0 0
    %1674 = vmatprep.subr.bf16.mxu0 0
    %1675 = vmatpush1.bf16.msra.mxu0 0
    %1676 = vmatprep.subr.bf16.mxu0 0
    %1677 = vmatpush1.bf16.msra.mxu0 0
    %1678 = vmatprep.subr.bf16.mxu0 0
    %1679 = vmatpush1.bf16.msra.mxu0 0
    %1680 = vmatprep.subr.bf16.mxu0 0
    %1681 = vmatpush1.bf16.msra.mxu0 0
    %1682 = vmatprep.subr.bf16.mxu0 0
    %1683 = vmatpush1.bf16.msra.mxu0 0
    %1684 = vmatprep.subr.bf16.mxu0 0
    %1685 = vmatpush1.bf16.msra.mxu0 0
    %1686 = vmatprep.subr.bf16.mxu0 0
    %1687 = vmatpush1.bf16.msra.mxu0 0
    %1688 = vmatprep.subr.bf16.mxu0 0
    %1689 = vmatpush1.bf16.msra.mxu0 0
    %1690 = vmatprep.subr.bf16.mxu0 0
    %1691 = vmatpush1.bf16.msra.mxu0 0
    %1692 = vmatprep.subr.bf16.mxu0 0
    %1693 = vmatpush1.bf16.msra.mxu0 0
    %1694 = vmatprep.subr.bf16.mxu0 0
    %1695 = vmatpush1.bf16.msra.mxu0 0
    %1696 = vmatprep.mubr.bf16.mxu0 0
    %1697 = vmatmul.mubr.bf16.gmra.mrb[0].mxu0 %v1659
    %v1698 = vpop.f32.mrb[0].mxu0
    %v1699 = vadd.f32 0.0, %v1698
    %v1700 = vpop.f32.mrb[0].mxu0
    %v1701 = vpop.f32.mrb[0].mxu0
    %v1702 = vpop.f32.mrb[0].mxu0
    %1703 = vdwg.mxu0
    %1705 = vrot.lane.b32.xlu0 %v1410, 96
    %v1706 = vpop.permute.xlu0 %1705
    %v1708 = vsel %vm211, %v1652, 0
    %v1711 = vsel %vm468, %v1706, 0
    %1713 = vmatprep.subr.bf16.mxu0 0
    %1714 = vmatpush1.bf16.msra.mxu0 %v1711
    %1715 = vmatprep.subr.bf16.mxu0 0
    %1716 = vmatpush1.bf16.msra.mxu0 0
    %1717 = vmatprep.subr.bf16.mxu0 0
    %1718 = vmatpush1.bf16.msra.mxu0 0
    %1719 = vmatprep.subr.bf16.mxu0 0
    %1720 = vmatpush1.bf16.msra.mxu0 0
    %1721 = vmatprep.subr.bf16.mxu0 0
    %1722 = vmatpush1.bf16.msra.mxu0 0
    %1723 = vmatprep.subr.bf16.mxu0 0
    %1724 = vmatpush1.bf16.msra.mxu0 0
    %1725 = vmatprep.subr.bf16.mxu0 0
    %1726 = vmatpush1.bf16.msra.mxu0 0
    %1727 = vmatprep.subr.bf16.mxu0 0
    %1728 = vmatpush1.bf16.msra.mxu0 0
    %1729 = vmatprep.subr.bf16.mxu0 0
    %1730 = vmatpush1.bf16.msra.mxu0 0
    %1731 = vmatprep.subr.bf16.mxu0 0
    %1732 = vmatpush1.bf16.msra.mxu0 0
    %1733 = vmatprep.subr.bf16.mxu0 0
    %1734 = vmatpush1.bf16.msra.mxu0 0
    %1735 = vmatprep.subr.bf16.mxu0 0
    %1736 = vmatpush1.bf16.msra.mxu0 0
    %1737 = vmatprep.subr.bf16.mxu0 0
    %1738 = vmatpush1.bf16.msra.mxu0 0
    %1739 = vmatprep.subr.bf16.mxu0 0
    %1740 = vmatpush1.bf16.msra.mxu0 0
    %1741 = vmatprep.subr.bf16.mxu0 0
    %1742 = vmatpush1.bf16.msra.mxu0 0
    %1743 = vmatprep.subr.bf16.mxu0 0
    %1744 = vmatpush1.bf16.msra.mxu0 0
    %1745 = vmatprep.mubr.bf16.mxu0 0
    %1746 = vmatmul.mubr.bf16.gmra.mrb[0].mxu0 %v1708
    %v1747 = vpop.f32.mrb[0].mxu0
    %v1748 = vadd.f32 0.0, %v1747
    %v1749 = vpop.f32.mrb[0].mxu0
    %v1750 = vpop.f32.mrb[0].mxu0
    %v1751 = vpop.f32.mrb[0].mxu0
    %1752 = vdwg.mxu0
    %1754 = vrot.lane.b32.xlu0 %v1411, 96
    %v1755 = vpop.permute.xlu0 %1754
    %v1757 = vsel %vm211, %v1653, 0
    %v1760 = vsel %vm468, %v1755, 0
    %1762 = vmatprep.subr.bf16.mxu0 0
    %1763 = vmatpush1.bf16.msra.mxu0 %v1760
    %1764 = vmatprep.subr.bf16.mxu0 0
    %1765 = vmatpush1.bf16.msra.mxu0 0
    %1766 = vmatprep.subr.bf16.mxu0 0
    %1767 = vmatpush1.bf16.msra.mxu0 0
    %1768 = vmatprep.subr.bf16.mxu0 0
    %1769 = vmatpush1.bf16.msra.mxu0 0
    %1770 = vmatprep.subr.bf16.mxu0 0
    %1771 = vmatpush1.bf16.msra.mxu0 0
    %1772 = vmatprep.subr.bf16.mxu0 0
    %1773 = vmatpush1.bf16.msra.mxu0 0
    %1774 = vmatprep.subr.bf16.mxu0 0
    %1775 = vmatpush1.bf16.msra.mxu0 0
    %1776 = vmatprep.subr.bf16.mxu0 0
    %1777 = vmatpush1.bf16.msra.mxu0 0
    %1778 = vmatprep.subr.bf16.mxu0 0
    %1779 = vmatpush1.bf16.msra.mxu0 0
    %1780 = vmatprep.subr.bf16.mxu0 0
    %1781 = vmatpush1.bf16.msra.mxu0 0
    %1782 = vmatprep.subr.bf16.mxu0 0
    %1783 = vmatpush1.bf16.msra.mxu0 0
    %1784 = vmatprep.subr.bf16.mxu0 0
    %1785 = vmatpush1.bf16.msra.mxu0 0
    %1786 = vmatprep.subr.bf16.mxu0 0
    %1787 = vmatpush1.bf16.msra.mxu0 0
    %1788 = vmatprep.subr.bf16.mxu0 0
    %1789 = vmatpush1.bf16.msra.mxu0 0
    %1790 = vmatprep.subr.bf16.mxu0 0
    %1791 = vmatpush1.bf16.msra.mxu0 0
    %1792 = vmatprep.subr.bf16.mxu0 0
    %1793 = vmatpush1.bf16.msra.mxu0 0
    %1794 = vmatprep.mubr.bf16.mxu0 0
    %1795 = vmatmul.mubr.bf16.gmra.mrb[0].mxu0 %v1757
    %v1796 = vpop.f32.mrb[0].mxu0
    %v1797 = vadd.f32 0.0, %v1796
    %v1798 = vpop.f32.mrb[0].mxu0
    %v1799 = vpop.f32.mrb[0].mxu0
    %v1800 = vpop.f32.mrb[0].mxu0
    %1801 = vdwg.mxu0
    %1803 = vrot.lane.b32.xlu0 %v1412, 96
    %v1804 = vpop.permute.xlu0 %1803
    %v1806 = vsel %vm211, %v1654, 0
    %v1809 = vsel %vm468, %v1804, 0
    %1811 = vmatprep.subr.bf16.mxu0 0
    %1812 = vmatpush1.bf16.msra.mxu0 %v1809
    %1813 = vmatprep.subr.bf16.mxu0 0
    %1814 = vmatpush1.bf16.msra.mxu0 0
    %1815 = vmatprep.subr.bf16.mxu0 0
    %1816 = vmatpush1.bf16.msra.mxu0 0
    %1817 = vmatprep.subr.bf16.mxu0 0
    %1818 = vmatpush1.bf16.msra.mxu0 0
    %1819 = vmatprep.subr.bf16.mxu0 0
    %1820 = vmatpush1.bf16.msra.mxu0 0
    %1821 = vmatprep.subr.bf16.mxu0 0
    %1822 = vmatpush1.bf16.msra.mxu0 0
    %1823 = vmatprep.subr.bf16.mxu0 0
    %1824 = vmatpush1.bf16.msra.mxu0 0
    %1825 = vmatprep.subr.bf16.mxu0 0
    %1826 = vmatpush1.bf16.msra.mxu0 0
    %1827 = vmatprep.subr.bf16.mxu0 0
    %1828 = vmatpush1.bf16.msra.mxu0 0
    %1829 = vmatprep.subr.bf16.mxu0 0
    %1830 = vmatpush1.bf16.msra.mxu0 0
    %1831 = vmatprep.subr.bf16.mxu0 0
    %1832 = vmatpush1.bf16.msra.mxu0 0
    %1833 = vmatprep.subr.bf16.mxu0 0
    %1834 = vmatpush1.bf16.msra.mxu0 0
    %1835 = vmatprep.subr.bf16.mxu0 0
    %1836 = vmatpush1.bf16.msra.mxu0 0
    %1837 = vmatprep.subr.bf16.mxu0 0
    %1838 = vmatpush1.bf16.msra.mxu0 0
    %1839 = vmatprep.subr.bf16.mxu0 0
    %1840 = vmatpush1.bf16.msra.mxu0 0
    %1841 = vmatprep.subr.bf16.mxu0 0
    %1842 = vmatpush1.bf16.msra.mxu0 0
    %1843 = vmatprep.mubr.bf16.mxu0 0
    %1844 = vmatmul.mubr.bf16.gmra.mrb[0].mxu0 %v1806
    %v1845 = vpop.f32.mrb[0].mxu0
    %v1846 = vadd.f32 0.0, %v1845
    %v1847 = vpop.f32.mrb[0].mxu0
    %v1848 = vpop.f32.mrb[0].mxu0
    %v1849 = vpop.f32.mrb[0].mxu0
    %1850 = vdwg.mxu0
    %1852 = vrot.lane.b32.xlu0 %v1748, 8
    %v1853 = vpop.permute.xlu0 %1852
    %1856 = vrot.lane.b32.xlu0 %v1797, 16
    %v1857 = vpop.permute.xlu0 %1856
    %1860 = vrot.lane.b32.xlu0 %v1846, 24
    %v1861 = vpop.permute.xlu0 %1860
    %v1863 = vsel %vm211, %v1699, %v1853
    %v1864 = vsel %vm669, %v1863, %v1857
    %v1865 = vsel %vm671, %v1864, %v1861
    %s1866 = sadd.s32 %s118, 1
    %s1867 = sld [smem:[#allocation3 + %s1866]]
    %v1868 = vstv %s1867
    %vm1869 = vcmp.lt.s32.totalorder %v192, %v1868
    %1871 = vrot.lane.b32.xlu0 %v1314, 120
    %v1872 = vpop.permute.xlu0 %1871
    %1874 = vrot.lane.b32.xlu0 %v1314, 112
    %v1875 = vpop.permute.xlu0 %1874
    %1877 = vrot.lane.b32.xlu0 %v1314, 104
    %v1878 = vpop.permute.xlu0 %1877
    %1881 = vrot.lane.b32.xlu0 %v1379, 120
    %v1882 = vpop.permute.xlu0 %1881
    %1884 = vrot.lane.b32.xlu0 %v1379, 112
    %v1885 = vpop.permute.xlu0 %1884
    %1887 = vrot.lane.b32.xlu0 %v1379, 104
    %v1888 = vpop.permute.xlu0 %1887
    %v1890 = vpack.c.bf16 %v1314, %v1314
    %v1891 = vpack.c.bf16 %v1872, %v1872
    %v1892 = vpack.c.bf16 %v1875, %v1875
    %v1893 = vpack.c.bf16 %v1878, %v1878
    %v1894 = vpack.c.bf16 %v1379, %v1379
    %v1895 = vpack.c.bf16 %v1882, %v1882
    %v1896 = vpack.c.bf16 %v1885, %v1885
    %v1897 = vpack.c.bf16 %v1888, %v1888
    %v1899 = vsel %vm211, %v1890, 0
    %v1902 = vsel %vm211, %v1894, 0
    %1904 = vmatprep.subr.bf16.mxu0 0
    %1905 = vmatpush1.bf16.xpose.msra.mxu0 %v1902
    %1906 = vmatprep.subr.bf16.mxu0 0
    %1907 = vmatpush1.bf16.xpose.msra.mxu0 0
    %1908 = vmatprep.subr.bf16.mxu0 0
    %1909 = vmatpush1.bf16.xpose.msra.mxu0 0
    %1910 = vmatprep.subr.bf16.mxu0 0
    %1911 = vmatpush1.bf16.xpose.msra.mxu0 0
    %1912 = vmatprep.subr.bf16.mxu0 0
    %1913 = vmatpush1.bf16.xpose.msra.mxu0 0
    %1914 = vmatprep.subr.bf16.mxu0 0
    %1915 = vmatpush1.bf16.xpose.msra.mxu0 0
    %1916 = vmatprep.subr.bf16.mxu0 0
    %1917 = vmatpush1.bf16.xpose.msra.mxu0 0
    %1918 = vmatprep.subr.bf16.mxu0 0
    %1919 = vmatpush1.bf16.xpose.msra.mxu0 0
    %1920 = vmatprep.subr.bf16.mxu0 0
    %1921 = vmatpush1.bf16.xpose.msra.mxu0 0
    %1922 = vmatprep.subr.bf16.mxu0 0
    %1923 = vmatpush1.bf16.xpose.msra.mxu0 0
    %1924 = vmatprep.subr.bf16.mxu0 0
    %1925 = vmatpush1.bf16.xpose.msra.mxu0 0
    %1926 = vmatprep.subr.bf16.mxu0 0
    %1927 = vmatpush1.bf16.xpose.msra.mxu0 0
    %1928 = vmatprep.subr.bf16.mxu0 0
    %1929 = vmatpush1.bf16.xpose.msra.mxu0 0
    %1930 = vmatprep.subr.bf16.mxu0 0
    %1931 = vmatpush1.bf16.xpose.msra.mxu0 0
    %1932 = vmatprep.subr.bf16.mxu0 0
    %1933 = vmatpush1.bf16.xpose.msra.mxu0 0
    %1934 = vmatprep.subr.bf16.mxu0 0
    %1935 = vmatpush1.bf16.xpose.msra.mxu0 0
    %1936 = vmatprep.mubr.bf16.mxu0 0
    %1937 = vmatmul.mubr.bf16.gmra.mrb[0].mxu0 %v1899
    %v1938 = vpop.f32.mrb[0].mxu0
    %v1939 = vadd.f32 0.0, %v1938
    %v1940 = vpop.f32.mrb[0].mxu0
    %v1941 = vpop.f32.mrb[0].mxu0
    %v1942 = vpop.f32.mrb[0].mxu0
    %1943 = vdwg.mxu0
    %v1945 = vsel %vm211, %v1891, 0
    %v1948 = vsel %vm211, %v1895, 0
    %1950 = vmatprep.subr.bf16.mxu0 0
    %1951 = vmatpush1.bf16.xpose.msra.mxu0 %v1948
    %1952 = vmatprep.subr.bf16.mxu0 0
    %1953 = vmatpush1.bf16.xpose.msra.mxu0 0
    %1954 = vmatprep.subr.bf16.mxu0 0
    %1955 = vmatpush1.bf16.xpose.msra.mxu0 0
    %1956 = vmatprep.subr.bf16.mxu0 0
    %1957 = vmatpush1.bf16.xpose.msra.mxu0 0
    %1958 = vmatprep.subr.bf16.mxu0 0
    %1959 = vmatpush1.bf16.xpose.msra.mxu0 0
    %1960 = vmatprep.subr.bf16.mxu0 0
    %1961 = vmatpush1.bf16.xpose.msra.mxu0 0
    %1962 = vmatprep.subr.bf16.mxu0 0
    %1963 = vmatpush1.bf16.xpose.msra.mxu0 0
    %1964 = vmatprep.subr.bf16.mxu0 0
    %1965 = vmatpush1.bf16.xpose.msra.mxu0 0
    %1966 = vmatprep.subr.bf16.mxu0 0
    %1967 = vmatpush1.bf16.xpose.msra.mxu0 0
    %1968 = vmatprep.subr.bf16.mxu0 0
    %1969 = vmatpush1.bf16.xpose.msra.mxu0 0
    %1970 = vmatprep.subr.bf16.mxu0 0
    %1971 = vmatpush1.bf16.xpose.msra.mxu0 0
    %1972 = vmatprep.subr.bf16.mxu0 0
    %1973 = vmatpush1.bf16.xpose.msra.mxu0 0
    %1974 = vmatprep.subr.bf16.mxu0 0
    %1975 = vmatpush1.bf16.xpose.msra.mxu0 0
    %1976 = vmatprep.subr.bf16.mxu0 0
    %1977 = vmatpush1.bf16.xpose.msra.mxu0 0
    %1978 = vmatprep.subr.bf16.mxu0 0
    %1979 = vmatpush1.bf16.xpose.msra.mxu0 0
    %1980 = vmatprep.subr.bf16.mxu0 0
    %1981 = vmatpush1.bf16.xpose.msra.mxu0 0
    %1982 = vmatprep.mubr.bf16.mxu0 0
    %1983 = vmatmul.mubr.bf16.gmra.mrb[0].mxu0 %v1945
    %v1984 = vpop.f32.mrb[0].mxu0
    %v1985 = vadd.f32 0.0, %v1984
    %v1986 = vpop.f32.mrb[0].mxu0
    %v1987 = vpop.f32.mrb[0].mxu0
    %v1988 = vpop.f32.mrb[0].mxu0
    %1989 = vdwg.mxu0
    %v1991 = vsel %vm211, %v1892, 0
    %v1994 = vsel %vm211, %v1896, 0
    %1996 = vmatprep.subr.bf16.mxu0 0
    %1997 = vmatpush1.bf16.xpose.msra.mxu0 %v1994
    %1998 = vmatprep.subr.bf16.mxu0 0
    %1999 = vmatpush1.bf16.xpose.msra.mxu0 0
    %2000 = vmatprep.subr.bf16.mxu0 0
    %2001 = vmatpush1.bf16.xpose.msra.mxu0 0
    %2002 = vmatprep.subr.bf16.mxu0 0
    %2003 = vmatpush1.bf16.xpose.msra.mxu0 0
    %2004 = vmatprep.subr.bf16.mxu0 0
    %2005 = vmatpush1.bf16.xpose.msra.mxu0 0
    %2006 = vmatprep.subr.bf16.mxu0 0
    %2007 = vmatpush1.bf16.xpose.msra.mxu0 0
    %2008 = vmatprep.subr.bf16.mxu0 0
    %2009 = vmatpush1.bf16.xpose.msra.mxu0 0
    %2010 = vmatprep.subr.bf16.mxu0 0
    %2011 = vmatpush1.bf16.xpose.msra.mxu0 0
    %2012 = vmatprep.subr.bf16.mxu0 0
    %2013 = vmatpush1.bf16.xpose.msra.mxu0 0
    %2014 = vmatprep.subr.bf16.mxu0 0
    %2015 = vmatpush1.bf16.xpose.msra.mxu0 0
    %2016 = vmatprep.subr.bf16.mxu0 0
    %2017 = vmatpush1.bf16.xpose.msra.mxu0 0
    %2018 = vmatprep.subr.bf16.mxu0 0
    %2019 = vmatpush1.bf16.xpose.msra.mxu0 0
    %2020 = vmatprep.subr.bf16.mxu0 0
    %2021 = vmatpush1.bf16.xpose.msra.mxu0 0
    %2022 = vmatprep.subr.bf16.mxu0 0
    %2023 = vmatpush1.bf16.xpose.msra.mxu0 0
    %2024 = vmatprep.subr.bf16.mxu0 0
    %2025 = vmatpush1.bf16.xpose.msra.mxu0 0
    %2026 = vmatprep.subr.bf16.mxu0 0
    %2027 = vmatpush1.bf16.xpose.msra.mxu0 0
    %2028 = vmatprep.mubr.bf16.mxu0 0
    %2029 = vmatmul.mubr.bf16.gmra.mrb[0].mxu0 %v1991
    %v2030 = vpop.f32.mrb[0].mxu0
    %v2031 = vadd.f32 0.0, %v2030
    %v2032 = vpop.f32.mrb[0].mxu0
    %v2033 = vpop.f32.mrb[0].mxu0
    %v2034 = vpop.f32.mrb[0].mxu0
    %2035 = vdwg.mxu0
    %v2037 = vsel %vm211, %v1893, 0
    %v2040 = vsel %vm211, %v1897, 0
    %2042 = vmatprep.subr.bf16.mxu0 0
    %2043 = vmatpush1.bf16.xpose.msra.mxu0 %v2040
    %2044 = vmatprep.subr.bf16.mxu0 0
    %2045 = vmatpush1.bf16.xpose.msra.mxu0 0
    %2046 = vmatprep.subr.bf16.mxu0 0
    %2047 = vmatpush1.bf16.xpose.msra.mxu0 0
    %2048 = vmatprep.subr.bf16.mxu0 0
    %2049 = vmatpush1.bf16.xpose.msra.mxu0 0
    %2050 = vmatprep.subr.bf16.mxu0 0
    %2051 = vmatpush1.bf16.xpose.msra.mxu0 0
    %2052 = vmatprep.subr.bf16.mxu0 0
    %2053 = vmatpush1.bf16.xpose.msra.mxu0 0
    %2054 = vmatprep.subr.bf16.mxu0 0
    %2055 = vmatpush1.bf16.xpose.msra.mxu0 0
    %2056 = vmatprep.subr.bf16.mxu0 0
    %2057 = vmatpush1.bf16.xpose.msra.mxu0 0
    %2058 = vmatprep.subr.bf16.mxu0 0
    %2059 = vmatpush1.bf16.xpose.msra.mxu0 0
    %2060 = vmatprep.subr.bf16.mxu0 0
    %2061 = vmatpush1.bf16.xpose.msra.mxu0 0
    %2062 = vmatprep.subr.bf16.mxu0 0
    %2063 = vmatpush1.bf16.xpose.msra.mxu0 0
    %2064 = vmatprep.subr.bf16.mxu0 0
    %2065 = vmatpush1.bf16.xpose.msra.mxu0 0
    %2066 = vmatprep.subr.bf16.mxu0 0
    %2067 = vmatpush1.bf16.xpose.msra.mxu0 0
    %2068 = vmatprep.subr.bf16.mxu0 0
    %2069 = vmatpush1.bf16.xpose.msra.mxu0 0
    %2070 = vmatprep.subr.bf16.mxu0 0
    %2071 = vmatpush1.bf16.xpose.msra.mxu0 0
    %2072 = vmatprep.subr.bf16.mxu0 0
    %2073 = vmatpush1.bf16.xpose.msra.mxu0 0
    %2074 = vmatprep.mubr.bf16.mxu0 0
    %2075 = vmatmul.mubr.bf16.gmra.mrb[0].mxu0 %v2037
    %v2076 = vpop.f32.mrb[0].mxu0
    %v2077 = vadd.f32 0.0, %v2076
    %v2078 = vpop.f32.mrb[0].mxu0
    %v2079 = vpop.f32.mrb[0].mxu0
    %v2080 = vpop.f32.mrb[0].mxu0
    %2081 = vdwg.mxu0
    %v2082 = vmul.f32 %v1939, 0.35355338
    %v2083 = vmul.f32 %v1985, 0.35355338
    %v2084 = vmul.f32 %v2031, 0.35355338
    %v2085 = vmul.f32 %v2077, 0.35355338
    %v2086 = vsel %vm1869, 1, 0
    %vm2087 = vcmp.eq.s32.totalorder %v2086, 1
    %v2088 = vsel %vm2087, %v2082, -1000000.0
    %v2089 = vsel %vm2087, %v2083, -1000000.0
    %v2090 = vsel %vm2087, %v2084, -1000000.0
    %v2091 = vsel %vm2087, %v2085, -1000000.0
    %v2092 = vsel %vm211, %v2088, -inf
    %2093 = vmax.xlane.f32.xlu0 %v2092
    %v2094 = vpop.xlane.xlu0 %2093
    %v2095 = vsel %vm211, %v2089, -inf
    %2096 = vmax.xlane.f32.xlu0 %v2095
    %v2097 = vpop.xlane.xlu0 %2096
    %v2098 = vsel %vm211, %v2090, -inf
    %2099 = vmax.xlane.f32.xlu0 %v2098
    %v2100 = vpop.xlane.xlu0 %2099
    %v2101 = vsel %vm211, %v2091, -inf
    %2102 = vmax.xlane.f32.xlu0 %v2101
    %v2103 = vpop.xlane.xlu0 %2102
    %v2104 = vsub.f32 %v2088, %v2094
    %v2105 = vsub.f32 %v2089, %v2097
    %v2106 = vsub.f32 %v2090, %v2100
    %v2107 = vsub.f32 %v2091, %v2103
    %v2108 = vmul.f32 %v2104, 1.442695
    %v2109 = vpow.pop %v2108
    %v2110 = vmul.f32 %v2105, 1.442695
    %v2111 = vpow.pop %v2110
    %v2112 = vmul.f32 %v2106, 1.442695
    %v2113 = vpow.pop %v2112
    %v2114 = vmul.f32 %v2107, 1.442695
    %v2115 = vpow.pop %v2114
    %v2116 = vsel %vm211, %v2109, 0.0
    %2117 = vadd.xlane.f32.xlu0 %v2116
    %v2118 = vpop.xlane.xlu0 %2117
    %v2119 = vsel %vm211, %v2111, 0.0
    %2120 = vadd.xlane.f32.xlu0 %v2119
    %v2121 = vpop.xlane.xlu0 %2120
    %v2122 = vsel %vm211, %v2113, 0.0
    %2123 = vadd.xlane.f32.xlu0 %v2122
    %v2124 = vpop.xlane.xlu0 %2123
    %v2125 = vsel %vm211, %v2115, 0.0
    %2126 = vadd.xlane.f32.xlu0 %v2125
    %v2127 = vpop.xlane.xlu0 %2126
    %v2128 = vrcp.pop %v2118
    %v2129 = vrcp.pop %v2121
    %v2130 = vrcp.pop %v2124
    %v2131 = vrcp.pop %v2127
    %v2132 = vmul.f32 %v2109, %v2128
    %v2133 = vmul.f32 %v2111, %v2129
    %v2134 = vmul.f32 %v2113, %v2130
    %v2135 = vmul.f32 %v2115, %v2131
    %v2136 = vpack.c.bf16 %v2132, %v2132
    %v2137 = vpack.c.bf16 %v2133, %v2133
    %v2138 = vpack.c.bf16 %v2134, %v2134
    %v2139 = vpack.c.bf16 %v2135, %v2135
    %2141 = vrot.lane.b32.xlu0 %v1894, 96
    %v2142 = vpop.permute.xlu0 %2141
    %v2144 = vsel %vm211, %v2136, 0
    %v2147 = vsel %vm468, %v2142, 0
    %2149 = vmatprep.subr.bf16.mxu0 0
    %2150 = vmatpush1.bf16.msra.mxu0 %v2147
    %2151 = vmatprep.subr.bf16.mxu0 0
    %2152 = vmatpush1.bf16.msra.mxu0 0
    %2153 = vmatprep.subr.bf16.mxu0 0
    %2154 = vmatpush1.bf16.msra.mxu0 0
    %2155 = vmatprep.subr.bf16.mxu0 0
    %2156 = vmatpush1.bf16.msra.mxu0 0
    %2157 = vmatprep.subr.bf16.mxu0 0
    %2158 = vmatpush1.bf16.msra.mxu0 0
    %2159 = vmatprep.subr.bf16.mxu0 0
    %2160 = vmatpush1.bf16.msra.mxu0 0
    %2161 = vmatprep.subr.bf16.mxu0 0
    %2162 = vmatpush1.bf16.msra.mxu0 0
    %2163 = vmatprep.subr.bf16.mxu0 0
    %2164 = vmatpush1.bf16.msra.mxu0 0
    %2165 = vmatprep.subr.bf16.mxu0 0
    %2166 = vmatpush1.bf16.msra.mxu0 0
    %2167 = vmatprep.subr.bf16.mxu0 0
    %2168 = vmatpush1.bf16.msra.mxu0 0
    %2169 = vmatprep.subr.bf16.mxu0 0
    %2170 = vmatpush1.bf16.msra.mxu0 0
    %2171 = vmatprep.subr.bf16.mxu0 0
    %2172 = vmatpush1.bf16.msra.mxu0 0
    %2173 = vmatprep.subr.bf16.mxu0 0
    %2174 = vmatpush1.bf16.msra.mxu0 0
    %2175 = vmatprep.subr.bf16.mxu0 0
    %2176 = vmatpush1.bf16.msra.mxu0 0
    %2177 = vmatprep.subr.bf16.mxu0 0
    %2178 = vmatpush1.bf16.msra.mxu0 0
    %2179 = vmatprep.subr.bf16.mxu0 0
    %2180 = vmatpush1.bf16.msra.mxu0 0
    %2181 = vmatprep.mubr.bf16.mxu0 0
    %2182 = vmatmul.mubr.bf16.gmra.mrb[0].mxu0 %v2144
    %v2183 = vpop.f32.mrb[0].mxu0
    %v2184 = vadd.f32 0.0, %v2183
    %v2185 = vpop.f32.mrb[0].mxu0
    %v2186 = vpop.f32.mrb[0].mxu0
    %v2187 = vpop.f32.mrb[0].mxu0
    %2188 = vdwg.mxu0
    %2190 = vrot.lane.b32.xlu0 %v1895, 96
    %v2191 = vpop.permute.xlu0 %2190
    %v2193 = vsel %vm211, %v2137, 0
    %v2196 = vsel %vm468, %v2191, 0
    %2198 = vmatprep.subr.bf16.mxu0 0
    %2199 = vmatpush1.bf16.msra.mxu0 %v2196
    %2200 = vmatprep.subr.bf16.mxu0 0
    %2201 = vmatpush1.bf16.msra.mxu0 0
    %2202 = vmatprep.subr.bf16.mxu0 0
    %2203 = vmatpush1.bf16.msra.mxu0 0
    %2204 = vmatprep.subr.bf16.mxu0 0
    %2205 = vmatpush1.bf16.msra.mxu0 0
    %2206 = vmatprep.subr.bf16.mxu0 0
    %2207 = vmatpush1.bf16.msra.mxu0 0
    %2208 = vmatprep.subr.bf16.mxu0 0
    %2209 = vmatpush1.bf16.msra.mxu0 0
    %2210 = vmatprep.subr.bf16.mxu0 0
    %2211 = vmatpush1.bf16.msra.mxu0 0
    %2212 = vmatprep.subr.bf16.mxu0 0
    %2213 = vmatpush1.bf16.msra.mxu0 0
    %2214 = vmatprep.subr.bf16.mxu0 0
    %2215 = vmatpush1.bf16.msra.mxu0 0
    %2216 = vmatprep.subr.bf16.mxu0 0
    %2217 = vmatpush1.bf16.msra.mxu0 0
    %2218 = vmatprep.subr.bf16.mxu0 0
    %2219 = vmatpush1.bf16.msra.mxu0 0
    %2220 = vmatprep.subr.bf16.mxu0 0
    %2221 = vmatpush1.bf16.msra.mxu0 0
    %2222 = vmatprep.subr.bf16.mxu0 0
    %2223 = vmatpush1.bf16.msra.mxu0 0
    %2224 = vmatprep.subr.bf16.mxu0 0
    %2225 = vmatpush1.bf16.msra.mxu0 0
    %2226 = vmatprep.subr.bf16.mxu0 0
    %2227 = vmatpush1.bf16.msra.mxu0 0
    %2228 = vmatprep.subr.bf16.mxu0 0
    %2229 = vmatpush1.bf16.msra.mxu0 0
    %2230 = vmatprep.mubr.bf16.mxu0 0
    %2231 = vmatmul.mubr.bf16.gmra.mrb[0].mxu0 %v2193
    %v2232 = vpop.f32.mrb[0].mxu0
    %v2233 = vadd.f32 0.0, %v2232
    %v2234 = vpop.f32.mrb[0].mxu0
    %v2235 = vpop.f32.mrb[0].mxu0
    %v2236 = vpop.f32.mrb[0].mxu0
    %2237 = vdwg.mxu0
    %2239 = vrot.lane.b32.xlu0 %v1896, 96
    %v2240 = vpop.permute.xlu0 %2239
    %v2242 = vsel %vm211, %v2138, 0
    %v2245 = vsel %vm468, %v2240, 0
    %2247 = vmatprep.subr.bf16.mxu0 0
    %2248 = vmatpush1.bf16.msra.mxu0 %v2245
    %2249 = vmatprep.subr.bf16.mxu0 0
    %2250 = vmatpush1.bf16.msra.mxu0 0
    %2251 = vmatprep.subr.bf16.mxu0 0
    %2252 = vmatpush1.bf16.msra.mxu0 0
    %2253 = vmatprep.subr.bf16.mxu0 0
    %2254 = vmatpush1.bf16.msra.mxu0 0
    %2255 = vmatprep.subr.bf16.mxu0 0
    %2256 = vmatpush1.bf16.msra.mxu0 0
    %2257 = vmatprep.subr.bf16.mxu0 0
    %2258 = vmatpush1.bf16.msra.mxu0 0
    %2259 = vmatprep.subr.bf16.mxu0 0
    %2260 = vmatpush1.bf16.msra.mxu0 0
    %2261 = vmatprep.subr.bf16.mxu0 0
    %2262 = vmatpush1.bf16.msra.mxu0 0
    %2263 = vmatprep.subr.bf16.mxu0 0
    %2264 = vmatpush1.bf16.msra.mxu0 0
    %2265 = vmatprep.subr.bf16.mxu0 0
    %2266 = vmatpush1.bf16.msra.mxu0 0
    %2267 = vmatprep.subr.bf16.mxu0 0
    %2268 = vmatpush1.bf16.msra.mxu0 0
    %2269 = vmatprep.subr.bf16.mxu0 0
    %2270 = vmatpush1.bf16.msra.mxu0 0
    %2271 = vmatprep.subr.bf16.mxu0 0
    %2272 = vmatpush1.bf16.msra.mxu0 0
    %2273 = vmatprep.subr.bf16.mxu0 0
    %2274 = vmatpush1.bf16.msra.mxu0 0
    %2275 = vmatprep.subr.bf16.mxu0 0
    %2276 = vmatpush1.bf16.msra.mxu0 0
    %2277 = vmatprep.subr.bf16.mxu0 0
    %2278 = vmatpush1.bf16.msra.mxu0 0
    %2279 = vmatprep.mubr.bf16.mxu0 0
    %2280 = vmatmul.mubr.bf16.gmra.mrb[0].mxu0 %v2242
    %v2281 = vpop.f32.mrb[0].mxu0
    %v2282 = vadd.f32 0.0, %v2281
    %v2283 = vpop.f32.mrb[0].mxu0
    %v2284 = vpop.f32.mrb[0].mxu0
    %v2285 = vpop.f32.mrb[0].mxu0
    %2286 = vdwg.mxu0
    %2288 = vrot.lane.b32.xlu0 %v1897, 96
    %v2289 = vpop.permute.xlu0 %2288
    %v2291 = vsel %vm211, %v2139, 0
    %v2294 = vsel %vm468, %v2289, 0
    %2296 = vmatprep.subr.bf16.mxu0 0
    %2297 = vmatpush1.bf16.msra.mxu0 %v2294
    %2298 = vmatprep.subr.bf16.mxu0 0
    %2299 = vmatpush1.bf16.msra.mxu0 0
    %2300 = vmatprep.subr.bf16.mxu0 0
    %2301 = vmatpush1.bf16.msra.mxu0 0
    %2302 = vmatprep.subr.bf16.mxu0 0
    %2303 = vmatpush1.bf16.msra.mxu0 0
    %2304 = vmatprep.subr.bf16.mxu0 0
    %2305 = vmatpush1.bf16.msra.mxu0 0
    %2306 = vmatprep.subr.bf16.mxu0 0
    %2307 = vmatpush1.bf16.msra.mxu0 0
    %2308 = vmatprep.subr.bf16.mxu0 0
    %2309 = vmatpush1.bf16.msra.mxu0 0
    %2310 = vmatprep.subr.bf16.mxu0 0
    %2311 = vmatpush1.bf16.msra.mxu0 0
    %2312 = vmatprep.subr.bf16.mxu0 0
    %2313 = vmatpush1.bf16.msra.mxu0 0
    %2314 = vmatprep.subr.bf16.mxu0 0
    %2315 = vmatpush1.bf16.msra.mxu0 0
    %2316 = vmatprep.subr.bf16.mxu0 0
    %2317 = vmatpush1.bf16.msra.mxu0 0
    %2318 = vmatprep.subr.bf16.mxu0 0
    %2319 = vmatpush1.bf16.msra.mxu0 0
    %2320 = vmatprep.subr.bf16.mxu0 0
    %2321 = vmatpush1.bf16.msra.mxu0 0
    %2322 = vmatprep.subr.bf16.mxu0 0
    %2323 = vmatpush1.bf16.msra.mxu0 0
    %2324 = vmatprep.subr.bf16.mxu0 0
    %2325 = vmatpush1.bf16.msra.mxu0 0
    %2326 = vmatprep.subr.bf16.mxu0 0
    %2327 = vmatpush1.bf16.msra.mxu0 0
    %2328 = vmatprep.mubr.bf16.mxu0 0
    %2329 = vmatmul.mubr.bf16.gmra.mrb[0].mxu0 %v2291
    %v2330 = vpop.f32.mrb[0].mxu0
    %v2331 = vadd.f32 0.0, %v2330
    %v2332 = vpop.f32.mrb[0].mxu0
    %v2333 = vpop.f32.mrb[0].mxu0
    %v2334 = vpop.f32.mrb[0].mxu0
    %2335 = vdwg.mxu0
    %2337 = vrot.lane.b32.xlu0 %v2233, 8
    %v2338 = vpop.permute.xlu0 %2337
    %2341 = vrot.lane.b32.xlu0 %v2282, 16
    %v2342 = vpop.permute.xlu0 %2341
    %2345 = vrot.lane.b32.xlu0 %v2331, 24
    %v2346 = vpop.permute.xlu0 %2345
    %v2348 = vsel %vm211, %v2184, %v2338
    %v2349 = vsel %vm669, %v2348, %v2342
    %v2350 = vsel %vm671, %v2349, %v2346
    %v2351 = vpack.c.bf16 %v2350, %v1865
    %v2352 = vld [vmem:[#allocation10] sm:$0xf]
    %v2353 = vld [vmem:[#allocation10 + $0x4] sm:$0xf]
    %v2354 = vld [vmem:[#allocation10 + $0x8] sm:$0xf]
    %v2355 = vld [vmem:[#allocation10 + $0xc] sm:$0xf]
    %v2360 = vunpack.c.l.b16 %v2352
    %v2361 = vunpack.c.l.b16 %v2353
    %v2362 = vunpack.c.l.b16 %v2354
    %v2363 = vunpack.c.l.b16 %v2355
    %v2364 = vpack.c.b16 %v2361, %v2360
    %v2365 = vpack.c.b16 %v2363, %v2362
    %v2369 = vsel %vm144, %v2351, 0
    %2371 = vmatprep.subr.bf16.mxu0 0
    %2372 = vmatpush1.bf16.msra.mxu0 %v2364
    %2373 = vmatprep.subr.bf16.mxu0 0
    %2374 = vmatpush1.bf16.msra.mxu0 %v2365
    %2375 = vmatprep.subr.bf16.mxu0 0
    %2376 = vmatpush1.bf16.msra.mxu0 0
    %2377 = vmatprep.subr.bf16.mxu0 0
    %2378 = vmatpush1.bf16.msra.mxu0 0
    %2379 = vmatprep.subr.bf16.mxu0 0
    %2380 = vmatpush1.bf16.msra.mxu0 0
    %2381 = vmatprep.subr.bf16.mxu0 0
    %2382 = vmatpush1.bf16.msra.mxu0 0
    %2383 = vmatprep.subr.bf16.mxu0 0
    %2384 = vmatpush1.bf16.msra.mxu0 0
    %2385 = vmatprep.subr.bf16.mxu0 0
    %2386 = vmatpush1.bf16.msra.mxu0 0
    %2387 = vmatprep.subr.bf16.mxu0 0
    %2388 = vmatpush1.bf16.msra.mxu0 0
    %2389 = vmatprep.subr.bf16.mxu0 0
    %2390 = vmatpush1.bf16.msra.mxu0 0
    %2391 = vmatprep.subr.bf16.mxu0 0
    %2392 = vmatpush1.bf16.msra.mxu0 0
    %2393 = vmatprep.subr.bf16.mxu0 0
    %2394 = vmatpush1.bf16.msra.mxu0 0
    %2395 = vmatprep.subr.bf16.mxu0 0
    %2396 = vmatpush1.bf16.msra.mxu0 0
    %2397 = vmatprep.subr.bf16.mxu0 0
    %2398 = vmatpush1.bf16.msra.mxu0 0
    %2399 = vmatprep.subr.bf16.mxu0 0
    %2400 = vmatpush1.bf16.msra.mxu0 0
    %2401 = vmatprep.subr.bf16.mxu0 0
    %2402 = vmatpush1.bf16.msra.mxu0 0
    %2403 = vmatprep.mubr.bf16.mxu0 0
    %2404 = vmatmul.mubr.bf16.gmra.mrb[0].mxu0 %v2369
    %v2405 = vpop.f32.mrb[0].mxu0
    %v2406 = vadd.f32 0.0, %v2405
    %v2407 = vpop.f32.mrb[0].mxu0
    %v2408 = vpop.f32.mrb[0].mxu0
    %v2409 = vadd.f32 0.0, %v2408
    %v2410 = vpop.f32.mrb[0].mxu0
    %2411 = vdwg.mxu0
    %v2412 = vadd.f32 %v1254, %v2406
    %v2413 = vadd.f32 %v1255, %v2409
    %v2414 = vld [vmem:[%s10] sm:$0x1]
    %v2415 = vld [vmem:[%s11] sm:$0x1]
    %v2416 = vsel %vm144, %v2412, 0.0
    %2417 = vadd.xlane.f32.xlu0 %v2416
    %v2418 = vpop.xlane.xlu0 %2417
    %v2419 = vsel %vm144, %v2413, 0.0
    %2420 = vadd.xlane.f32.xlu0 %v2419
    %v2421 = vpop.xlane.xlu0 %2420
    %v2422 = vmul.f32 %v2418, %v1219
    %v2423 = vmul.f32 %v2421, %v1219
    %v2424 = vsub.f32 %v2412, %v2422
    %v2425 = vsub.f32 %v2413, %v2423
    %v2426 = vmul.f32 %v2424, %v2424
    %v2427 = vmul.f32 %v2425, %v2425
    %v2428 = vsel %vm144, %v2426, 0.0
    %2429 = vadd.xlane.f32.xlu0 %v2428
    %v2430 = vpop.xlane.xlu0 %2429
    %v2431 = vsel %vm144, %v2427, 0.0
    %2432 = vadd.xlane.f32.xlu0 %v2431
    %v2433 = vpop.xlane.xlu0 %2432
    %v2434 = vmul.f32 %v2430, %v1219
    %v2435 = vmul.f32 %v2433, %v1219
    %v2436 = vadd.f32 %v2434, 1e-05
    %v2437 = vadd.f32 %v2435, 1e-05
    %v2438 = vrsqrt.pop %v2436
    %v2439 = vrsqrt.pop %v2437
    %v2440 = vmul.f32 %v2424, %v2438
    %v2441 = vmul.f32 %v2425, %v2439
    %v2443 = vlaneseq
    %v2444 = vshrl.u32 %v2443, 7
    %v2445 = vsub.s32 0, %v2444
    %v2446 = vrot.slane %v2414, %v2445
    %v2448 = vmul.f32 %v2440, %v2446
    %v2449 = vmul.f32 %v2441, %v2446
    %v2451 = vlaneseq
    %v2452 = vshrl.u32 %v2451, 7
    %v2453 = vsub.s32 0, %v2452
    %v2454 = vrot.slane %v2415, %v2453
    %v2456 = vadd.f32 %v2448, %v2454
    %v2457 = vadd.f32 %v2449, %v2454
    %v2458 = vpack.c.bf16 %v2457, %v2456
    %v2459 = vld [vmem:[%s14] sm:$0xf]
    %v2460 = vld [vmem:[%s14 + $0x4] sm:$0xf]
    %v2461 = vld [vmem:[%s14 + $0x8] sm:$0xf]
    %v2462 = vld [vmem:[%s14 + $0xc] sm:$0xf]
    %v2463 = vld [vmem:[%s15] sm:$0x1]
    %v2465 = vlaneseq
    %v2466 = vshrl.u32 %v2465, 7
    %v2467 = vsub.s32 0, %v2466
    %v2468 = vrot.slane %v2463, %v2467
    %v2474 = vunpack.c.l.b16 %v2459
    %v2475 = vunpack.c.l.b16 %v2460
    %v2476 = vunpack.c.l.b16 %v2461
    %v2477 = vunpack.c.l.b16 %v2462
    %v2478 = vpack.c.b16 %v2475, %v2474
    %v2479 = vpack.c.b16 %v2477, %v2476
    %v2483 = vsel %vm144, %v2458, 0
    %2485 = vmatprep.subr.bf16.mxu0 0
    %2486 = vmatpush1.bf16.msra.mxu0 %v2478
    %2487 = vmatprep.subr.bf16.mxu0 0
    %2488 = vmatpush1.bf16.msra.mxu0 %v2479
    %2489 = vmatprep.subr.bf16.mxu0 0
    %2490 = vmatpush1.bf16.msra.mxu0 0
    %2491 = vmatprep.subr.bf16.mxu0 0
    %2492 = vmatpush1.bf16.msra.mxu0 0
    %2493 = vmatprep.subr.bf16.mxu0 0
    %2494 = vmatpush1.bf16.msra.mxu0 0
    %2495 = vmatprep.subr.bf16.mxu0 0
    %2496 = vmatpush1.bf16.msra.mxu0 0
    %2497 = vmatprep.subr.bf16.mxu0 0
    %2498 = vmatpush1.bf16.msra.mxu0 0
    %2499 = vmatprep.subr.bf16.mxu0 0
    %2500 = vmatpush1.bf16.msra.mxu0 0
    %2501 = vmatprep.subr.bf16.mxu0 0
    %2502 = vmatpush1.bf16.msra.mxu0 0
    %2503 = vmatprep.subr.bf16.mxu0 0
    %2504 = vmatpush1.bf16.msra.mxu0 0
    %2505 = vmatprep.subr.bf16.mxu0 0
    %2506 = vmatpush1.bf16.msra.mxu0 0
    %2507 = vmatprep.subr.bf16.mxu0 0
    %2508 = vmatpush1.bf16.msra.mxu0 0
    %2509 = vmatprep.subr.bf16.mxu0 0
    %2510 = vmatpush1.bf16.msra.mxu0 0
    %2511 = vmatprep.subr.bf16.mxu0 0
    %2512 = vmatpush1.bf16.msra.mxu0 0
    %2513 = vmatprep.subr.bf16.mxu0 0
    %2514 = vmatpush1.bf16.msra.mxu0 0
    %2515 = vmatprep.subr.bf16.mxu0 0
    %2516 = vmatpush1.bf16.msra.mxu0 0
    %2517 = vmatprep.mubr.bf16.mxu0 0
    %2518 = vmatmul.mubr.bf16.gmra.mrb[0].mxu0 %v2483
    %v2519 = vpop.f32.mrb[0].mxu0
    %v2520 = vadd.f32 %v2468, %v2519
    %v2521 = vpop.f32.mrb[0].mxu0
    %v2522 = vpop.f32.mrb[0].mxu0
    %v2523 = vadd.f32 %v2468, %v2522
    %v2524 = vpop.f32.mrb[0].mxu0
    %2525 = vdwg.mxu0
    %v2526 = vmax.f32 %v2520, 0.0
    %v2527 = vmax.f32 %v2523, 0.0
    %v2528 = vpack.c.bf16 %v2527, %v2526
    %v2529 = vld [vmem:[%s16] sm:$0xf]
    %v2530 = vld [vmem:[%s16 + $0x4] sm:$0xf]
    %v2531 = vld [vmem:[%s16 + $0x8] sm:$0xf]
    %v2532 = vld [vmem:[%s16 + $0xc] sm:$0xf]
    %v2533 = vld [vmem:[%s16 + $0x10] sm:$0xf]
    %v2534 = vld [vmem:[%s16 + $0x14] sm:$0xf]
    %v2535 = vld [vmem:[%s16 + $0x18] sm:$0xf]
    %v2536 = vld [vmem:[%s16 + $0x1c] sm:$0xf]
    %v2537 = vld [vmem:[%s17] sm:$0x1]
    %v2539 = vlaneseq
    %v2540 = vshrl.u32 %v2539, 7
    %v2541 = vsub.s32 0, %v2540
    %v2542 = vrot.slane %v2537, %v2541
    %v2552 = vunpack.c.l.b16 %v2529
    %v2553 = vunpack.c.l.b16 %v2530
    %v2554 = vunpack.c.l.b16 %v2531
    %v2555 = vunpack.c.l.b16 %v2532
    %v2556 = vunpack.c.l.b16 %v2533
    %v2557 = vunpack.c.l.b16 %v2534
    %v2558 = vunpack.c.l.b16 %v2535
    %v2559 = vunpack.c.l.b16 %v2536
    %v2560 = vpack.c.b16 %v2553, %v2552
    %v2561 = vpack.c.b16 %v2555, %v2554
    %v2562 = vpack.c.b16 %v2557, %v2556
    %v2563 = vpack.c.b16 %v2559, %v2558
    %vm2568 = vcmask 523264
    %v2570 = vsel %vm2568, %v2528, 0
    %2572 = vmatprep.subr.bf16.mxu0 0
    %2573 = vmatpush1.bf16.msra.mxu0 %v2560
    %2574 = vmatprep.subr.bf16.mxu0 0
    %2575 = vmatpush1.bf16.msra.mxu0 %v2561
    %2576 = vmatprep.subr.bf16.mxu0 0
    %2577 = vmatpush1.bf16.msra.mxu0 %v2562
    %2578 = vmatprep.subr.bf16.mxu0 0
    %2579 = vmatpush1.bf16.msra.mxu0 %v2563
    %2580 = vmatprep.subr.bf16.mxu0 0
    %2581 = vmatpush1.bf16.msra.mxu0 0
    %2582 = vmatprep.subr.bf16.mxu0 0
    %2583 = vmatpush1.bf16.msra.mxu0 0
    %2584 = vmatprep.subr.bf16.mxu0 0
    %2585 = vmatpush1.bf16.msra.mxu0 0
    %2586 = vmatprep.subr.bf16.mxu0 0
    %2587 = vmatpush1.bf16.msra.mxu0 0
    %2588 = vmatprep.subr.bf16.mxu0 0
    %2589 = vmatpush1.bf16.msra.mxu0 0
    %2590 = vmatprep.subr.bf16.mxu0 0
    %2591 = vmatpush1.bf16.msra.mxu0 0
    %2592 = vmatprep.subr.bf16.mxu0 0
    %2593 = vmatpush1.bf16.msra.mxu0 0
    %2594 = vmatprep.subr.bf16.mxu0 0
    %2595 = vmatpush1.bf16.msra.mxu0 0
    %2596 = vmatprep.subr.bf16.mxu0 0
    %2597 = vmatpush1.bf16.msra.mxu0 0
    %2598 = vmatprep.subr.bf16.mxu0 0
    %2599 = vmatpush1.bf16.msra.mxu0 0
    %2600 = vmatprep.subr.bf16.mxu0 0
    %2601 = vmatpush1.bf16.msra.mxu0 0
    %2602 = vmatprep.subr.bf16.mxu0 0
    %2603 = vmatpush1.bf16.msra.mxu0 0
    %2604 = vmatprep.mubr.bf16.mxu0 0
    %2605 = vmatmul.mubr.bf16.gmra.mrb[0].mxu0 %v2570
    %v2606 = vpop.f32.mrb[0].mxu0
    %v2607 = vadd.f32 %v2542, %v2606
    %v2608 = vpop.f32.mrb[0].mxu0
    %v2609 = vpop.f32.mrb[0].mxu0
    %v2610 = vadd.f32 %v2542, %v2609
    %v2611 = vpop.f32.mrb[0].mxu0
    %2612 = vdwg.mxu0
    %v2613 = vadd.f32 %v2456, %v2607
    %v2614 = vadd.f32 %v2457, %v2610
    %v2615 = vld [vmem:[%s12] sm:$0x1]
    %v2616 = vld [vmem:[%s13] sm:$0x1]
    %v2617 = vsel %vm144, %v2613, 0.0
    %2618 = vadd.xlane.f32.xlu0 %v2617
    %v2619 = vpop.xlane.xlu0 %2618
    %v2620 = vsel %vm144, %v2614, 0.0
    %2621 = vadd.xlane.f32.xlu0 %v2620
    %v2622 = vpop.xlane.xlu0 %2621
    %v2623 = vmul.f32 %v2619, %v1219
    %v2624 = vmul.f32 %v2622, %v1219
    %v2625 = vsub.f32 %v2613, %v2623
    %v2626 = vsub.f32 %v2614, %v2624
    %v2627 = vmul.f32 %v2625, %v2625
    %v2628 = vmul.f32 %v2626, %v2626
    %v2629 = vsel %vm144, %v2627, 0.0
    %2630 = vadd.xlane.f32.xlu0 %v2629
    %v2631 = vpop.xlane.xlu0 %2630
    %v2632 = vsel %vm144, %v2628, 0.0
    %2633 = vadd.xlane.f32.xlu0 %v2632
    %v2634 = vpop.xlane.xlu0 %2633
    %v2635 = vmul.f32 %v2631, %v1219
    %v2636 = vmul.f32 %v2634, %v1219
    %v2637 = vadd.f32 %v2635, 1e-05
    %v2638 = vadd.f32 %v2636, 1e-05
    %v2639 = vrsqrt.pop %v2637
    %v2640 = vrsqrt.pop %v2638
    %v2641 = vmul.f32 %v2625, %v2639
    %v2642 = vmul.f32 %v2626, %v2640
    %v2644 = vlaneseq
    %v2645 = vshrl.u32 %v2644, 7
    %v2646 = vsub.s32 0, %v2645
    %v2647 = vrot.slane %v2615, %v2646
    %v2649 = vmul.f32 %v2641, %v2647
    %v2650 = vmul.f32 %v2642, %v2647
    %v2652 = vlaneseq
    %v2653 = vshrl.u32 %v2652, 7
    %v2654 = vsub.s32 0, %v2653
    %v2655 = vrot.slane %v2616, %v2654
    %v2657 = vadd.f32 %v2649, %v2655
    %v2658 = vadd.f32 %v2650, %v2655
    %2659 = vst.msk [vmem:[#allocation12] sm:$0xff] %vm144, %v2657
    %2660 = vst.msk [vmem:[#allocation12 + $0x8] sm:$0xff] %vm144, %v2658
    // Predicated region
    $region86: #{tpu_custom_call.1} parent=1 // pred_check
      _
    $region87: #{tpu_custom_call.1} parent=1 // pred_check_branch
      %2662 = sbr.rel (0) target = $region89
    $region88: #{tpu_custom_call.1} parent=1 // pred_region
      %s2664 = ssub.s32 256, 256
      %2665 = vsyncadd [#allocation6], %s2664
      %s2666 = sshll.u32 [#allocation12], 4
      %s2667 = int_to_ptr.vmem [resolvable:$true] %s2666
      %2672 = dma.vmem_to_hbm [thread:$0]  %s2667, 256, %s18, [#allocation6], 128, 128, 8
    $region89: #{tpu_custom_call.1} parent=1 // pred_fallthru
      _
    // Predicated region
    $region90: #{tpu_custom_call.1} parent=1 // pred_check
      _
    $region91: #{tpu_custom_call.1} parent=1 // pred_check_branch
      %2674 = sbr.rel (0) target = $region93
    $region92: #{tpu_custom_call.1} parent=1 // pred_region
      %2675 = dma.done [#allocation6], 256
    $region93: #{tpu_custom_call.1} parent=1 // pred_fallthru
      _
    %2676 = vsyncpa [#allocation5], 1
    %2677 = vsyncpa [#allocation8], 1
    %2678 = vsyncpa [#allocation11], 1
    %2679 = vsyncpa [#allocation6], 1

</llo_original>
